<compile_context>
chip_gen: v5e
topology: v5e:2x2
jax: 0.10.0
libtpu: 0.0.40
codegen_flags: <defaults>
</compile_context>

<pallas_src>
import functools

import jax
import jax.numpy as jnp
from jax.experimental import pallas as pl
from jax.experimental.pallas import tpu as pltpu


# ----------------------------------------------------------------------------
# Elementwise GELU (exact / erf), usable in kernels and in the JAX reference.
# ----------------------------------------------------------------------------
def _gelu(x):
    """torch.nn.GELU() default (erf-based); erf via A&S 7.1.26 polynomial."""
    z = x * 0.7071067811865476          # x / sqrt(2)
    s = jnp.where(z < 0.0, -1.0, 1.0)
    a = jnp.abs(z)
    t = 1.0 / (1.0 + 0.3275911 * a)
    poly = t * (0.254829592 + t * (-0.284496736 + t * (1.421413741
             + t * (-1.453152027 + t * 1.061405429))))
    erf = s * (1.0 - poly * jnp.exp(-a * a))
    return 0.5 * x * (1.0 + erf)


# ----------------------------------------------------------------------------
# ConvTranspose2d(k=2, s=2) as a single tiled matmul
# ----------------------------------------------------------------------------
def _convt_kernel(x_ref, w_ref, b_ref, o_ref):
    o_ref[...] = (jnp.dot(x_ref[...], w_ref[...],
                          preferred_element_type=jnp.float32) + b_ref[...])


def conv_transpose_2x2(x, w4, b, *, block_m=512):
    """x: (N,H,W,Cin), w4: (Cin,2,2,Cout), b: (Cout,) -> (N,2H,2W,Cout)."""
    N, H, W, Cin = x.shape
    Cout = w4.shape[-1]
    M = N * H * W
    bm = min(block_m, M)

    x2 = x.reshape(M, Cin)
    wm = w4.reshape(Cin, 4 * Cout)            # columns ordered (a, b, co)
    bias = jnp.tile(b, 4)[None, :]

    out = pl.pallas_call(
        _convt_kernel,
        out_shape=jax.ShapeDtypeStruct((M, 4 * Cout), jnp.float32),
        grid=(pl.cdiv(M, bm),),
        in_specs=[
            pl.BlockSpec((bm, Cin), lambda i: (i, 0)),
            pl.BlockSpec((Cin, 4 * Cout), lambda i: (0, 0)),
            pl.BlockSpec((1, 4 * Cout), lambda i: (0, 0)),
        ],
        out_specs=pl.BlockSpec((bm, 4 * Cout), lambda i: (i, 0)),
        compiler_params=pltpu.CompilerParams(dimension_semantics=("parallel",)),
    )(x2, wm, bias)

    # scatter each pixel's 2x2 block: (M, 4*Cout) -> (N, 2H, 2W, Cout)
    y = out.reshape(N, H, W, 2, 2, Cout).transpose(0, 1, 3, 2, 4, 5)
    return y.reshape(N, 2 * H, 2 * W, Cout)


# ----------------------------------------------------------------------------
# Fused ConvT(2,2) -> GELU -> ConvT(2,2)  (scale = 4.0 path)
# ----------------------------------------------------------------------------
def _convt_chain_kernel(x_ref, w1_ref, b1_ref, w2_ref, b2_ref, o_ref):
    h = (jnp.dot(x_ref[...], w1_ref[...], preferred_element_type=jnp.float32)
         + b1_ref[...])
    h = _gelu(h)
    o_ref[...] = (jnp.dot(h, w2_ref[...], preferred_element_type=jnp.float32)
                  + b2_ref[...])


def conv_transpose_2x2_chain(x, w1, b1, w2, b2, *, block_m=512):
    """x: (N,H,W,Cin) -> (N,4H,4W,C2) via ConvT -> GELU -> ConvT in one kernel."""
    N, H, W, Cin = x.shape
    C1, C2 = w1.shape[-1], w2.shape[-1]
    M = N * H * W
    bm = min(block_m, M)

    x2 = x.reshape(M, Cin)
    w1m = w1.reshape(Cin, 4 * C1)                     # columns (a, b, c1)
    b1m = jnp.tile(b1, 4)[None, :]
    # Every (a,b) sub-pixel of the intermediate goes through the same
    # (C1, 4*C2) matrix; a block-diagonal weight turns the second ConvT into a
    # single dense dot with K=4*C1 and a 16*C2-wide (lane-dense) output, with
    # no in-kernel reshape between the two matmuls.
    w2bd = jnp.kron(jnp.eye(4, dtype=w2.dtype), w2.reshape(C1, 4 * C2))
    b2m = jnp.tile(b2, 16)[None, :]

    out = pl.pallas_call(
        _convt_chain_kernel,
        out_shape=jax.ShapeDtypeStruct((M, 16 * C2), jnp.float32),
        grid=(pl.cdiv(M, bm),),
        in_specs=[
            pl.BlockSpec((bm, Cin), lambda i: (i, 0)),
            pl.BlockSpec((Cin, 4 * C1), lambda i: (0, 0)),
            pl.BlockSpec((1, 4 * C1), lambda i: (0, 0)),
            pl.BlockSpec((4 * C1, 16 * C2), lambda i: (0, 0)),
            pl.BlockSpec((1, 16 * C2), lambda i: (0, 0)),
        ],
        out_specs=pl.BlockSpec((bm, 16 * C2), lambda i: (i, 0)),
        compiler_params=pltpu.CompilerParams(dimension_semantics=("parallel",)),
    )(x2, w1m, b1m, w2bd, b2m)

    # columns ordered (a, b, c, d, C2); output pixel = (4h + 2a + c, 4w + 2b + d)
    y = out.reshape(N, H, W, 2, 2, 2, 2, C2).transpose(0, 1, 3, 5, 2, 4, 6, 7)
    return y.reshape(N, 4 * H, 4 * W, C2)


# ----------------------------------------------------------------------------
# Fused [optional MaxPool2x2] -> GELU -> Conv2d(3x3, stride=1, pad=1)
# ----------------------------------------------------------------------------
def _gelu_conv3x3_kernel(xp_ref, w_ref, b_ref, o_ref, *, pool, Hc, Wc, Cin, Cout):
    xp = xp_ref[0]                                    # (Hp, Wp, Cin), zero ring included
    if pool:
        Hp, Wp, _ = xp.shape
        t = xp.reshape(Hp, Wp // 2, 2, Cin)
        xp = jnp.maximum(t[:, :, 0, :], t[:, :, 1, :])          # pool along W
        t = xp.reshape(Hp // 2, 2, Wp // 2, Cin)
        xp = jnp.maximum(t[:, 0, :, :], t[:, 1, :, :])          # pool along H
        # xp is now (Hc+2, Wc+2, Cin): pooled tile with an exact zero pad ring
    xp = _gelu(xp)                    # applied ONCE; GELU(0)=0 keeps the pad valid
    # im2col: a single (Hc*Wc, 9*Cin) @ (9*Cin, Cout) matmul (order dy, dx, cin)
    rows = []
    for dy in range(3):
        slab = xp[dy:dy + Hc, :, :]                   # (Hc, Wc+2, Cin)
        rows.append(jnp.concatenate(
            [slab[:, dx:dx + Wc, :] for dx in range(3)], axis=-1))
    patches = jnp.concatenate(rows, axis=-1).reshape(Hc * Wc, 9 * Cin)
    acc = (jnp.dot(patches, w_ref[...], preferred_element_type=jnp.float32)
           + b_ref[...])
    o_ref[0] = acc.reshape(Hc, Wc, Cout)


def gelu_conv3x3(x, w, b, *, pool=False):
    """x: (N,H,W,Cin), w: (3,3,Cin,Cout), b: (Cout,).
    pool=False: GELU -> conv3x3 (pad=1)            -> (N,H,W,Cout)
    pool=True : maxpool2x2 -> GELU -> conv3x3      -> (N,H/2,W/2,Cout)"""
    N, H, W, Cin = x.shape
    Cout = w.shape[-1]
    if pool:
        Hc, Wc = H // 2, W // 2
        # pad by the pool window (2): pooling the padded tile yields exactly the
        # conv's 1-pixel zero ring around the pooled feature map.
        xp = jnp.pad(x, ((0, 0), (2, 2), (2, 2), (0, 0)))
    else:
        Hc, Wc = H, W
        xp = jnp.pad(x, ((0, 0), (1, 1), (1, 1), (0, 0)))
    Hp, Wp = xp.shape[1], xp.shape[2]
    wm = w.reshape(9 * Cin, Cout)                      # rows ordered (dy, dx, cin)

    return pl.pallas_call(
        functools.partial(_gelu_conv3x3_kernel, pool=pool,
                          Hc=Hc, Wc=Wc, Cin=Cin, Cout=Cout),
        out_shape=jax.ShapeDtypeStruct((N, Hc, Wc, Cout), jnp.float32),
        grid=(N,),
        in_specs=[
            pl.BlockSpec((1, Hp, Wp, Cin), lambda n: (n, 0, 0, 0)),
            pl.BlockSpec((9 * Cin, Cout), lambda n: (0, 0)),
            pl.BlockSpec((1, Cout), lambda n: (0, 0)),
        ],
        out_specs=pl.BlockSpec((1, Hc, Wc, Cout), lambda n: (n, 0, 0, 0)),
        compiler_params=pltpu.CompilerParams(dimension_semantics=("parallel",)),
    )(xp, wm, b[None, :])


# ----------------------------------------------------------------------------
# Pure-JAX reference (same math; used only for the numerical sanity check)
# ----------------------------------------------------------------------------
def _ref_convt(x, w4, b):
    y = jnp.einsum('nhwc,cabo->nhawbo', x, w4)
    N, H, _, W, _, Co = y.shape
    return y.reshape(N, 2 * H, 2 * W, Co) + b


def _ref_conv3(x, w, b):
    N, H, W, Ci = x.shape
    xp = jnp.pad(x, ((0, 0), (1, 1), (1, 1), (0, 0)))
    acc = jnp.zeros((N, H, W, w.shape[-1]), jnp.float32)
    for dy in range(3):
        for dx in range(3):
            acc = acc + jnp.einsum('nhwc,co->nhwo',
                                   xp[:, dy:dy + H, dx:dx + W, :], w[dy, dx])
    return acc + b


def _ref_maxpool(x):
    N, H, W, C = x.shape
    return x.reshape(N, H // 2, 2, W // 2, 2, C).max(axis=(2, 4))


# ----------------------------------------------------------------------------
# The pyramid module
# ----------------------------------------------------------------------------
class ViTFeaturePyramidPallas:
    """Pallas/TPU port of ViTFeaturePyramid. Takes/returns NCHW like PyTorch."""

    def __init__(self, in_channels, scale_factors, key):
        self.scale_factors = list(scale_factors)
        dim = in_channels
        out_dim = dim                     # carried across stages, as in PyTorch
        self.params = []
        for scale in self.scale_factors:
            key, k1, k2, k3, k4, k5, k6 = jax.random.split(key, 7)
            p = {}
            if scale == 4.0:
                p['ct1_w'] = 0.02 * jax.random.normal(k1, (dim, 2, 2, dim // 2), jnp.float32)
                p['ct1_b'] = 0.02 * jax.random.normal(k2, (dim // 2,), jnp.float32)
                p['ct2_w'] = 0.02 * jax.random.normal(k3, (dim // 2, 2, 2, dim // 4), jnp.float32)
                p['ct2_b'] = 0.02 * jax.random.normal(k4, (dim // 4,), jnp.float32)
                out_dim = dim // 4
            elif scale == 2.0:
                p['ct1_w'] = 0.02 * jax.random.normal(k1, (dim, 2, 2, dim // 2), jnp.float32)
                p['ct1_b'] = 0.02 * jax.random.normal(k2, (dim // 2,), jnp.float32)
                out_dim = dim // 2
            elif scale in (1.0, 0.5):
                pass
            else:
                raise NotImplementedError(f'scale_factor={scale} is not supported yet.')
            if scale != 1.0:
                # nn.Conv2d(out_dim, out_dim, 3, 1, 1), out_dim carried over as in PyTorch
                p['conv_w'] = 0.02 * jax.random.normal(k5, (3, 3, out_dim, out_dim), jnp.float32)
                p['conv_b'] = 0.02 * jax.random.normal(k6, (out_dim,), jnp.float32)
            self.params.append(p)

    @staticmethod
    def _stage_pallas(x, scale, p):
        if scale == 4.0:
            y = conv_transpose_2x2_chain(x, p['ct1_w'], p['ct1_b'],
                                         p['ct2_w'], p['ct2_b'])
            return gelu_conv3x3(y, p['conv_w'], p['conv_b'])
        if scale == 2.0:
            y = conv_transpose_2x2(x, p['ct1_w'], p['ct1_b'])
            return gelu_conv3x3(y, p['conv_w'], p['conv_b'])
        if scale == 1.0:
            return x
        if scale == 0.5:
            return gelu_conv3x3(x, p['conv_w'], p['conv_b'], pool=True)
        raise NotImplementedError(scale)

    @staticmethod
    def _stage_ref(x, scale, p):
        if scale == 4.0:
            y = _ref_convt(x, p['ct1_w'], p['ct1_b'])
            y = _ref_convt(_gelu(y), p['ct2_w'], p['ct2_b'])
            return _ref_conv3(_gelu(y), p['conv_w'], p['conv_b'])
        if scale == 2.0:
            y = _ref_convt(x, p['ct1_w'], p['ct1_b'])
            return _ref_conv3(_gelu(y), p['conv_w'], p['conv_b'])
        if scale == 1.0:
            return x
        if scale == 0.5:
            y = _ref_maxpool(x)
            return _ref_conv3(_gelu(y), p['conv_w'], p['conv_b'])
        raise NotImplementedError(scale)

    def __call__(self, x_nchw):
        x = jnp.transpose(x_nchw, (0, 2, 3, 1))            # NCHW -> NHWC
        outs = [self._stage_pallas(x, s, p)
                for s, p in zip(self.scale_factors, self.params)]
        return [jnp.transpose(o, (0, 3, 1, 2)) for o in outs]   # NHWC -> NCHW

    def reference(self, x_nchw):
        x = jnp.transpose(x_nchw, (0, 2, 3, 1))
        outs = [self._stage_ref(x, s, p)
                for s, p in zip(self.scale_factors, self.params)]
        return [jnp.transpose(o, (0, 3, 1, 2)) for o in outs]


# ----------------------------------------------------------------------------
if __name__ == "__main__":
    key = jax.random.PRNGKey(0)
    in_channels = 32
    # Order chosen so the channel count carried into the post-MaxPool conv is
    # consistent (the PyTorch module would shape-error otherwise).
    scale_factors = (0.5, 1.0, 2.0, 4.0)

    model = ViTFeaturePyramidPallas(in_channels, scale_factors, key)

    x = jax.random.normal(jax.random.PRNGKey(1), (2, in_channels, 16, 16), jnp.float32)

    outs = model(x)
    outs = jax.block_until_ready(outs)

    expected_shapes = [(2, 32, 8, 8), (2, 32, 16, 16), (2, 16, 32, 32), (2, 8, 64, 64)]
    refs = model.reference(x)
    for o, r, es in zip(outs, refs, expected_shapes):
        assert o.shape == es, (o.shape, es)
        assert bool(jnp.all(jnp.isfinite(o)))
        assert bool(jnp.allclose(o, r, atol=2e-2, rtol=2e-2)), \
            float(jnp.max(jnp.abs(o - r)))

    print("KERNEL_OK")
</pallas_src>

<mosaic_0001>
module attributes {stable_mosaic.version = 11 : i64} {
  func.func @_gelu_conv3x3_kernel(%arg0: i32, %arg1: memref<1x20x20x32xf32, #tpu.memory_space<vmem>>, %arg2: memref<288x32xf32, #tpu.memory_space<vmem>>, %arg3: memref<1x32xf32, #tpu.memory_space<vmem>>, %arg4: memref<1x8x8x32xf32, #tpu.memory_space<vmem>>) attributes {dimension_semantics = [#tpu.dimension_semantics<parallel>], iteration_bounds = array<i64: 2>, scalar_prefetch = 0 : i64, scratch_operands = 0 : i64, tpu.core_type = #tpu.core_type<tc>, window_params = [{transform_indices = @transform_0, window_bounds = array<i64: 1, 20, 20, 32>}, {pipeline_mode = #tpu.pipeline_mode<synchronous>, transform_indices = @transform_1, window_bounds = array<i64: 288, 32>}, {pipeline_mode = #tpu.pipeline_mode<synchronous>, transform_indices = @transform_2, window_bounds = array<i64: 1, 32>}, {transform_indices = @transform_3, window_bounds = array<i64: 1, 8, 8, 32>}]} {
    %c0 = arith.constant 0 : index
    %c0_0 = arith.constant 0 : index
    %c0_1 = arith.constant 0 : index
    %c0_2 = arith.constant 0 : index
    %0 = vector.load %arg1[%c0, %c0_0, %c0_1, %c0_2] : memref<1x20x20x32xf32, #tpu.memory_space<vmem>>, vector<1x20x20x32xf32>
    %1 = vector.shape_cast %0 : vector<1x20x20x32xf32> to vector<20x20x32xf32>
    %2 = vector.shape_cast %1 : vector<20x20x32xf32> to vector<20x10x2x32xf32>
    %3 = vector.extract_strided_slice %2 {offsets = [0, 0, 0, 0], sizes = [20, 10, 1, 32], strides = [1, 1, 1, 1]} : vector<20x10x2x32xf32> to vector<20x10x1x32xf32>
    %4 = vector.shape_cast %3 : vector<20x10x1x32xf32> to vector<20x10x32xf32>
    %5 = vector.extract_strided_slice %2 {offsets = [0, 0, 1, 0], sizes = [20, 10, 1, 32], strides = [1, 1, 1, 1]} : vector<20x10x2x32xf32> to vector<20x10x1x32xf32>
    %6 = vector.shape_cast %5 : vector<20x10x1x32xf32> to vector<20x10x32xf32>
    %7 = arith.maximumf %4, %6 : vector<20x10x32xf32>
    %8 = vector.shape_cast %7 : vector<20x10x32xf32> to vector<10x2x10x32xf32>
    %9 = vector.extract_strided_slice %8 {offsets = [0, 0, 0, 0], sizes = [10, 1, 10, 32], strides = [1, 1, 1, 1]} : vector<10x2x10x32xf32> to vector<10x1x10x32xf32>
    %10 = vector.shape_cast %9 : vector<10x1x10x32xf32> to vector<10x10x32xf32>
    %11 = vector.extract_strided_slice %8 {offsets = [0, 1, 0, 0], sizes = [10, 1, 10, 32], strides = [1, 1, 1, 1]} : vector<10x2x10x32xf32> to vector<10x1x10x32xf32>
    %12 = vector.shape_cast %11 : vector<10x1x10x32xf32> to vector<10x10x32xf32>
    %13 = arith.maximumf %10, %12 : vector<10x10x32xf32>
    %cst = arith.constant 0.707106769 : f32
    %14 = vector.broadcast %cst : f32 to vector<10x10x32xf32>
    %15 = arith.mulf %13, %14 : vector<10x10x32xf32>
    %cst_3 = arith.constant 0.000000e+00 : f32
    %16 = vector.broadcast %cst_3 : f32 to vector<10x10x32xf32>
    %17 = arith.cmpf olt, %15, %16 : vector<10x10x32xf32>
    %cst_4 = arith.constant -1.000000e+00 : f32
    %cst_5 = arith.constant 1.000000e+00 : f32
    %18 = vector.broadcast %cst_4 : f32 to vector<10x10x32xf32>
    %19 = vector.broadcast %cst_5 : f32 to vector<10x10x32xf32>
    %20 = arith.select %17, %18, %19 : vector<10x10x32xi1>, vector<10x10x32xf32>
    %21 = math.absf %15 : vector<10x10x32xf32>
    %cst_6 = arith.constant 0.327591091 : f32
    %22 = vector.broadcast %cst_6 : f32 to vector<10x10x32xf32>
    %23 = arith.mulf %22, %21 : vector<10x10x32xf32>
    %cst_7 = arith.constant 1.000000e+00 : f32
    %24 = vector.broadcast %cst_7 : f32 to vector<10x10x32xf32>
    %25 = arith.addf %24, %23 : vector<10x10x32xf32>
    %cst_8 = arith.constant 1.000000e+00 : f32
    %26 = vector.broadcast %cst_8 : f32 to vector<10x10x32xf32>
    %27 = arith.divf %26, %25 : vector<10x10x32xf32>
    %cst_9 = arith.constant 1.06140542 : f32
    %28 = vector.broadcast %cst_9 : f32 to vector<10x10x32xf32>
    %29 = arith.mulf %27, %28 : vector<10x10x32xf32>
    %cst_10 = arith.constant -1.45315206 : f32
    %30 = vector.broadcast %cst_10 : f32 to vector<10x10x32xf32>
    %31 = arith.addf %30, %29 : vector<10x10x32xf32>
    %32 = arith.mulf %27, %31 : vector<10x10x32xf32>
    %cst_11 = arith.constant 1.42141378 : f32
    %33 = vector.broadcast %cst_11 : f32 to vector<10x10x32xf32>
    %34 = arith.addf %33, %32 : vector<10x10x32xf32>
    %35 = arith.mulf %27, %34 : vector<10x10x32xf32>
    %cst_12 = arith.constant -0.284496725 : f32
    %36 = vector.broadcast %cst_12 : f32 to vector<10x10x32xf32>
    %37 = arith.addf %36, %35 : vector<10x10x32xf32>
    %38 = arith.mulf %27, %37 : vector<10x10x32xf32>
    %cst_13 = arith.constant 0.254829586 : f32
    %39 = vector.broadcast %cst_13 : f32 to vector<10x10x32xf32>
    %40 = arith.addf %39, %38 : vector<10x10x32xf32>
    %41 = arith.mulf %27, %40 : vector<10x10x32xf32>
    %cst_14 = arith.constant 0.000000e+00 : f32
    %42 = vector.broadcast %cst_14 : f32 to vector<10x10x32xf32>
    %43 = arith.subf %42, %21 : vector<10x10x32xf32>
    %44 = arith.mulf %43, %21 : vector<10x10x32xf32>
    %45 = math.exp %44 : vector<10x10x32xf32>
    %46 = arith.mulf %41, %45 : vector<10x10x32xf32>
    %cst_15 = arith.constant 1.000000e+00 : f32
    %47 = vector.broadcast %cst_15 : f32 to vector<10x10x32xf32>
    %48 = arith.subf %47, %46 : vector<10x10x32xf32>
    %49 = arith.mulf %20, %48 : vector<10x10x32xf32>
    %cst_16 = arith.constant 5.000000e-01 : f32
    %50 = vector.broadcast %cst_16 : f32 to vector<10x10x32xf32>
    %51 = arith.mulf %50, %13 : vector<10x10x32xf32>
    %cst_17 = arith.constant 1.000000e+00 : f32
    %52 = vector.broadcast %cst_17 : f32 to vector<10x10x32xf32>
    %53 = arith.addf %52, %49 : vector<10x10x32xf32>
    %54 = arith.mulf %51, %53 : vector<10x10x32xf32>
    %55 = vector.extract_strided_slice %54 {offsets = [0, 0, 0], sizes = [8, 10, 32], strides = [1, 1, 1]} : vector<10x10x32xf32> to vector<8x10x32xf32>
    %56 = vector.extract_strided_slice %55 {offsets = [0, 0, 0], sizes = [8, 8, 32], strides = [1, 1, 1]} : vector<8x10x32xf32> to vector<8x8x32xf32>
    %57 = vector.extract_strided_slice %55 {offsets = [0, 1, 0], sizes = [8, 8, 32], strides = [1, 1, 1]} : vector<8x10x32xf32> to vector<8x8x32xf32>
    %58 = vector.extract_strided_slice %55 {offsets = [0, 2, 0], sizes = [8, 8, 32], strides = [1, 1, 1]} : vector<8x10x32xf32> to vector<8x8x32xf32>
    %59 = tpu.concatenate %56, %57, %58 in 2 : vector<8x8x32xf32>, vector<8x8x32xf32>, vector<8x8x32xf32> -> vector<8x8x96xf32>
    %60 = vector.extract_strided_slice %54 {offsets = [1, 0, 0], sizes = [8, 10, 32], strides = [1, 1, 1]} : vector<10x10x32xf32> to vector<8x10x32xf32>
    %61 = vector.extract_strided_slice %60 {offsets = [0, 0, 0], sizes = [8, 8, 32], strides = [1, 1, 1]} : vector<8x10x32xf32> to vector<8x8x32xf32>
    %62 = vector.extract_strided_slice %60 {offsets = [0, 1, 0], sizes = [8, 8, 32], strides = [1, 1, 1]} : vector<8x10x32xf32> to vector<8x8x32xf32>
    %63 = vector.extract_strided_slice %60 {offsets = [0, 2, 0], sizes = [8, 8, 32], strides = [1, 1, 1]} : vector<8x10x32xf32> to vector<8x8x32xf32>
    %64 = tpu.concatenate %61, %62, %63 in 2 : vector<8x8x32xf32>, vector<8x8x32xf32>, vector<8x8x32xf32> -> vector<8x8x96xf32>
    %65 = vector.extract_strided_slice %54 {offsets = [2, 0, 0], sizes = [8, 10, 32], strides = [1, 1, 1]} : vector<10x10x32xf32> to vector<8x10x32xf32>
    %66 = vector.extract_strided_slice %65 {offsets = [0, 0, 0], sizes = [8, 8, 32], strides = [1, 1, 1]} : vector<8x10x32xf32> to vector<8x8x32xf32>
    %67 = vector.extract_strided_slice %65 {offsets = [0, 1, 0], sizes = [8, 8, 32], strides = [1, 1, 1]} : vector<8x10x32xf32> to vector<8x8x32xf32>
    %68 = vector.extract_strided_slice %65 {offsets = [0, 2, 0], sizes = [8, 8, 32], strides = [1, 1, 1]} : vector<8x10x32xf32> to vector<8x8x32xf32>
    %69 = tpu.concatenate %66, %67, %68 in 2 : vector<8x8x32xf32>, vector<8x8x32xf32>, vector<8x8x32xf32> -> vector<8x8x96xf32>
    %70 = tpu.concatenate %59, %64, %69 in 2 : vector<8x8x96xf32>, vector<8x8x96xf32>, vector<8x8x96xf32> -> vector<8x8x288xf32>
    %71 = vector.shape_cast %70 : vector<8x8x288xf32> to vector<64x288xf32>
    %c0_18 = arith.constant 0 : index
    %c0_19 = arith.constant 0 : index
    %72 = vector.load %arg2[%c0_18, %c0_19] : memref<288x32xf32, #tpu.memory_space<vmem>>, vector<288x32xf32>
    %cst_20 = arith.constant dense<0.000000e+00> : vector<64x32xf32>
    %73 = tpu.matmul %71, %72, %cst_20 {dimension_numbers = #tpu.dot_dimension_numbers<[1], [0], [0], [1], [0, 0, 1, 1], [], []>} : vector<64x288xf32>, vector<288x32xf32>, vector<64x32xf32> -> vector<64x32xf32>
    %c0_21 = arith.constant 0 : index
    %c0_22 = arith.constant 0 : index
    %74 = vector.load %arg3[%c0_21, %c0_22] : memref<1x32xf32, #tpu.memory_space<vmem>>, vector<1x32xf32>
    %75 = vector.broadcast %74 : vector<1x32xf32> to vector<64x32xf32>
    %76 = arith.addf %73, %75 : vector<64x32xf32>
    %77 = vector.shape_cast %76 : vector<64x32xf32> to vector<8x8x32xf32>
    %c0_23 = arith.constant 0 : index
    %c0_24 = arith.constant 0 : index
    %c0_25 = arith.constant 0 : index
    %c0_26 = arith.constant 0 : index
    %78 = vector.load %arg4[%c0_23, %c0_24, %c0_25, %c0_26] : memref<1x8x8x32xf32, #tpu.memory_space<vmem>>, vector<1x8x8x32xf32>
    %79 = vector.shape_cast %78 : vector<1x8x8x32xf32> to vector<8x8x32xf32>
    %80 = vector.shape_cast %77 : vector<8x8x32xf32> to vector<1x8x8x32xf32>
    tpu.vector_store %arg4[%c0_23, %c0_24, %c0_25, %c0_26], %80 {strides = array<i32>} : memref<1x8x8x32xf32, #tpu.memory_space<vmem>>, vector<1x8x8x32xf32>,
    return
  }
  func.func @transform_0(%arg0: i32) -> (i32, i32, i32, i32) {
    %c0_i32 = arith.constant 0 : i32
    %c0_i32_0 = arith.constant 0 : i32
    %c0_i32_1 = arith.constant 0 : i32
    %c0_i32_2 = arith.constant 0 : i32
    return %arg0, %c0_i32, %c0_i32_0, %c0_i32_1 : i32, i32, i32, i32
  }
  func.func @transform_1(%arg0: i32) -> (i32, i32) {
    %c0_i32 = arith.constant 0 : i32
    %c0_i32_0 = arith.constant 0 : i32
    %c0_i32_1 = arith.constant 0 : i32
    return %c0_i32, %c0_i32_0 : i32, i32
  }
  func.func @transform_2(%arg0: i32) -> (i32, i32) {
    %c0_i32 = arith.constant 0 : i32
    %c0_i32_0 = arith.constant 0 : i32
    %c0_i32_1 = arith.constant 0 : i32
    return %c0_i32, %c0_i32_0 : i32, i32
  }
  func.func @transform_3(%arg0: i32) -> (i32, i32, i32, i32) {
    %c0_i32 = arith.constant 0 : i32
    %c0_i32_0 = arith.constant 0 : i32
    %c0_i32_1 = arith.constant 0 : i32
    %c0_i32_2 = arith.constant 0 : i32
    return %arg0, %c0_i32, %c0_i32_0, %c0_i32_1 : i32, i32, i32, i32
  }
}

</mosaic_0001>

<llo_original>
// kernel: tpu_custom_call.1
$region0: #{tpu_custom_call.1}
  #allocation0 [shape = 'u32[]', space=smem, size = 0x4, offset = 0x4, fixed_abs, tag = 'smem constant byte address 0x4 - core index']
  #allocation1 [shape = 'u32[72,128]{1,0:T(1,128)}', space=vmem, size = 0x9000, scoped, tag = 'internal scratch']
  %s0 = inlined_call_operand.vmem [shape: f32[2,20,20,32], index: 0, kind: input, shape index: {}]
  %s1 = inlined_call_operand.vmem [shape: f32[288,32], index: 1, kind: input, shape index: {}]
  %s2 = inlined_call_operand.vmem [shape: f32[1,32], index: 2, kind: input, shape index: {}]
  %s3 = inlined_call_operand.hbm [shape: f32[2,8,8,32], index: 3, kind: output, shape index: {}]
  %s4 = sld [smem:[#allocation0]]
  $region45: #{tpu_custom_call.1} parent=0
    _
  %s6 = ssub.s32 1, %s4
  %s7 = scalar_select 0, %s6, %s4
  $region1: #{tpu_custom_call.1} parent=0
    #allocation2 [shape = 'u8[65536]{0}', space=vmem, size = 0x10000, scoped, tag = 'output window, operand 0']
    #allocation3 [shape = 's32[2]{0}', space=sflag, size = 0x8, scoped, tag = 'scoped memory for tpu_custom_call.1']
    %8 = vsyncpa [#allocation3], 0
    %s9 = scalar_lea.sflag [#allocation3], 1
    %10 = vsyncpa %s9, 0
    loop: start=0, step=1, limit=4
    $region2: #{tpu_custom_call.1} parent=1 // loop_pre_header
      _
    $region3: #{tpu_custom_call.1} parent=1 // loop_header
      %s12 = sphi 0, %s16
      %p13 = scmp.ge.s32.totalorder %s12, 4
      %s22 = sphi 0, %s24
      %s25 = sphi 0, %s22
      %s26 = sphi 0, %s25
      %s42 = sphi 0, %s26
      %s46 = sphi 0, %s46
      %s48 = sphi 0, %s46
      %s49 = sphi 0, %s48
      %s63 = sphi 0, %s49
      %s67 = sphi 0, %s67
      %s69 = sphi 0, %s67
      %s70 = sphi 0, %s69
      %s84 = sphi 0, %s70
      %s90 = sphi 0, %s92
      %s93 = sphi 0, %s90
      %s94 = sphi 0, %s93
      %s110 = sphi 0, %s94
    $region4: #{tpu_custom_call.1} parent=1 // loop_header_branch
      %15 = sbr.rel (%p13) target = $region8
    $region5: #{tpu_custom_call.1} parent=1 // loop_body
      %s17 = ssub.s32 %s12, 1
      %s18 = ssub.s32 %s12, 2
      %s19 = sadd.s32 %s12, 1
      %s20 = ssub.s32 %s12, %s19
      %p21 = scmp.eq.s32.totalorder %s20, 0
      %s23 = sadd.s32 %s22, 1
      %s24 = scalar_select %p21, %s22, %s23
      %p27 = pneg %p21
      %p28 = scmp.eq.s32.totalorder %s12, 1
      %p29 = por %p27, %p28
      %p30 = scmp.ne.s32.totalorder %s22, %s25
      %p31 = scmp.eq.s32.totalorder %s12, 0
      %p32 = por %p30, %p31
      %p33 = scmp.ne.s32.totalorder %s22, %s25
      %p34 = scmp.eq.s32.totalorder %s17, 1
      %p35 = por %p33, %p34
      %p36 = scmp.ne.s32.totalorder %s25, %s26
      %p37 = scmp.eq.s32.totalorder %s17, 0
      %p38 = por %p36, %p37
      %p39 = scmp.ne.s32.totalorder %s25, %s26
      %p40 = scmp.eq.s32.totalorder %s18, 1
      %p41 = por %p39, %p40
      %p43 = scmp.ne.s32.totalorder %s26, %s42
      %p44 = scmp.eq.s32.totalorder %s18, 0
      %p45 = por %p43, %p44
      %s47 = sadd.s32 %s46, 1
      %p50 = scmp.eq.s32.totalorder %s12, 1
      %p51 = scmp.ne.s32.totalorder %s46, %s48
      %p52 = scmp.eq.s32.totalorder %s12, 0
      %p53 = por %p51, %p52
      %p54 = scmp.ne.s32.totalorder %s46, %s48
      %p55 = scmp.eq.s32.totalorder %s17, 1
      %p56 = por %p54, %p55
      %p57 = scmp.ne.s32.totalorder %s48, %s49
      %p58 = scmp.eq.s32.totalorder %s17, 0
      %p59 = por %p57, %p58
      %p60 = scmp.ne.s32.totalorder %s48, %s49
      %p61 = scmp.eq.s32.totalorder %s18, 1
      %p62 = por %p60, %p61
      %p64 = scmp.ne.s32.totalorder %s49, %s63
      %p65 = scmp.eq.s32.totalorder %s18, 0
      %p66 = por %p64, %p65
      %s68 = sadd.s32 %s67, 1
      %p71 = scmp.eq.s32.totalorder %s12, 1
      %p72 = scmp.ne.s32.totalorder %s67, %s69
      %p73 = scmp.eq.s32.totalorder %s12, 0
      %p74 = por %p72, %p73
      %p75 = scmp.ne.s32.totalorder %s67, %s69
      %p76 = scmp.eq.s32.totalorder %s17, 1
      %p77 = por %p75, %p76
      %p78 = scmp.ne.s32.totalorder %s69, %s70
      %p79 = scmp.eq.s32.totalorder %s17, 0
      %p80 = por %p78, %p79
      %p81 = scmp.ne.s32.totalorder %s69, %s70
      %p82 = scmp.eq.s32.totalorder %s18, 1
      %p83 = por %p81, %p82
      %p85 = scmp.ne.s32.totalorder %s70, %s84
      %p86 = scmp.eq.s32.totalorder %s18, 0
      %p87 = por %p85, %p86
      %s88 = ssub.s32 %s12, %s19
      %p89 = scmp.eq.s32.totalorder %s88, 0
      %s91 = sadd.s32 %s90, 1
      %s92 = scalar_select %p89, %s90, %s91
      %p95 = pneg %p89
      %p96 = scmp.eq.s32.totalorder %s12, 1
      %p97 = por %p95, %p96
      %p98 = scmp.ne.s32.totalorder %s90, %s93
      %p99 = scmp.eq.s32.totalorder %s12, 0
      %p100 = por %p98, %p99
      %p101 = scmp.ne.s32.totalorder %s90, %s93
      %p102 = scmp.eq.s32.totalorder %s17, 1
      %p103 = por %p101, %p102
      %p104 = scmp.ne.s32.totalorder %s93, %s94
      %p105 = scmp.eq.s32.totalorder %s17, 0
      %p106 = por %p104, %p105
      %p107 = scmp.ne.s32.totalorder %s93, %s94
      %p108 = scmp.eq.s32.totalorder %s18, 1
      %p109 = por %p107, %p108
      %p111 = scmp.ne.s32.totalorder %s94, %s110
      %p112 = scmp.eq.s32.totalorder %s18, 0
      %p113 = por %p111, %p112
      %p114 = scmp.le.s32.totalorder 1, %s12
      %p115 = scmp.lt.s32.totalorder %s12, 3
      %p116 = pnand %p114, %p115
      %p117 = pneg %p116
      // Predicated region
      $region9: #{tpu_custom_call.1} parent=5 // pred_check
        _
      $region10: #{tpu_custom_call.1} parent=5 // pred_check_branch
        %119 = sbr.rel (%p116) target = $region12
      $region11: #{tpu_custom_call.1} parent=5 // pred_region
        %s120 = ssub.s32 %s12, 1
        // Predicated region
        $region13: #{tpu_custom_call.1} parent=11 // pred_check
          %p121 = pneg %p59
        $region14: #{tpu_custom_call.1} parent=11 // pred_check_branch
          %123 = sbr.rel (%p121) target = $region16
        $region15: #{tpu_custom_call.1} parent=11 // pred_region
          _
        $region16: #{tpu_custom_call.1} parent=11 // pred_fallthru
          _
        // Predicated region
        $region17: #{tpu_custom_call.1} parent=11 // pred_check
          %p124 = pneg %p80
        $region18: #{tpu_custom_call.1} parent=11 // pred_check_branch
          %126 = sbr.rel (%p124) target = $region20
        $region19: #{tpu_custom_call.1} parent=11 // pred_region
          _
        $region20: #{tpu_custom_call.1} parent=11 // pred_fallthru
          _
      $region12: #{tpu_custom_call.1} parent=5 // pred_fallthru
        _
      %p127 = scmp.lt.s32.totalorder %s12, 2
      // Predicated region
      $region21: #{tpu_custom_call.1} parent=5 // pred_check
        %p128 = pneg %p127
      $region22: #{tpu_custom_call.1} parent=5 // pred_check_branch
        %130 = sbr.rel (%p128) target = $region24
      $region23: #{tpu_custom_call.1} parent=5 // pred_region
        // Predicated region
        $region25: #{tpu_custom_call.1} parent=23 // pred_check
          %p131 = pneg %p32
        $region26: #{tpu_custom_call.1} parent=23 // pred_check_branch
          %133 = sbr.rel (%p131) target = $region28
        $region27: #{tpu_custom_call.1} parent=23 // pred_region
          %p134 = scmp.lt.s32.totalorder %s12, 1
          %s135 = scalar_select %p134, %s12, 1
          %s136 = smul.addr %s135, 60
          %s137 = smul.addr %s136, 8
          %s138 = scalar_lea.vmem %s0, %s137
        $region28: #{tpu_custom_call.1} parent=23 // pred_fallthru
          _
      $region24: #{tpu_custom_call.1} parent=5 // pred_fallthru
        _
      %p139 = scmp.le.s32.totalorder 1, %s12
      %p140 = scmp.lt.s32.totalorder %s12, 3
      %p141 = pnand %p139, %p140
      %p142 = pneg %p141
      // Predicated region
      $region29: #{tpu_custom_call.1} parent=5 // pred_check
        _
      $region30: #{tpu_custom_call.1} parent=5 // pred_check_branch
        %144 = sbr.rel (%p141) target = $region32
      $region31: #{tpu_custom_call.1} parent=5 // pred_region
        %s145 = ssub.s32 %s12, 1
        %p146 = scmp.lt.s32.totalorder %s17, 1
        %s147 = scalar_select %p146, %s17, 1
        %s148 = smul.addr %s147, 60
        %s149 = smul.addr %s148, 8
        %s150 = scalar_lea.vmem %s0, %s149
        %p151 = pneg %p38
        %p152 = pneg %p35
        %p153 = pneg %p59
        %p154 = pneg %p56
        %p155 = pneg %p80
        %p156 = pneg %p77
        %p157 = pneg %p106
        %p158 = pneg %p103
        %s159 = sand.u32 %s93, 1
        %s160 = scalar_lea.sflag [#allocation3], %s159
        %s161 = sand.u32 %s93, 1
        %s162 = smul.addr %s161, 64
        %s163 = scalar_lea.vmem [#allocation2], %s162
        %p164 = scmp.lt.s32.totalorder %s17, 1
        %s165 = scalar_select %p164, %s17, 1
        %s166 = smul.addr %s165, 60
        %s167 = smul.addr %s166, 8
        %s168 = scalar_lea.vmem %s0, %s167
        %v169 = vld [vmem:[%s168] sm:$0xff]
        %v170 = vld [vmem:[%s168 + $0x8] sm:$0xff]
        %v171 = vld [vmem:[%s168 + $0x10] sm:$0xf]
        %v172 = vld [vmem:[%s168 + $0x18] sm:$0xff]
        %v173 = vld [vmem:[%s168 + $0x20] sm:$0xff]
        %v174 = vld [vmem:[%s168 + $0x28] sm:$0xf]
        %v175 = vld [vmem:[%s168 + $0x30] sm:$0xff]
        %v176 = vld [vmem:[%s168 + $0x38] sm:$0xff]
        %v177 = vld [vmem:[%s168 + $0x40] sm:$0xf]
        %v178 = vld [vmem:[%s168 + $0x48] sm:$0xff]
        %v179 = vld [vmem:[%s168 + $0x50] sm:$0xff]
        %v180 = vld [vmem:[%s168 + $0x58] sm:$0xf]
        %v181 = vld [vmem:[%s168 + $0x60] sm:$0xff]
        %v182 = vld [vmem:[%s168 + $0x68] sm:$0xff]
        %v183 = vld [vmem:[%s168 + $0x70] sm:$0xf]
        %v184 = vld [vmem:[%s168 + $0x78] sm:$0xff]
        %v185 = vld [vmem:[%s168 + $0x80] sm:$0xff]
        %v186 = vld [vmem:[%s168 + $0x88] sm:$0xf]
        %v187 = vld [vmem:[%s168 + $0x90] sm:$0xff]
        %v188 = vld [vmem:[%s168 + $0x98] sm:$0xff]
        %v189 = vld [vmem:[%s168 + $0xa0] sm:$0xf]
        %v190 = vld [vmem:[%s168 + $0xa8] sm:$0xff]
        %v191 = vld [vmem:[%s168 + $0xb0] sm:$0xff]
        %v192 = vld [vmem:[%s168 + $0xb8] sm:$0xf]
        %v193 = vld [vmem:[%s168 + $0xc0] sm:$0xff]
        %v194 = vld [vmem:[%s168 + $0xc8] sm:$0xff]
        %v195 = vld [vmem:[%s168 + $0xd0] sm:$0xf]
        %v196 = vld [vmem:[%s168 + $0xd8] sm:$0xff]
        %v197 = vld [vmem:[%s168 + $0xe0] sm:$0xff]
        %v198 = vld [vmem:[%s168 + $0xe8] sm:$0xf]
        %v199 = vld [vmem:[%s168 + $0xf0] sm:$0xff]
        %v200 = vld [vmem:[%s168 + $0xf8] sm:$0xff]
        %v201 = vld [vmem:[%s168 + $0x100] sm:$0xf]
        %v202 = vld [vmem:[%s168 + $0x108] sm:$0xff]
        %v203 = vld [vmem:[%s168 + $0x110] sm:$0xff]
        %v204 = vld [vmem:[%s168 + $0x118] sm:$0xf]
        %v205 = vld [vmem:[%s168 + $0x120] sm:$0xff]
        %v206 = vld [vmem:[%s168 + $0x128] sm:$0xff]
        %v207 = vld [vmem:[%s168 + $0x130] sm:$0xf]
        %v208 = vld [vmem:[%s168 + $0x138] sm:$0xff]
        %v209 = vld [vmem:[%s168 + $0x140] sm:$0xff]
        %v210 = vld [vmem:[%s168 + $0x148] sm:$0xf]
        %v211 = vld [vmem:[%s168 + $0x150] sm:$0xff]
        %v212 = vld [vmem:[%s168 + $0x158] sm:$0xff]
        %v213 = vld [vmem:[%s168 + $0x160] sm:$0xf]
        %v214 = vld [vmem:[%s168 + $0x168] sm:$0xff]
        %v215 = vld [vmem:[%s168 + $0x170] sm:$0xff]
        %v216 = vld [vmem:[%s168 + $0x178] sm:$0xf]
        %v217 = vld [vmem:[%s168 + $0x180] sm:$0xff]
        %v218 = vld [vmem:[%s168 + $0x188] sm:$0xff]
        %v219 = vld [vmem:[%s168 + $0x190] sm:$0xf]
        %v220 = vld [vmem:[%s168 + $0x198] sm:$0xff]
        %v221 = vld [vmem:[%s168 + $0x1a0] sm:$0xff]
        %v222 = vld [vmem:[%s168 + $0x1a8] sm:$0xf]
        %v223 = vld [vmem:[%s168 + $0x1b0] sm:$0xff]
        %v224 = vld [vmem:[%s168 + $0x1b8] sm:$0xff]
        %v225 = vld [vmem:[%s168 + $0x1c0] sm:$0xf]
        %v226 = vld [vmem:[%s168 + $0x1c8] sm:$0xff]
        %v227 = vld [vmem:[%s168 + $0x1d0] sm:$0xff]
        %v228 = vld [vmem:[%s168 + $0x1d8] sm:$0xf]
        %v289 = vrot.slane %v169, 2
        %v290 = vrot.slane %v169, 4
        %v291 = vrot.slane %v169, 6
        %v292 = vrot.slane %v170, 2
        %v293 = vrot.slane %v170, 4
        %v294 = vrot.slane %v170, 6
        %v295 = vrot.slane %v171, 2
        %v296 = vrot.slane %v172, 2
        %v297 = vrot.slane %v172, 4
        %v298 = vrot.slane %v172, 6
        %v299 = vrot.slane %v173, 2
        %v300 = vrot.slane %v173, 4
        %v301 = vrot.slane %v173, 6
        %v302 = vrot.slane %v174, 2
        %v303 = vrot.slane %v175, 2
        %v304 = vrot.slane %v175, 4
        %v305 = vrot.slane %v175, 6
        %v306 = vrot.slane %v176, 2
        %v307 = vrot.slane %v176, 4
        %v308 = vrot.slane %v176, 6
        %v309 = vrot.slane %v177, 2
        %v310 = vrot.slane %v178, 2
        %v311 = vrot.slane %v178, 4
        %v312 = vrot.slane %v178, 6
        %v313 = vrot.slane %v179, 2
        %v314 = vrot.slane %v179, 4
        %v315 = vrot.slane %v179, 6
        %v316 = vrot.slane %v180, 2
        %v317 = vrot.slane %v181, 2
        %v318 = vrot.slane %v181, 4
        %v319 = vrot.slane %v181, 6
        %v320 = vrot.slane %v182, 2
        %v321 = vrot.slane %v182, 4
        %v322 = vrot.slane %v182, 6
        %v323 = vrot.slane %v183, 2
        %v324 = vrot.slane %v184, 2
        %v325 = vrot.slane %v184, 4
        %v326 = vrot.slane %v184, 6
        %v327 = vrot.slane %v185, 2
        %v328 = vrot.slane %v185, 4
        %v329 = vrot.slane %v185, 6
        %v330 = vrot.slane %v186, 2
        %v331 = vrot.slane %v187, 2
        %v332 = vrot.slane %v187, 4
        %v333 = vrot.slane %v187, 6
        %v334 = vrot.slane %v188, 2
        %v335 = vrot.slane %v188, 4
        %v336 = vrot.slane %v188, 6
        %v337 = vrot.slane %v189, 2
        %v338 = vrot.slane %v190, 2
        %v339 = vrot.slane %v190, 4
        %v340 = vrot.slane %v190, 6
        %v341 = vrot.slane %v191, 2
        %v342 = vrot.slane %v191, 4
        %v343 = vrot.slane %v191, 6
        %v344 = vrot.slane %v192, 2
        %v345 = vrot.slane %v193, 2
        %v346 = vrot.slane %v193, 4
        %v347 = vrot.slane %v193, 6
        %v348 = vrot.slane %v194, 2
        %v349 = vrot.slane %v194, 4
        %v350 = vrot.slane %v194, 6
        %v351 = vrot.slane %v195, 2
        %v352 = vrot.slane %v196, 2
        %v353 = vrot.slane %v196, 4
        %v354 = vrot.slane %v196, 6
        %v355 = vrot.slane %v197, 2
        %v356 = vrot.slane %v197, 4
        %v357 = vrot.slane %v197, 6
        %v358 = vrot.slane %v198, 2
        %v359 = vrot.slane %v199, 2
        %v360 = vrot.slane %v199, 4
        %v361 = vrot.slane %v199, 6
        %v362 = vrot.slane %v200, 2
        %v363 = vrot.slane %v200, 4
        %v364 = vrot.slane %v200, 6
        %v365 = vrot.slane %v201, 2
        %v366 = vrot.slane %v202, 2
        %v367 = vrot.slane %v202, 4
        %v368 = vrot.slane %v202, 6
        %v369 = vrot.slane %v203, 2
        %v370 = vrot.slane %v203, 4
        %v371 = vrot.slane %v203, 6
        %v372 = vrot.slane %v204, 2
        %v373 = vrot.slane %v205, 2
        %v374 = vrot.slane %v205, 4
        %v375 = vrot.slane %v205, 6
        %v376 = vrot.slane %v206, 2
        %v377 = vrot.slane %v206, 4
        %v378 = vrot.slane %v206, 6
        %v379 = vrot.slane %v207, 2
        %v380 = vrot.slane %v208, 2
        %v381 = vrot.slane %v208, 4
        %v382 = vrot.slane %v208, 6
        %v383 = vrot.slane %v209, 2
        %v384 = vrot.slane %v209, 4
        %v385 = vrot.slane %v209, 6
        %v386 = vrot.slane %v210, 2
        %v387 = vrot.slane %v211, 2
        %v388 = vrot.slane %v211, 4
        %v389 = vrot.slane %v211, 6
        %v390 = vrot.slane %v212, 2
        %v391 = vrot.slane %v212, 4
        %v392 = vrot.slane %v212, 6
        %v393 = vrot.slane %v213, 2
        %v394 = vrot.slane %v214, 2
        %v395 = vrot.slane %v214, 4
        %v396 = vrot.slane %v214, 6
        %v397 = vrot.slane %v215, 2
        %v398 = vrot.slane %v215, 4
        %v399 = vrot.slane %v215, 6
        %v400 = vrot.slane %v216, 2
        %v401 = vrot.slane %v217, 2
        %v402 = vrot.slane %v217, 4
        %v403 = vrot.slane %v217, 6
        %v404 = vrot.slane %v218, 2
        %v405 = vrot.slane %v218, 4
        %v406 = vrot.slane %v218, 6
        %v407 = vrot.slane %v219, 2
        %v408 = vrot.slane %v220, 2
        %v409 = vrot.slane %v220, 4
        %v410 = vrot.slane %v220, 6
        %v411 = vrot.slane %v221, 2
        %v412 = vrot.slane %v221, 4
        %v413 = vrot.slane %v221, 6
        %v414 = vrot.slane %v222, 2
        %v415 = vrot.slane %v223, 2
        %v416 = vrot.slane %v223, 4
        %v417 = vrot.slane %v223, 6
        %v418 = vrot.slane %v224, 2
        %v419 = vrot.slane %v224, 4
        %v420 = vrot.slane %v224, 6
        %v421 = vrot.slane %v225, 2
        %v422 = vrot.slane %v226, 2
        %v423 = vrot.slane %v226, 4
        %v424 = vrot.slane %v226, 6
        %v425 = vrot.slane %v227, 2
        %v426 = vrot.slane %v227, 4
        %v427 = vrot.slane %v227, 6
        %v428 = vrot.slane %v228, 2
        %v569 = vrot.slane %v169, 7
        %v570 = vrot.slane %v569, 2
        %v571 = vrot.slane %v289, 7
        %v572 = vrot.slane %v571, 2
        %v573 = vrot.slane %v290, 7
        %v574 = vrot.slane %v573, 2
        %v575 = vrot.slane %v291, 7
        %v576 = vrot.slane %v575, 2
        %v577 = vrot.slane %v170, 7
        %v578 = vrot.slane %v577, 2
        %v579 = vrot.slane %v292, 7
        %v580 = vrot.slane %v579, 2
        %v581 = vrot.slane %v293, 7
        %v582 = vrot.slane %v581, 2
        %v583 = vrot.slane %v294, 7
        %v584 = vrot.slane %v583, 2
        %v585 = vrot.slane %v171, 7
        %v586 = vrot.slane %v585, 2
        %v587 = vrot.slane %v295, 7
        %v588 = vrot.slane %v587, 2
        %v589 = vrot.slane %v172, 7
        %v590 = vrot.slane %v589, 2
        %v591 = vrot.slane %v296, 7
        %v592 = vrot.slane %v591, 2
        %v593 = vrot.slane %v297, 7
        %v594 = vrot.slane %v593, 2
        %v595 = vrot.slane %v298, 7
        %v596 = vrot.slane %v595, 2
        %v597 = vrot.slane %v173, 7
        %v598 = vrot.slane %v597, 2
        %v599 = vrot.slane %v299, 7
        %v600 = vrot.slane %v599, 2
        %v601 = vrot.slane %v300, 7
        %v602 = vrot.slane %v601, 2
        %v603 = vrot.slane %v301, 7
        %v604 = vrot.slane %v603, 2
        %v605 = vrot.slane %v174, 7
        %v606 = vrot.slane %v605, 2
        %v607 = vrot.slane %v302, 7
        %v608 = vrot.slane %v607, 2
        %v609 = vrot.slane %v175, 7
        %v610 = vrot.slane %v609, 2
        %v611 = vrot.slane %v303, 7
        %v612 = vrot.slane %v611, 2
        %v613 = vrot.slane %v304, 7
        %v614 = vrot.slane %v613, 2
        %v615 = vrot.slane %v305, 7
        %v616 = vrot.slane %v615, 2
        %v617 = vrot.slane %v176, 7
        %v618 = vrot.slane %v617, 2
        %v619 = vrot.slane %v306, 7
        %v620 = vrot.slane %v619, 2
        %v621 = vrot.slane %v307, 7
        %v622 = vrot.slane %v621, 2
        %v623 = vrot.slane %v308, 7
        %v624 = vrot.slane %v623, 2
        %v625 = vrot.slane %v177, 7
        %v626 = vrot.slane %v625, 2
        %v627 = vrot.slane %v309, 7
        %v628 = vrot.slane %v627, 2
        %v629 = vrot.slane %v178, 7
        %v630 = vrot.slane %v629, 2
        %v631 = vrot.slane %v310, 7
        %v632 = vrot.slane %v631, 2
        %v633 = vrot.slane %v311, 7
        %v634 = vrot.slane %v633, 2
        %v635 = vrot.slane %v312, 7
        %v636 = vrot.slane %v635, 2
        %v637 = vrot.slane %v179, 7
        %v638 = vrot.slane %v637, 2
        %v639 = vrot.slane %v313, 7
        %v640 = vrot.slane %v639, 2
        %v641 = vrot.slane %v314, 7
        %v642 = vrot.slane %v641, 2
        %v643 = vrot.slane %v315, 7
        %v644 = vrot.slane %v643, 2
        %v645 = vrot.slane %v180, 7
        %v646 = vrot.slane %v645, 2
        %v647 = vrot.slane %v316, 7
        %v648 = vrot.slane %v647, 2
        %v649 = vrot.slane %v181, 7
        %v650 = vrot.slane %v649, 2
        %v651 = vrot.slane %v317, 7
        %v652 = vrot.slane %v651, 2
        %v653 = vrot.slane %v318, 7
        %v654 = vrot.slane %v653, 2
        %v655 = vrot.slane %v319, 7
        %v656 = vrot.slane %v655, 2
        %v657 = vrot.slane %v182, 7
        %v658 = vrot.slane %v657, 2
        %v659 = vrot.slane %v320, 7
        %v660 = vrot.slane %v659, 2
        %v661 = vrot.slane %v321, 7
        %v662 = vrot.slane %v661, 2
        %v663 = vrot.slane %v322, 7
        %v664 = vrot.slane %v663, 2
        %v665 = vrot.slane %v183, 7
        %v666 = vrot.slane %v665, 2
        %v667 = vrot.slane %v323, 7
        %v668 = vrot.slane %v667, 2
        %v669 = vrot.slane %v184, 7
        %v670 = vrot.slane %v669, 2
        %v671 = vrot.slane %v324, 7
        %v672 = vrot.slane %v671, 2
        %v673 = vrot.slane %v325, 7
        %v674 = vrot.slane %v673, 2
        %v675 = vrot.slane %v326, 7
        %v676 = vrot.slane %v675, 2
        %v677 = vrot.slane %v185, 7
        %v678 = vrot.slane %v677, 2
        %v679 = vrot.slane %v327, 7
        %v680 = vrot.slane %v679, 2
        %v681 = vrot.slane %v328, 7
        %v682 = vrot.slane %v681, 2
        %v683 = vrot.slane %v329, 7
        %v684 = vrot.slane %v683, 2
        %v685 = vrot.slane %v186, 7
        %v686 = vrot.slane %v685, 2
        %v687 = vrot.slane %v330, 7
        %v688 = vrot.slane %v687, 2
        %v689 = vrot.slane %v187, 7
        %v690 = vrot.slane %v689, 2
        %v691 = vrot.slane %v331, 7
        %v692 = vrot.slane %v691, 2
        %v693 = vrot.slane %v332, 7
        %v694 = vrot.slane %v693, 2
        %v695 = vrot.slane %v333, 7
        %v696 = vrot.slane %v695, 2
        %v697 = vrot.slane %v188, 7
        %v698 = vrot.slane %v697, 2
        %v699 = vrot.slane %v334, 7
        %v700 = vrot.slane %v699, 2
        %v701 = vrot.slane %v335, 7
        %v702 = vrot.slane %v701, 2
        %v703 = vrot.slane %v336, 7
        %v704 = vrot.slane %v703, 2
        %v705 = vrot.slane %v189, 7
        %v706 = vrot.slane %v705, 2
        %v707 = vrot.slane %v337, 7
        %v708 = vrot.slane %v707, 2
        %v709 = vrot.slane %v190, 7
        %v710 = vrot.slane %v709, 2
        %v711 = vrot.slane %v338, 7
        %v712 = vrot.slane %v711, 2
        %v713 = vrot.slane %v339, 7
        %v714 = vrot.slane %v713, 2
        %v715 = vrot.slane %v340, 7
        %v716 = vrot.slane %v715, 2
        %v717 = vrot.slane %v191, 7
        %v718 = vrot.slane %v717, 2
        %v719 = vrot.slane %v341, 7
        %v720 = vrot.slane %v719, 2
        %v721 = vrot.slane %v342, 7
        %v722 = vrot.slane %v721, 2
        %v723 = vrot.slane %v343, 7
        %v724 = vrot.slane %v723, 2
        %v725 = vrot.slane %v192, 7
        %v726 = vrot.slane %v725, 2
        %v727 = vrot.slane %v344, 7
        %v728 = vrot.slane %v727, 2
        %v729 = vrot.slane %v193, 7
        %v730 = vrot.slane %v729, 2
        %v731 = vrot.slane %v345, 7
        %v732 = vrot.slane %v731, 2
        %v733 = vrot.slane %v346, 7
        %v734 = vrot.slane %v733, 2
        %v735 = vrot.slane %v347, 7
        %v736 = vrot.slane %v735, 2
        %v737 = vrot.slane %v194, 7
        %v738 = vrot.slane %v737, 2
        %v739 = vrot.slane %v348, 7
        %v740 = vrot.slane %v739, 2
        %v741 = vrot.slane %v349, 7
        %v742 = vrot.slane %v741, 2
        %v743 = vrot.slane %v350, 7
        %v744 = vrot.slane %v743, 2
        %v745 = vrot.slane %v195, 7
        %v746 = vrot.slane %v745, 2
        %v747 = vrot.slane %v351, 7
        %v748 = vrot.slane %v747, 2
        %v749 = vrot.slane %v196, 7
        %v750 = vrot.slane %v749, 2
        %v751 = vrot.slane %v352, 7
        %v752 = vrot.slane %v751, 2
        %v753 = vrot.slane %v353, 7
        %v754 = vrot.slane %v753, 2
        %v755 = vrot.slane %v354, 7
        %v756 = vrot.slane %v755, 2
        %v757 = vrot.slane %v197, 7
        %v758 = vrot.slane %v757, 2
        %v759 = vrot.slane %v355, 7
        %v760 = vrot.slane %v759, 2
        %v761 = vrot.slane %v356, 7
        %v762 = vrot.slane %v761, 2
        %v763 = vrot.slane %v357, 7
        %v764 = vrot.slane %v763, 2
        %v765 = vrot.slane %v198, 7
        %v766 = vrot.slane %v765, 2
        %v767 = vrot.slane %v358, 7
        %v768 = vrot.slane %v767, 2
        %v769 = vrot.slane %v199, 7
        %v770 = vrot.slane %v769, 2
        %v771 = vrot.slane %v359, 7
        %v772 = vrot.slane %v771, 2
        %v773 = vrot.slane %v360, 7
        %v774 = vrot.slane %v773, 2
        %v775 = vrot.slane %v361, 7
        %v776 = vrot.slane %v775, 2
        %v777 = vrot.slane %v200, 7
        %v778 = vrot.slane %v777, 2
        %v779 = vrot.slane %v362, 7
        %v780 = vrot.slane %v779, 2
        %v781 = vrot.slane %v363, 7
        %v782 = vrot.slane %v781, 2
        %v783 = vrot.slane %v364, 7
        %v784 = vrot.slane %v783, 2
        %v785 = vrot.slane %v201, 7
        %v786 = vrot.slane %v785, 2
        %v787 = vrot.slane %v365, 7
        %v788 = vrot.slane %v787, 2
        %v789 = vrot.slane %v202, 7
        %v790 = vrot.slane %v789, 2
        %v791 = vrot.slane %v366, 7
        %v792 = vrot.slane %v791, 2
        %v793 = vrot.slane %v367, 7
        %v794 = vrot.slane %v793, 2
        %v795 = vrot.slane %v368, 7
        %v796 = vrot.slane %v795, 2
        %v797 = vrot.slane %v203, 7
        %v798 = vrot.slane %v797, 2
        %v799 = vrot.slane %v369, 7
        %v800 = vrot.slane %v799, 2
        %v801 = vrot.slane %v370, 7
        %v802 = vrot.slane %v801, 2
        %v803 = vrot.slane %v371, 7
        %v804 = vrot.slane %v803, 2
        %v805 = vrot.slane %v204, 7
        %v806 = vrot.slane %v805, 2
        %v807 = vrot.slane %v372, 7
        %v808 = vrot.slane %v807, 2
        %v809 = vrot.slane %v205, 7
        %v810 = vrot.slane %v809, 2
        %v811 = vrot.slane %v373, 7
        %v812 = vrot.slane %v811, 2
        %v813 = vrot.slane %v374, 7
        %v814 = vrot.slane %v813, 2
        %v815 = vrot.slane %v375, 7
        %v816 = vrot.slane %v815, 2
        %v817 = vrot.slane %v206, 7
        %v818 = vrot.slane %v817, 2
        %v819 = vrot.slane %v376, 7
        %v820 = vrot.slane %v819, 2
        %v821 = vrot.slane %v377, 7
        %v822 = vrot.slane %v821, 2
        %v823 = vrot.slane %v378, 7
        %v824 = vrot.slane %v823, 2
        %v825 = vrot.slane %v207, 7
        %v826 = vrot.slane %v825, 2
        %v827 = vrot.slane %v379, 7
        %v828 = vrot.slane %v827, 2
        %v829 = vrot.slane %v208, 7
        %v830 = vrot.slane %v829, 2
        %v831 = vrot.slane %v380, 7
        %v832 = vrot.slane %v831, 2
        %v833 = vrot.slane %v381, 7
        %v834 = vrot.slane %v833, 2
        %v835 = vrot.slane %v382, 7
        %v836 = vrot.slane %v835, 2
        %v837 = vrot.slane %v209, 7
        %v838 = vrot.slane %v837, 2
        %v839 = vrot.slane %v383, 7
        %v840 = vrot.slane %v839, 2
        %v841 = vrot.slane %v384, 7
        %v842 = vrot.slane %v841, 2
        %v843 = vrot.slane %v385, 7
        %v844 = vrot.slane %v843, 2
        %v845 = vrot.slane %v210, 7
        %v846 = vrot.slane %v845, 2
        %v847 = vrot.slane %v386, 7
        %v848 = vrot.slane %v847, 2
        %v849 = vrot.slane %v211, 7
        %v850 = vrot.slane %v849, 2
        %v851 = vrot.slane %v387, 7
        %v852 = vrot.slane %v851, 2
        %v853 = vrot.slane %v388, 7
        %v854 = vrot.slane %v853, 2
        %v855 = vrot.slane %v389, 7
        %v856 = vrot.slane %v855, 2
        %v857 = vrot.slane %v212, 7
        %v858 = vrot.slane %v857, 2
        %v859 = vrot.slane %v390, 7
        %v860 = vrot.slane %v859, 2
        %v861 = vrot.slane %v391, 7
        %v862 = vrot.slane %v861, 2
        %v863 = vrot.slane %v392, 7
        %v864 = vrot.slane %v863, 2
        %v865 = vrot.slane %v213, 7
        %v866 = vrot.slane %v865, 2
        %v867 = vrot.slane %v393, 7
        %v868 = vrot.slane %v867, 2
        %v869 = vrot.slane %v214, 7
        %v870 = vrot.slane %v869, 2
        %v871 = vrot.slane %v394, 7
        %v872 = vrot.slane %v871, 2
        %v873 = vrot.slane %v395, 7
        %v874 = vrot.slane %v873, 2
        %v875 = vrot.slane %v396, 7
        %v876 = vrot.slane %v875, 2
        %v877 = vrot.slane %v215, 7
        %v878 = vrot.slane %v877, 2
        %v879 = vrot.slane %v397, 7
        %v880 = vrot.slane %v879, 2
        %v881 = vrot.slane %v398, 7
        %v882 = vrot.slane %v881, 2
        %v883 = vrot.slane %v399, 7
        %v884 = vrot.slane %v883, 2
        %v885 = vrot.slane %v216, 7
        %v886 = vrot.slane %v885, 2
        %v887 = vrot.slane %v400, 7
        %v888 = vrot.slane %v887, 2
        %v889 = vrot.slane %v217, 7
        %v890 = vrot.slane %v889, 2
        %v891 = vrot.slane %v401, 7
        %v892 = vrot.slane %v891, 2
        %v893 = vrot.slane %v402, 7
        %v894 = vrot.slane %v893, 2
        %v895 = vrot.slane %v403, 7
        %v896 = vrot.slane %v895, 2
        %v897 = vrot.slane %v218, 7
        %v898 = vrot.slane %v897, 2
        %v899 = vrot.slane %v404, 7
        %v900 = vrot.slane %v899, 2
        %v901 = vrot.slane %v405, 7
        %v902 = vrot.slane %v901, 2
        %v903 = vrot.slane %v406, 7
        %v904 = vrot.slane %v903, 2
        %v905 = vrot.slane %v219, 7
        %v906 = vrot.slane %v905, 2
        %v907 = vrot.slane %v407, 7
        %v908 = vrot.slane %v907, 2
        %v909 = vrot.slane %v220, 7
        %v910 = vrot.slane %v909, 2
        %v911 = vrot.slane %v408, 7
        %v912 = vrot.slane %v911, 2
        %v913 = vrot.slane %v409, 7
        %v914 = vrot.slane %v913, 2
        %v915 = vrot.slane %v410, 7
        %v916 = vrot.slane %v915, 2
        %v917 = vrot.slane %v221, 7
        %v918 = vrot.slane %v917, 2
        %v919 = vrot.slane %v411, 7
        %v920 = vrot.slane %v919, 2
        %v921 = vrot.slane %v412, 7
        %v922 = vrot.slane %v921, 2
        %v923 = vrot.slane %v413, 7
        %v924 = vrot.slane %v923, 2
        %v925 = vrot.slane %v222, 7
        %v926 = vrot.slane %v925, 2
        %v927 = vrot.slane %v414, 7
        %v928 = vrot.slane %v927, 2
        %v929 = vrot.slane %v223, 7
        %v930 = vrot.slane %v929, 2
        %v931 = vrot.slane %v415, 7
        %v932 = vrot.slane %v931, 2
        %v933 = vrot.slane %v416, 7
        %v934 = vrot.slane %v933, 2
        %v935 = vrot.slane %v417, 7
        %v936 = vrot.slane %v935, 2
        %v937 = vrot.slane %v224, 7
        %v938 = vrot.slane %v937, 2
        %v939 = vrot.slane %v418, 7
        %v940 = vrot.slane %v939, 2
        %v941 = vrot.slane %v419, 7
        %v942 = vrot.slane %v941, 2
        %v943 = vrot.slane %v420, 7
        %v944 = vrot.slane %v943, 2
        %v945 = vrot.slane %v225, 7
        %v946 = vrot.slane %v945, 2
        %v947 = vrot.slane %v421, 7
        %v948 = vrot.slane %v947, 2
        %v949 = vrot.slane %v226, 7
        %v950 = vrot.slane %v949, 2
        %v951 = vrot.slane %v422, 7
        %v952 = vrot.slane %v951, 2
        %v953 = vrot.slane %v423, 7
        %v954 = vrot.slane %v953, 2
        %v955 = vrot.slane %v424, 7
        %v956 = vrot.slane %v955, 2
        %v957 = vrot.slane %v227, 7
        %v958 = vrot.slane %v957, 2
        %v959 = vrot.slane %v425, 7
        %v960 = vrot.slane %v959, 2
        %v961 = vrot.slane %v426, 7
        %v962 = vrot.slane %v961, 2
        %v963 = vrot.slane %v427, 7
        %v964 = vrot.slane %v963, 2
        %v965 = vrot.slane %v228, 7
        %v966 = vrot.slane %v965, 2
        %v967 = vrot.slane %v428, 7
        %v968 = vrot.slane %v967, 2
        %v1169 = vmax.f32 %v169, %v570
        %v1170 = vmax.f32 %v289, %v572
        %v1171 = vmax.f32 %v290, %v574
        %v1172 = vmax.f32 %v291, %v576
        %v1173 = vmax.f32 %v170, %v578
        %v1174 = vmax.f32 %v292, %v580
        %v1175 = vmax.f32 %v293, %v582
        %v1176 = vmax.f32 %v294, %v584
        %v1177 = vmax.f32 %v171, %v586
        %v1178 = vmax.f32 %v295, %v588
        %v1179 = vmax.f32 %v172, %v590
        %v1180 = vmax.f32 %v296, %v592
        %v1181 = vmax.f32 %v297, %v594
        %v1182 = vmax.f32 %v298, %v596
        %v1183 = vmax.f32 %v173, %v598
        %v1184 = vmax.f32 %v299, %v600
        %v1185 = vmax.f32 %v300, %v602
        %v1186 = vmax.f32 %v301, %v604
        %v1187 = vmax.f32 %v174, %v606
        %v1188 = vmax.f32 %v302, %v608
        %v1189 = vmax.f32 %v175, %v610
        %v1190 = vmax.f32 %v303, %v612
        %v1191 = vmax.f32 %v304, %v614
        %v1192 = vmax.f32 %v305, %v616
        %v1193 = vmax.f32 %v176, %v618
        %v1194 = vmax.f32 %v306, %v620
        %v1195 = vmax.f32 %v307, %v622
        %v1196 = vmax.f32 %v308, %v624
        %v1197 = vmax.f32 %v177, %v626
        %v1198 = vmax.f32 %v309, %v628
        %v1199 = vmax.f32 %v178, %v630
        %v1200 = vmax.f32 %v310, %v632
        %v1201 = vmax.f32 %v311, %v634
        %v1202 = vmax.f32 %v312, %v636
        %v1203 = vmax.f32 %v179, %v638
        %v1204 = vmax.f32 %v313, %v640
        %v1205 = vmax.f32 %v314, %v642
        %v1206 = vmax.f32 %v315, %v644
        %v1207 = vmax.f32 %v180, %v646
        %v1208 = vmax.f32 %v316, %v648
        %v1209 = vmax.f32 %v181, %v650
        %v1210 = vmax.f32 %v317, %v652
        %v1211 = vmax.f32 %v318, %v654
        %v1212 = vmax.f32 %v319, %v656
        %v1213 = vmax.f32 %v182, %v658
        %v1214 = vmax.f32 %v320, %v660
        %v1215 = vmax.f32 %v321, %v662
        %v1216 = vmax.f32 %v322, %v664
        %v1217 = vmax.f32 %v183, %v666
        %v1218 = vmax.f32 %v323, %v668
        %v1219 = vmax.f32 %v184, %v670
        %v1220 = vmax.f32 %v324, %v672
        %v1221 = vmax.f32 %v325, %v674
        %v1222 = vmax.f32 %v326, %v676
        %v1223 = vmax.f32 %v185, %v678
        %v1224 = vmax.f32 %v327, %v680
        %v1225 = vmax.f32 %v328, %v682
        %v1226 = vmax.f32 %v329, %v684
        %v1227 = vmax.f32 %v186, %v686
        %v1228 = vmax.f32 %v330, %v688
        %v1229 = vmax.f32 %v187, %v690
        %v1230 = vmax.f32 %v331, %v692
        %v1231 = vmax.f32 %v332, %v694
        %v1232 = vmax.f32 %v333, %v696
        %v1233 = vmax.f32 %v188, %v698
        %v1234 = vmax.f32 %v334, %v700
        %v1235 = vmax.f32 %v335, %v702
        %v1236 = vmax.f32 %v336, %v704
        %v1237 = vmax.f32 %v189, %v706
        %v1238 = vmax.f32 %v337, %v708
        %v1239 = vmax.f32 %v190, %v710
        %v1240 = vmax.f32 %v338, %v712
        %v1241 = vmax.f32 %v339, %v714
        %v1242 = vmax.f32 %v340, %v716
        %v1243 = vmax.f32 %v191, %v718
        %v1244 = vmax.f32 %v341, %v720
        %v1245 = vmax.f32 %v342, %v722
        %v1246 = vmax.f32 %v343, %v724
        %v1247 = vmax.f32 %v192, %v726
        %v1248 = vmax.f32 %v344, %v728
        %v1249 = vmax.f32 %v193, %v730
        %v1250 = vmax.f32 %v345, %v732
        %v1251 = vmax.f32 %v346, %v734
        %v1252 = vmax.f32 %v347, %v736
        %v1253 = vmax.f32 %v194, %v738
        %v1254 = vmax.f32 %v348, %v740
        %v1255 = vmax.f32 %v349, %v742
        %v1256 = vmax.f32 %v350, %v744
        %v1257 = vmax.f32 %v195, %v746
        %v1258 = vmax.f32 %v351, %v748
        %v1259 = vmax.f32 %v196, %v750
        %v1260 = vmax.f32 %v352, %v752
        %v1261 = vmax.f32 %v353, %v754
        %v1262 = vmax.f32 %v354, %v756
        %v1263 = vmax.f32 %v197, %v758
        %v1264 = vmax.f32 %v355, %v760
        %v1265 = vmax.f32 %v356, %v762
        %v1266 = vmax.f32 %v357, %v764
        %v1267 = vmax.f32 %v198, %v766
        %v1268 = vmax.f32 %v358, %v768
        %v1269 = vmax.f32 %v199, %v770
        %v1270 = vmax.f32 %v359, %v772
        %v1271 = vmax.f32 %v360, %v774
        %v1272 = vmax.f32 %v361, %v776
        %v1273 = vmax.f32 %v200, %v778
        %v1274 = vmax.f32 %v362, %v780
        %v1275 = vmax.f32 %v363, %v782
        %v1276 = vmax.f32 %v364, %v784
        %v1277 = vmax.f32 %v201, %v786
        %v1278 = vmax.f32 %v365, %v788
        %v1279 = vmax.f32 %v202, %v790
        %v1280 = vmax.f32 %v366, %v792
        %v1281 = vmax.f32 %v367, %v794
        %v1282 = vmax.f32 %v368, %v796
        %v1283 = vmax.f32 %v203, %v798
        %v1284 = vmax.f32 %v369, %v800
        %v1285 = vmax.f32 %v370, %v802
        %v1286 = vmax.f32 %v371, %v804
        %v1287 = vmax.f32 %v204, %v806
        %v1288 = vmax.f32 %v372, %v808
        %v1289 = vmax.f32 %v205, %v810
        %v1290 = vmax.f32 %v373, %v812
        %v1291 = vmax.f32 %v374, %v814
        %v1292 = vmax.f32 %v375, %v816
        %v1293 = vmax.f32 %v206, %v818
        %v1294 = vmax.f32 %v376, %v820
        %v1295 = vmax.f32 %v377, %v822
        %v1296 = vmax.f32 %v378, %v824
        %v1297 = vmax.f32 %v207, %v826
        %v1298 = vmax.f32 %v379, %v828
        %v1299 = vmax.f32 %v208, %v830
        %v1300 = vmax.f32 %v380, %v832
        %v1301 = vmax.f32 %v381, %v834
        %v1302 = vmax.f32 %v382, %v836
        %v1303 = vmax.f32 %v209, %v838
        %v1304 = vmax.f32 %v383, %v840
        %v1305 = vmax.f32 %v384, %v842
        %v1306 = vmax.f32 %v385, %v844
        %v1307 = vmax.f32 %v210, %v846
        %v1308 = vmax.f32 %v386, %v848
        %v1309 = vmax.f32 %v211, %v850
        %v1310 = vmax.f32 %v387, %v852
        %v1311 = vmax.f32 %v388, %v854
        %v1312 = vmax.f32 %v389, %v856
        %v1313 = vmax.f32 %v212, %v858
        %v1314 = vmax.f32 %v390, %v860
        %v1315 = vmax.f32 %v391, %v862
        %v1316 = vmax.f32 %v392, %v864
        %v1317 = vmax.f32 %v213, %v866
        %v1318 = vmax.f32 %v393, %v868
        %v1319 = vmax.f32 %v214, %v870
        %v1320 = vmax.f32 %v394, %v872
        %v1321 = vmax.f32 %v395, %v874
        %v1322 = vmax.f32 %v396, %v876
        %v1323 = vmax.f32 %v215, %v878
        %v1324 = vmax.f32 %v397, %v880
        %v1325 = vmax.f32 %v398, %v882
        %v1326 = vmax.f32 %v399, %v884
        %v1327 = vmax.f32 %v216, %v886
        %v1328 = vmax.f32 %v400, %v888
        %v1329 = vmax.f32 %v217, %v890
        %v1330 = vmax.f32 %v401, %v892
        %v1331 = vmax.f32 %v402, %v894
        %v1332 = vmax.f32 %v403, %v896
        %v1333 = vmax.f32 %v218, %v898
        %v1334 = vmax.f32 %v404, %v900
        %v1335 = vmax.f32 %v405, %v902
        %v1336 = vmax.f32 %v406, %v904
        %v1337 = vmax.f32 %v219, %v906
        %v1338 = vmax.f32 %v407, %v908
        %v1339 = vmax.f32 %v220, %v910
        %v1340 = vmax.f32 %v408, %v912
        %v1341 = vmax.f32 %v409, %v914
        %v1342 = vmax.f32 %v410, %v916
        %v1343 = vmax.f32 %v221, %v918
        %v1344 = vmax.f32 %v411, %v920
        %v1345 = vmax.f32 %v412, %v922
        %v1346 = vmax.f32 %v413, %v924
        %v1347 = vmax.f32 %v222, %v926
        %v1348 = vmax.f32 %v414, %v928
        %v1349 = vmax.f32 %v223, %v930
        %v1350 = vmax.f32 %v415, %v932
        %v1351 = vmax.f32 %v416, %v934
        %v1352 = vmax.f32 %v417, %v936
        %v1353 = vmax.f32 %v224, %v938
        %v1354 = vmax.f32 %v418, %v940
        %v1355 = vmax.f32 %v419, %v942
        %v1356 = vmax.f32 %v420, %v944
        %v1357 = vmax.f32 %v225, %v946
        %v1358 = vmax.f32 %v421, %v948
        %v1359 = vmax.f32 %v226, %v950
        %v1360 = vmax.f32 %v422, %v952
        %v1361 = vmax.f32 %v423, %v954
        %v1362 = vmax.f32 %v424, %v956
        %v1363 = vmax.f32 %v227, %v958
        %v1364 = vmax.f32 %v425, %v960
        %v1365 = vmax.f32 %v426, %v962
        %v1366 = vmax.f32 %v427, %v964
        %v1367 = vmax.f32 %v228, %v966
        %v1368 = vmax.f32 %v428, %v968
        %v1369 = vmax.f32 %v1169, %v1179
        %v1370 = vmax.f32 %v1170, %v1180
        %v1371 = vmax.f32 %v1171, %v1181
        %v1372 = vmax.f32 %v1172, %v1182
        %v1373 = vmax.f32 %v1173, %v1183
        %v1374 = vmax.f32 %v1174, %v1184
        %v1375 = vmax.f32 %v1175, %v1185
        %v1376 = vmax.f32 %v1176, %v1186
        %v1377 = vmax.f32 %v1177, %v1187
        %v1378 = vmax.f32 %v1178, %v1188
        %v1379 = vmax.f32 %v1189, %v1199
        %v1380 = vmax.f32 %v1190, %v1200
        %v1381 = vmax.f32 %v1191, %v1201
        %v1382 = vmax.f32 %v1192, %v1202
        %v1383 = vmax.f32 %v1193, %v1203
        %v1384 = vmax.f32 %v1194, %v1204
        %v1385 = vmax.f32 %v1195, %v1205
        %v1386 = vmax.f32 %v1196, %v1206
        %v1387 = vmax.f32 %v1197, %v1207
        %v1388 = vmax.f32 %v1198, %v1208
        %v1389 = vmax.f32 %v1209, %v1219
        %v1390 = vmax.f32 %v1210, %v1220
        %v1391 = vmax.f32 %v1211, %v1221
        %v1392 = vmax.f32 %v1212, %v1222
        %v1393 = vmax.f32 %v1213, %v1223
        %v1394 = vmax.f32 %v1214, %v1224
        %v1395 = vmax.f32 %v1215, %v1225
        %v1396 = vmax.f32 %v1216, %v1226
        %v1397 = vmax.f32 %v1217, %v1227
        %v1398 = vmax.f32 %v1218, %v1228
        %v1399 = vmax.f32 %v1229, %v1239
        %v1400 = vmax.f32 %v1230, %v1240
        %v1401 = vmax.f32 %v1231, %v1241
        %v1402 = vmax.f32 %v1232, %v1242
        %v1403 = vmax.f32 %v1233, %v1243
        %v1404 = vmax.f32 %v1234, %v1244
        %v1405 = vmax.f32 %v1235, %v1245
        %v1406 = vmax.f32 %v1236, %v1246
        %v1407 = vmax.f32 %v1237, %v1247
        %v1408 = vmax.f32 %v1238, %v1248
        %v1409 = vmax.f32 %v1249, %v1259
        %v1410 = vmax.f32 %v1250, %v1260
        %v1411 = vmax.f32 %v1251, %v1261
        %v1412 = vmax.f32 %v1252, %v1262
        %v1413 = vmax.f32 %v1253, %v1263
        %v1414 = vmax.f32 %v1254, %v1264
        %v1415 = vmax.f32 %v1255, %v1265
        %v1416 = vmax.f32 %v1256, %v1266
        %v1417 = vmax.f32 %v1257, %v1267
        %v1418 = vmax.f32 %v1258, %v1268
        %v1419 = vmax.f32 %v1269, %v1279
        %v1420 = vmax.f32 %v1270, %v1280
        %v1421 = vmax.f32 %v1271, %v1281
        %v1422 = vmax.f32 %v1272, %v1282
        %v1423 = vmax.f32 %v1273, %v1283
        %v1424 = vmax.f32 %v1274, %v1284
        %v1425 = vmax.f32 %v1275, %v1285
        %v1426 = vmax.f32 %v1276, %v1286
        %v1427 = vmax.f32 %v1277, %v1287
        %v1428 = vmax.f32 %v1278, %v1288
        %v1429 = vmax.f32 %v1289, %v1299
        %v1430 = vmax.f32 %v1290, %v1300
        %v1431 = vmax.f32 %v1291, %v1301
        %v1432 = vmax.f32 %v1292, %v1302
        %v1433 = vmax.f32 %v1293, %v1303
        %v1434 = vmax.f32 %v1294, %v1304
        %v1435 = vmax.f32 %v1295, %v1305
        %v1436 = vmax.f32 %v1296, %v1306
        %v1437 = vmax.f32 %v1297, %v1307
        %v1438 = vmax.f32 %v1298, %v1308
        %v1439 = vmax.f32 %v1309, %v1319
        %v1440 = vmax.f32 %v1310, %v1320
        %v1441 = vmax.f32 %v1311, %v1321
        %v1442 = vmax.f32 %v1312, %v1322
        %v1443 = vmax.f32 %v1313, %v1323
        %v1444 = vmax.f32 %v1314, %v1324
        %v1445 = vmax.f32 %v1315, %v1325
        %v1446 = vmax.f32 %v1316, %v1326
        %v1447 = vmax.f32 %v1317, %v1327
        %v1448 = vmax.f32 %v1318, %v1328
        %v1449 = vmax.f32 %v1329, %v1339
        %v1450 = vmax.f32 %v1330, %v1340
        %v1451 = vmax.f32 %v1331, %v1341
        %v1452 = vmax.f32 %v1332, %v1342
        %v1453 = vmax.f32 %v1333, %v1343
        %v1454 = vmax.f32 %v1334, %v1344
        %v1455 = vmax.f32 %v1335, %v1345
        %v1456 = vmax.f32 %v1336, %v1346
        %v1457 = vmax.f32 %v1337, %v1347
        %v1458 = vmax.f32 %v1338, %v1348
        %v1459 = vmax.f32 %v1349, %v1359
        %v1460 = vmax.f32 %v1350, %v1360
        %v1461 = vmax.f32 %v1351, %v1361
        %v1462 = vmax.f32 %v1352, %v1362
        %v1463 = vmax.f32 %v1353, %v1363
        %v1464 = vmax.f32 %v1354, %v1364
        %v1465 = vmax.f32 %v1355, %v1365
        %v1466 = vmax.f32 %v1356, %v1366
        %v1467 = vmax.f32 %v1357, %v1367
        %v1468 = vmax.f32 %v1358, %v1368
        %v1469 = vmul.f32 %v1369, 0.70710677
        %v1470 = vmul.f32 %v1370, 0.70710677
        %v1471 = vmul.f32 %v1371, 0.70710677
        %v1472 = vmul.f32 %v1372, 0.70710677
        %v1473 = vmul.f32 %v1373, 0.70710677
        %v1474 = vmul.f32 %v1374, 0.70710677
        %v1475 = vmul.f32 %v1375, 0.70710677
        %v1476 = vmul.f32 %v1376, 0.70710677
        %v1477 = vmul.f32 %v1377, 0.70710677
        %v1478 = vmul.f32 %v1378, 0.70710677
        %v1479 = vmul.f32 %v1379, 0.70710677
        %v1480 = vmul.f32 %v1380, 0.70710677
        %v1481 = vmul.f32 %v1381, 0.70710677
        %v1482 = vmul.f32 %v1382, 0.70710677
        %v1483 = vmul.f32 %v1383, 0.70710677
        %v1484 = vmul.f32 %v1384, 0.70710677
        %v1485 = vmul.f32 %v1385, 0.70710677
        %v1486 = vmul.f32 %v1386, 0.70710677
        %v1487 = vmul.f32 %v1387, 0.70710677
        %v1488 = vmul.f32 %v1388, 0.70710677
        %v1489 = vmul.f32 %v1389, 0.70710677
        %v1490 = vmul.f32 %v1390, 0.70710677
        %v1491 = vmul.f32 %v1391, 0.70710677
        %v1492 = vmul.f32 %v1392, 0.70710677
        %v1493 = vmul.f32 %v1393, 0.70710677
        %v1494 = vmul.f32 %v1394, 0.70710677
        %v1495 = vmul.f32 %v1395, 0.70710677
        %v1496 = vmul.f32 %v1396, 0.70710677
        %v1497 = vmul.f32 %v1397, 0.70710677
        %v1498 = vmul.f32 %v1398, 0.70710677
        %v1499 = vmul.f32 %v1399, 0.70710677
        %v1500 = vmul.f32 %v1400, 0.70710677
        %v1501 = vmul.f32 %v1401, 0.70710677
        %v1502 = vmul.f32 %v1402, 0.70710677
        %v1503 = vmul.f32 %v1403, 0.70710677
        %v1504 = vmul.f32 %v1404, 0.70710677
        %v1505 = vmul.f32 %v1405, 0.70710677
        %v1506 = vmul.f32 %v1406, 0.70710677
        %v1507 = vmul.f32 %v1407, 0.70710677
        %v1508 = vmul.f32 %v1408, 0.70710677
        %v1509 = vmul.f32 %v1409, 0.70710677
        %v1510 = vmul.f32 %v1410, 0.70710677
        %v1511 = vmul.f32 %v1411, 0.70710677
        %v1512 = vmul.f32 %v1412, 0.70710677
        %v1513 = vmul.f32 %v1413, 0.70710677
        %v1514 = vmul.f32 %v1414, 0.70710677
        %v1515 = vmul.f32 %v1415, 0.70710677
        %v1516 = vmul.f32 %v1416, 0.70710677
        %v1517 = vmul.f32 %v1417, 0.70710677
        %v1518 = vmul.f32 %v1418, 0.70710677
        %v1519 = vmul.f32 %v1419, 0.70710677
        %v1520 = vmul.f32 %v1420, 0.70710677
        %v1521 = vmul.f32 %v1421, 0.70710677
        %v1522 = vmul.f32 %v1422, 0.70710677
        %v1523 = vmul.f32 %v1423, 0.70710677
        %v1524 = vmul.f32 %v1424, 0.70710677
        %v1525 = vmul.f32 %v1425, 0.70710677
        %v1526 = vmul.f32 %v1426, 0.70710677
        %v1527 = vmul.f32 %v1427, 0.70710677
        %v1528 = vmul.f32 %v1428, 0.70710677
        %v1529 = vmul.f32 %v1429, 0.70710677
        %v1530 = vmul.f32 %v1430, 0.70710677
        %v1531 = vmul.f32 %v1431, 0.70710677
        %v1532 = vmul.f32 %v1432, 0.70710677
        %v1533 = vmul.f32 %v1433, 0.70710677
        %v1534 = vmul.f32 %v1434, 0.70710677
        %v1535 = vmul.f32 %v1435, 0.70710677
        %v1536 = vmul.f32 %v1436, 0.70710677
        %v1537 = vmul.f32 %v1437, 0.70710677
        %v1538 = vmul.f32 %v1438, 0.70710677
        %v1539 = vmul.f32 %v1439, 0.70710677
        %v1540 = vmul.f32 %v1440, 0.70710677
        %v1541 = vmul.f32 %v1441, 0.70710677
        %v1542 = vmul.f32 %v1442, 0.70710677
        %v1543 = vmul.f32 %v1443, 0.70710677
        %v1544 = vmul.f32 %v1444, 0.70710677
        %v1545 = vmul.f32 %v1445, 0.70710677
        %v1546 = vmul.f32 %v1446, 0.70710677
        %v1547 = vmul.f32 %v1447, 0.70710677
        %v1548 = vmul.f32 %v1448, 0.70710677
        %v1549 = vmul.f32 %v1449, 0.70710677
        %v1550 = vmul.f32 %v1450, 0.70710677
        %v1551 = vmul.f32 %v1451, 0.70710677
        %v1552 = vmul.f32 %v1452, 0.70710677
        %v1553 = vmul.f32 %v1453, 0.70710677
        %v1554 = vmul.f32 %v1454, 0.70710677
        %v1555 = vmul.f32 %v1455, 0.70710677
        %v1556 = vmul.f32 %v1456, 0.70710677
        %v1557 = vmul.f32 %v1457, 0.70710677
        %v1558 = vmul.f32 %v1458, 0.70710677
        %v1559 = vmul.f32 %v1459, 0.70710677
        %v1560 = vmul.f32 %v1460, 0.70710677
        %v1561 = vmul.f32 %v1461, 0.70710677
        %v1562 = vmul.f32 %v1462, 0.70710677
        %v1563 = vmul.f32 %v1463, 0.70710677
        %v1564 = vmul.f32 %v1464, 0.70710677
        %v1565 = vmul.f32 %v1465, 0.70710677
        %v1566 = vmul.f32 %v1466, 0.70710677
        %v1567 = vmul.f32 %v1467, 0.70710677
        %v1568 = vmul.f32 %v1468, 0.70710677
        %vm1569 = vcmp.lt.f32.partialorder %v1469, 0.0
        %vm1570 = vcmp.lt.f32.partialorder %v1470, 0.0
        %vm1571 = vcmp.lt.f32.partialorder %v1471, 0.0
        %vm1572 = vcmp.lt.f32.partialorder %v1472, 0.0
        %vm1573 = vcmp.lt.f32.partialorder %v1473, 0.0
        %vm1574 = vcmp.lt.f32.partialorder %v1474, 0.0
        %vm1575 = vcmp.lt.f32.partialorder %v1475, 0.0
        %vm1576 = vcmp.lt.f32.partialorder %v1476, 0.0
        %vm1577 = vcmp.lt.f32.partialorder %v1477, 0.0
        %vm1578 = vcmp.lt.f32.partialorder %v1478, 0.0
        %vm1579 = vcmp.lt.f32.partialorder %v1479, 0.0
        %vm1580 = vcmp.lt.f32.partialorder %v1480, 0.0
        %vm1581 = vcmp.lt.f32.partialorder %v1481, 0.0
        %vm1582 = vcmp.lt.f32.partialorder %v1482, 0.0
        %vm1583 = vcmp.lt.f32.partialorder %v1483, 0.0
        %vm1584 = vcmp.lt.f32.partialorder %v1484, 0.0
        %vm1585 = vcmp.lt.f32.partialorder %v1485, 0.0
        %vm1586 = vcmp.lt.f32.partialorder %v1486, 0.0
        %vm1587 = vcmp.lt.f32.partialorder %v1487, 0.0
        %vm1588 = vcmp.lt.f32.partialorder %v1488, 0.0
        %vm1589 = vcmp.lt.f32.partialorder %v1489, 0.0
        %vm1590 = vcmp.lt.f32.partialorder %v1490, 0.0
        %vm1591 = vcmp.lt.f32.partialorder %v1491, 0.0
        %vm1592 = vcmp.lt.f32.partialorder %v1492, 0.0
        %vm1593 = vcmp.lt.f32.partialorder %v1493, 0.0
        %vm1594 = vcmp.lt.f32.partialorder %v1494, 0.0
        %vm1595 = vcmp.lt.f32.partialorder %v1495, 0.0
        %vm1596 = vcmp.lt.f32.partialorder %v1496, 0.0
        %vm1597 = vcmp.lt.f32.partialorder %v1497, 0.0
        %vm1598 = vcmp.lt.f32.partialorder %v1498, 0.0
        %vm1599 = vcmp.lt.f32.partialorder %v1499, 0.0
        %vm1600 = vcmp.lt.f32.partialorder %v1500, 0.0
        %vm1601 = vcmp.lt.f32.partialorder %v1501, 0.0
        %vm1602 = vcmp.lt.f32.partialorder %v1502, 0.0
        %vm1603 = vcmp.lt.f32.partialorder %v1503, 0.0
        %vm1604 = vcmp.lt.f32.partialorder %v1504, 0.0
        %vm1605 = vcmp.lt.f32.partialorder %v1505, 0.0
        %vm1606 = vcmp.lt.f32.partialorder %v1506, 0.0
        %vm1607 = vcmp.lt.f32.partialorder %v1507, 0.0
        %vm1608 = vcmp.lt.f32.partialorder %v1508, 0.0
        %vm1609 = vcmp.lt.f32.partialorder %v1509, 0.0
        %vm1610 = vcmp.lt.f32.partialorder %v1510, 0.0
        %vm1611 = vcmp.lt.f32.partialorder %v1511, 0.0
        %vm1612 = vcmp.lt.f32.partialorder %v1512, 0.0
        %vm1613 = vcmp.lt.f32.partialorder %v1513, 0.0
        %vm1614 = vcmp.lt.f32.partialorder %v1514, 0.0
        %vm1615 = vcmp.lt.f32.partialorder %v1515, 0.0
        %vm1616 = vcmp.lt.f32.partialorder %v1516, 0.0
        %vm1617 = vcmp.lt.f32.partialorder %v1517, 0.0
        %vm1618 = vcmp.lt.f32.partialorder %v1518, 0.0
        %vm1619 = vcmp.lt.f32.partialorder %v1519, 0.0
        %vm1620 = vcmp.lt.f32.partialorder %v1520, 0.0
        %vm1621 = vcmp.lt.f32.partialorder %v1521, 0.0
        %vm1622 = vcmp.lt.f32.partialorder %v1522, 0.0
        %vm1623 = vcmp.lt.f32.partialorder %v1523, 0.0
        %vm1624 = vcmp.lt.f32.partialorder %v1524, 0.0
        %vm1625 = vcmp.lt.f32.partialorder %v1525, 0.0
        %vm1626 = vcmp.lt.f32.partialorder %v1526, 0.0
        %vm1627 = vcmp.lt.f32.partialorder %v1527, 0.0
        %vm1628 = vcmp.lt.f32.partialorder %v1528, 0.0
        %vm1629 = vcmp.lt.f32.partialorder %v1529, 0.0
        %vm1630 = vcmp.lt.f32.partialorder %v1530, 0.0
        %vm1631 = vcmp.lt.f32.partialorder %v1531, 0.0
        %vm1632 = vcmp.lt.f32.partialorder %v1532, 0.0
        %vm1633 = vcmp.lt.f32.partialorder %v1533, 0.0
        %vm1634 = vcmp.lt.f32.partialorder %v1534, 0.0
        %vm1635 = vcmp.lt.f32.partialorder %v1535, 0.0
        %vm1636 = vcmp.lt.f32.partialorder %v1536, 0.0
        %vm1637 = vcmp.lt.f32.partialorder %v1537, 0.0
        %vm1638 = vcmp.lt.f32.partialorder %v1538, 0.0
        %vm1639 = vcmp.lt.f32.partialorder %v1539, 0.0
        %vm1640 = vcmp.lt.f32.partialorder %v1540, 0.0
        %vm1641 = vcmp.lt.f32.partialorder %v1541, 0.0
        %vm1642 = vcmp.lt.f32.partialorder %v1542, 0.0
        %vm1643 = vcmp.lt.f32.partialorder %v1543, 0.0
        %vm1644 = vcmp.lt.f32.partialorder %v1544, 0.0
        %vm1645 = vcmp.lt.f32.partialorder %v1545, 0.0
        %vm1646 = vcmp.lt.f32.partialorder %v1546, 0.0
        %vm1647 = vcmp.lt.f32.partialorder %v1547, 0.0
        %vm1648 = vcmp.lt.f32.partialorder %v1548, 0.0
        %vm1649 = vcmp.lt.f32.partialorder %v1549, 0.0
        %vm1650 = vcmp.lt.f32.partialorder %v1550, 0.0
        %vm1651 = vcmp.lt.f32.partialorder %v1551, 0.0
        %vm1652 = vcmp.lt.f32.partialorder %v1552, 0.0
        %vm1653 = vcmp.lt.f32.partialorder %v1553, 0.0
        %vm1654 = vcmp.lt.f32.partialorder %v1554, 0.0
        %vm1655 = vcmp.lt.f32.partialorder %v1555, 0.0
        %vm1656 = vcmp.lt.f32.partialorder %v1556, 0.0
        %vm1657 = vcmp.lt.f32.partialorder %v1557, 0.0
        %vm1658 = vcmp.lt.f32.partialorder %v1558, 0.0
        %vm1659 = vcmp.lt.f32.partialorder %v1559, 0.0
        %vm1660 = vcmp.lt.f32.partialorder %v1560, 0.0
        %vm1661 = vcmp.lt.f32.partialorder %v1561, 0.0
        %vm1662 = vcmp.lt.f32.partialorder %v1562, 0.0
        %vm1663 = vcmp.lt.f32.partialorder %v1563, 0.0
        %vm1664 = vcmp.lt.f32.partialorder %v1564, 0.0
        %vm1665 = vcmp.lt.f32.partialorder %v1565, 0.0
        %vm1666 = vcmp.lt.f32.partialorder %v1566, 0.0
        %vm1667 = vcmp.lt.f32.partialorder %v1567, 0.0
        %vm1668 = vcmp.lt.f32.partialorder %v1568, 0.0
        %v1669 = vsel %vm1569, -1.0, 1.0
        %v1670 = vsel %vm1570, -1.0, 1.0
        %v1671 = vsel %vm1571, -1.0, 1.0
        %v1672 = vsel %vm1572, -1.0, 1.0
        %v1673 = vsel %vm1573, -1.0, 1.0
        %v1674 = vsel %vm1574, -1.0, 1.0
        %v1675 = vsel %vm1575, -1.0, 1.0
        %v1676 = vsel %vm1576, -1.0, 1.0
        %v1677 = vsel %vm1577, -1.0, 1.0
        %v1678 = vsel %vm1578, -1.0, 1.0
        %v1679 = vsel %vm1579, -1.0, 1.0
        %v1680 = vsel %vm1580, -1.0, 1.0
        %v1681 = vsel %vm1581, -1.0, 1.0
        %v1682 = vsel %vm1582, -1.0, 1.0
        %v1683 = vsel %vm1583, -1.0, 1.0
        %v1684 = vsel %vm1584, -1.0, 1.0
        %v1685 = vsel %vm1585, -1.0, 1.0
        %v1686 = vsel %vm1586, -1.0, 1.0
        %v1687 = vsel %vm1587, -1.0, 1.0
        %v1688 = vsel %vm1588, -1.0, 1.0
        %v1689 = vsel %vm1589, -1.0, 1.0
        %v1690 = vsel %vm1590, -1.0, 1.0
        %v1691 = vsel %vm1591, -1.0, 1.0
        %v1692 = vsel %vm1592, -1.0, 1.0
        %v1693 = vsel %vm1593, -1.0, 1.0
        %v1694 = vsel %vm1594, -1.0, 1.0
        %v1695 = vsel %vm1595, -1.0, 1.0
        %v1696 = vsel %vm1596, -1.0, 1.0
        %v1697 = vsel %vm1597, -1.0, 1.0
        %v1698 = vsel %vm1598, -1.0, 1.0
        %v1699 = vsel %vm1599, -1.0, 1.0
        %v1700 = vsel %vm1600, -1.0, 1.0
        %v1701 = vsel %vm1601, -1.0, 1.0
        %v1702 = vsel %vm1602, -1.0, 1.0
        %v1703 = vsel %vm1603, -1.0, 1.0
        %v1704 = vsel %vm1604, -1.0, 1.0
        %v1705 = vsel %vm1605, -1.0, 1.0
        %v1706 = vsel %vm1606, -1.0, 1.0
        %v1707 = vsel %vm1607, -1.0, 1.0
        %v1708 = vsel %vm1608, -1.0, 1.0
        %v1709 = vsel %vm1609, -1.0, 1.0
        %v1710 = vsel %vm1610, -1.0, 1.0
        %v1711 = vsel %vm1611, -1.0, 1.0
        %v1712 = vsel %vm1612, -1.0, 1.0
        %v1713 = vsel %vm1613, -1.0, 1.0
        %v1714 = vsel %vm1614, -1.0, 1.0
        %v1715 = vsel %vm1615, -1.0, 1.0
        %v1716 = vsel %vm1616, -1.0, 1.0
        %v1717 = vsel %vm1617, -1.0, 1.0
        %v1718 = vsel %vm1618, -1.0, 1.0
        %v1719 = vsel %vm1619, -1.0, 1.0
        %v1720 = vsel %vm1620, -1.0, 1.0
        %v1721 = vsel %vm1621, -1.0, 1.0
        %v1722 = vsel %vm1622, -1.0, 1.0
        %v1723 = vsel %vm1623, -1.0, 1.0
        %v1724 = vsel %vm1624, -1.0, 1.0
        %v1725 = vsel %vm1625, -1.0, 1.0
        %v1726 = vsel %vm1626, -1.0, 1.0
        %v1727 = vsel %vm1627, -1.0, 1.0
        %v1728 = vsel %vm1628, -1.0, 1.0
        %v1729 = vsel %vm1629, -1.0, 1.0
        %v1730 = vsel %vm1630, -1.0, 1.0
        %v1731 = vsel %vm1631, -1.0, 1.0
        %v1732 = vsel %vm1632, -1.0, 1.0
        %v1733 = vsel %vm1633, -1.0, 1.0
        %v1734 = vsel %vm1634, -1.0, 1.0
        %v1735 = vsel %vm1635, -1.0, 1.0
        %v1736 = vsel %vm1636, -1.0, 1.0
        %v1737 = vsel %vm1637, -1.0, 1.0
        %v1738 = vsel %vm1638, -1.0, 1.0
        %v1739 = vsel %vm1639, -1.0, 1.0
        %v1740 = vsel %vm1640, -1.0, 1.0
        %v1741 = vsel %vm1641, -1.0, 1.0
        %v1742 = vsel %vm1642, -1.0, 1.0
        %v1743 = vsel %vm1643, -1.0, 1.0
        %v1744 = vsel %vm1644, -1.0, 1.0
        %v1745 = vsel %vm1645, -1.0, 1.0
        %v1746 = vsel %vm1646, -1.0, 1.0
        %v1747 = vsel %vm1647, -1.0, 1.0
        %v1748 = vsel %vm1648, -1.0, 1.0
        %v1749 = vsel %vm1649, -1.0, 1.0
        %v1750 = vsel %vm1650, -1.0, 1.0
        %v1751 = vsel %vm1651, -1.0, 1.0
        %v1752 = vsel %vm1652, -1.0, 1.0
        %v1753 = vsel %vm1653, -1.0, 1.0
        %v1754 = vsel %vm1654, -1.0, 1.0
        %v1755 = vsel %vm1655, -1.0, 1.0
        %v1756 = vsel %vm1656, -1.0, 1.0
        %v1757 = vsel %vm1657, -1.0, 1.0
        %v1758 = vsel %vm1658, -1.0, 1.0
        %v1759 = vsel %vm1659, -1.0, 1.0
        %v1760 = vsel %vm1660, -1.0, 1.0
        %v1761 = vsel %vm1661, -1.0, 1.0
        %v1762 = vsel %vm1662, -1.0, 1.0
        %v1763 = vsel %vm1663, -1.0, 1.0
        %v1764 = vsel %vm1664, -1.0, 1.0
        %v1765 = vsel %vm1665, -1.0, 1.0
        %v1766 = vsel %vm1666, -1.0, 1.0
        %v1767 = vsel %vm1667, -1.0, 1.0
        %v1768 = vsel %vm1668, -1.0, 1.0
        %v1769 = vand.u32 2147483647, %v1469
        %v1770 = vand.u32 2147483647, %v1470
        %v1771 = vand.u32 2147483647, %v1471
        %v1772 = vand.u32 2147483647, %v1472
        %v1773 = vand.u32 2147483647, %v1473
        %v1774 = vand.u32 2147483647, %v1474
        %v1775 = vand.u32 2147483647, %v1475
        %v1776 = vand.u32 2147483647, %v1476
        %v1777 = vand.u32 2147483647, %v1477
        %v1778 = vand.u32 2147483647, %v1478
        %v1779 = vand.u32 2147483647, %v1479
        %v1780 = vand.u32 2147483647, %v1480
        %v1781 = vand.u32 2147483647, %v1481
        %v1782 = vand.u32 2147483647, %v1482
        %v1783 = vand.u32 2147483647, %v1483
        %v1784 = vand.u32 2147483647, %v1484
        %v1785 = vand.u32 2147483647, %v1485
        %v1786 = vand.u32 2147483647, %v1486
        %v1787 = vand.u32 2147483647, %v1487
        %v1788 = vand.u32 2147483647, %v1488
        %v1789 = vand.u32 2147483647, %v1489
        %v1790 = vand.u32 2147483647, %v1490
        %v1791 = vand.u32 2147483647, %v1491
        %v1792 = vand.u32 2147483647, %v1492
        %v1793 = vand.u32 2147483647, %v1493
        %v1794 = vand.u32 2147483647, %v1494
        %v1795 = vand.u32 2147483647, %v1495
        %v1796 = vand.u32 2147483647, %v1496
        %v1797 = vand.u32 2147483647, %v1497
        %v1798 = vand.u32 2147483647, %v1498
        %v1799 = vand.u32 2147483647, %v1499
        %v1800 = vand.u32 2147483647, %v1500
        %v1801 = vand.u32 2147483647, %v1501
        %v1802 = vand.u32 2147483647, %v1502
        %v1803 = vand.u32 2147483647, %v1503
        %v1804 = vand.u32 2147483647, %v1504
        %v1805 = vand.u32 2147483647, %v1505
        %v1806 = vand.u32 2147483647, %v1506
        %v1807 = vand.u32 2147483647, %v1507
        %v1808 = vand.u32 2147483647, %v1508
        %v1809 = vand.u32 2147483647, %v1509
        %v1810 = vand.u32 2147483647, %v1510
        %v1811 = vand.u32 2147483647, %v1511
        %v1812 = vand.u32 2147483647, %v1512
        %v1813 = vand.u32 2147483647, %v1513
        %v1814 = vand.u32 2147483647, %v1514
        %v1815 = vand.u32 2147483647, %v1515
        %v1816 = vand.u32 2147483647, %v1516
        %v1817 = vand.u32 2147483647, %v1517
        %v1818 = vand.u32 2147483647, %v1518
        %v1819 = vand.u32 2147483647, %v1519
        %v1820 = vand.u32 2147483647, %v1520
        %v1821 = vand.u32 2147483647, %v1521
        %v1822 = vand.u32 2147483647, %v1522
        %v1823 = vand.u32 2147483647, %v1523
        %v1824 = vand.u32 2147483647, %v1524
        %v1825 = vand.u32 2147483647, %v1525
        %v1826 = vand.u32 2147483647, %v1526
        %v1827 = vand.u32 2147483647, %v1527
        %v1828 = vand.u32 2147483647, %v1528
        %v1829 = vand.u32 2147483647, %v1529
        %v1830 = vand.u32 2147483647, %v1530
        %v1831 = vand.u32 2147483647, %v1531
        %v1832 = vand.u32 2147483647, %v1532
        %v1833 = vand.u32 2147483647, %v1533
        %v1834 = vand.u32 2147483647, %v1534
        %v1835 = vand.u32 2147483647, %v1535
        %v1836 = vand.u32 2147483647, %v1536
        %v1837 = vand.u32 2147483647, %v1537
        %v1838 = vand.u32 2147483647, %v1538
        %v1839 = vand.u32 2147483647, %v1539
        %v1840 = vand.u32 2147483647, %v1540
        %v1841 = vand.u32 2147483647, %v1541
        %v1842 = vand.u32 2147483647, %v1542
        %v1843 = vand.u32 2147483647, %v1543
        %v1844 = vand.u32 2147483647, %v1544
        %v1845 = vand.u32 2147483647, %v1545
        %v1846 = vand.u32 2147483647, %v1546
        %v1847 = vand.u32 2147483647, %v1547
        %v1848 = vand.u32 2147483647, %v1548
        %v1849 = vand.u32 2147483647, %v1549
        %v1850 = vand.u32 2147483647, %v1550
        %v1851 = vand.u32 2147483647, %v1551
        %v1852 = vand.u32 2147483647, %v1552
        %v1853 = vand.u32 2147483647, %v1553
        %v1854 = vand.u32 2147483647, %v1554
        %v1855 = vand.u32 2147483647, %v1555
        %v1856 = vand.u32 2147483647, %v1556
        %v1857 = vand.u32 2147483647, %v1557
        %v1858 = vand.u32 2147483647, %v1558
        %v1859 = vand.u32 2147483647, %v1559
        %v1860 = vand.u32 2147483647, %v1560
        %v1861 = vand.u32 2147483647, %v1561
        %v1862 = vand.u32 2147483647, %v1562
        %v1863 = vand.u32 2147483647, %v1563
        %v1864 = vand.u32 2147483647, %v1564
        %v1865 = vand.u32 2147483647, %v1565
        %v1866 = vand.u32 2147483647, %v1566
        %v1867 = vand.u32 2147483647, %v1567
        %v1868 = vand.u32 2147483647, %v1568
        %v1869 = vmul.f32 %v1769, 0.3275911
        %v1870 = vmul.f32 %v1770, 0.3275911
        %v1871 = vmul.f32 %v1771, 0.3275911
        %v1872 = vmul.f32 %v1772, 0.3275911
        %v1873 = vmul.f32 %v1773, 0.3275911
        %v1874 = vmul.f32 %v1774, 0.3275911
        %v1875 = vmul.f32 %v1775, 0.3275911
        %v1876 = vmul.f32 %v1776, 0.3275911
        %v1877 = vmul.f32 %v1777, 0.3275911
        %v1878 = vmul.f32 %v1778, 0.3275911
        %v1879 = vmul.f32 %v1779, 0.3275911
        %v1880 = vmul.f32 %v1780, 0.3275911
        %v1881 = vmul.f32 %v1781, 0.3275911
        %v1882 = vmul.f32 %v1782, 0.3275911
        %v1883 = vmul.f32 %v1783, 0.3275911
        %v1884 = vmul.f32 %v1784, 0.3275911
        %v1885 = vmul.f32 %v1785, 0.3275911
        %v1886 = vmul.f32 %v1786, 0.3275911
        %v1887 = vmul.f32 %v1787, 0.3275911
        %v1888 = vmul.f32 %v1788, 0.3275911
        %v1889 = vmul.f32 %v1789, 0.3275911
        %v1890 = vmul.f32 %v1790, 0.3275911
        %v1891 = vmul.f32 %v1791, 0.3275911
        %v1892 = vmul.f32 %v1792, 0.3275911
        %v1893 = vmul.f32 %v1793, 0.3275911
        %v1894 = vmul.f32 %v1794, 0.3275911
        %v1895 = vmul.f32 %v1795, 0.3275911
        %v1896 = vmul.f32 %v1796, 0.3275911
        %v1897 = vmul.f32 %v1797, 0.3275911
        %v1898 = vmul.f32 %v1798, 0.3275911
        %v1899 = vmul.f32 %v1799, 0.3275911
        %v1900 = vmul.f32 %v1800, 0.3275911
        %v1901 = vmul.f32 %v1801, 0.3275911
        %v1902 = vmul.f32 %v1802, 0.3275911
        %v1903 = vmul.f32 %v1803, 0.3275911
        %v1904 = vmul.f32 %v1804, 0.3275911
        %v1905 = vmul.f32 %v1805, 0.3275911
        %v1906 = vmul.f32 %v1806, 0.3275911
        %v1907 = vmul.f32 %v1807, 0.3275911
        %v1908 = vmul.f32 %v1808, 0.3275911
        %v1909 = vmul.f32 %v1809, 0.3275911
        %v1910 = vmul.f32 %v1810, 0.3275911
        %v1911 = vmul.f32 %v1811, 0.3275911
        %v1912 = vmul.f32 %v1812, 0.3275911
        %v1913 = vmul.f32 %v1813, 0.3275911
        %v1914 = vmul.f32 %v1814, 0.3275911
        %v1915 = vmul.f32 %v1815, 0.3275911
        %v1916 = vmul.f32 %v1816, 0.3275911
        %v1917 = vmul.f32 %v1817, 0.3275911
        %v1918 = vmul.f32 %v1818, 0.3275911
        %v1919 = vmul.f32 %v1819, 0.3275911
        %v1920 = vmul.f32 %v1820, 0.3275911
        %v1921 = vmul.f32 %v1821, 0.3275911
        %v1922 = vmul.f32 %v1822, 0.3275911
        %v1923 = vmul.f32 %v1823, 0.3275911
        %v1924 = vmul.f32 %v1824, 0.3275911
        %v1925 = vmul.f32 %v1825, 0.3275911
        %v1926 = vmul.f32 %v1826, 0.3275911
        %v1927 = vmul.f32 %v1827, 0.3275911
        %v1928 = vmul.f32 %v1828, 0.3275911
        %v1929 = vmul.f32 %v1829, 0.3275911
        %v1930 = vmul.f32 %v1830, 0.3275911
        %v1931 = vmul.f32 %v1831, 0.3275911
        %v1932 = vmul.f32 %v1832, 0.3275911
        %v1933 = vmul.f32 %v1833, 0.3275911
        %v1934 = vmul.f32 %v1834, 0.3275911
        %v1935 = vmul.f32 %v1835, 0.3275911
        %v1936 = vmul.f32 %v1836, 0.3275911
        %v1937 = vmul.f32 %v1837, 0.3275911
        %v1938 = vmul.f32 %v1838, 0.3275911
        %v1939 = vmul.f32 %v1839, 0.3275911
        %v1940 = vmul.f32 %v1840, 0.3275911
        %v1941 = vmul.f32 %v1841, 0.3275911
        %v1942 = vmul.f32 %v1842, 0.3275911
        %v1943 = vmul.f32 %v1843, 0.3275911
        %v1944 = vmul.f32 %v1844, 0.3275911
        %v1945 = vmul.f32 %v1845, 0.3275911
        %v1946 = vmul.f32 %v1846, 0.3275911
        %v1947 = vmul.f32 %v1847, 0.3275911
        %v1948 = vmul.f32 %v1848, 0.3275911
        %v1949 = vmul.f32 %v1849, 0.3275911
        %v1950 = vmul.f32 %v1850, 0.3275911
        %v1951 = vmul.f32 %v1851, 0.3275911
        %v1952 = vmul.f32 %v1852, 0.3275911
        %v1953 = vmul.f32 %v1853, 0.3275911
        %v1954 = vmul.f32 %v1854, 0.3275911
        %v1955 = vmul.f32 %v1855, 0.3275911
        %v1956 = vmul.f32 %v1856, 0.3275911
        %v1957 = vmul.f32 %v1857, 0.3275911
        %v1958 = vmul.f32 %v1858, 0.3275911
        %v1959 = vmul.f32 %v1859, 0.3275911
        %v1960 = vmul.f32 %v1860, 0.3275911
        %v1961 = vmul.f32 %v1861, 0.3275911
        %v1962 = vmul.f32 %v1862, 0.3275911
        %v1963 = vmul.f32 %v1863, 0.3275911
        %v1964 = vmul.f32 %v1864, 0.3275911
        %v1965 = vmul.f32 %v1865, 0.3275911
        %v1966 = vmul.f32 %v1866, 0.3275911
        %v1967 = vmul.f32 %v1867, 0.3275911
        %v1968 = vmul.f32 %v1868, 0.3275911
        %v1969 = vadd.f32 %v1869, 1.0
        %v1970 = vadd.f32 %v1870, 1.0
        %v1971 = vadd.f32 %v1871, 1.0
        %v1972 = vadd.f32 %v1872, 1.0
        %v1973 = vadd.f32 %v1873, 1.0
        %v1974 = vadd.f32 %v1874, 1.0
        %v1975 = vadd.f32 %v1875, 1.0
        %v1976 = vadd.f32 %v1876, 1.0
        %v1977 = vadd.f32 %v1877, 1.0
        %v1978 = vadd.f32 %v1878, 1.0
        %v1979 = vadd.f32 %v1879, 1.0
        %v1980 = vadd.f32 %v1880, 1.0
        %v1981 = vadd.f32 %v1881, 1.0
        %v1982 = vadd.f32 %v1882, 1.0
        %v1983 = vadd.f32 %v1883, 1.0
        %v1984 = vadd.f32 %v1884, 1.0
        %v1985 = vadd.f32 %v1885, 1.0
        %v1986 = vadd.f32 %v1886, 1.0
        %v1987 = vadd.f32 %v1887, 1.0
        %v1988 = vadd.f32 %v1888, 1.0
        %v1989 = vadd.f32 %v1889, 1.0
        %v1990 = vadd.f32 %v1890, 1.0
        %v1991 = vadd.f32 %v1891, 1.0
        %v1992 = vadd.f32 %v1892, 1.0
        %v1993 = vadd.f32 %v1893, 1.0
        %v1994 = vadd.f32 %v1894, 1.0
        %v1995 = vadd.f32 %v1895, 1.0
        %v1996 = vadd.f32 %v1896, 1.0
        %v1997 = vadd.f32 %v1897, 1.0
        %v1998 = vadd.f32 %v1898, 1.0
        %v1999 = vadd.f32 %v1899, 1.0
        %v2000 = vadd.f32 %v1900, 1.0
        %v2001 = vadd.f32 %v1901, 1.0
        %v2002 = vadd.f32 %v1902, 1.0
        %v2003 = vadd.f32 %v1903, 1.0
        %v2004 = vadd.f32 %v1904, 1.0
        %v2005 = vadd.f32 %v1905, 1.0
        %v2006 = vadd.f32 %v1906, 1.0
        %v2007 = vadd.f32 %v1907, 1.0
        %v2008 = vadd.f32 %v1908, 1.0
        %v2009 = vadd.f32 %v1909, 1.0
        %v2010 = vadd.f32 %v1910, 1.0
        %v2011 = vadd.f32 %v1911, 1.0
        %v2012 = vadd.f32 %v1912, 1.0
        %v2013 = vadd.f32 %v1913, 1.0
        %v2014 = vadd.f32 %v1914, 1.0
        %v2015 = vadd.f32 %v1915, 1.0
        %v2016 = vadd.f32 %v1916, 1.0
        %v2017 = vadd.f32 %v1917, 1.0
        %v2018 = vadd.f32 %v1918, 1.0
        %v2019 = vadd.f32 %v1919, 1.0
        %v2020 = vadd.f32 %v1920, 1.0
        %v2021 = vadd.f32 %v1921, 1.0
        %v2022 = vadd.f32 %v1922, 1.0
        %v2023 = vadd.f32 %v1923, 1.0
        %v2024 = vadd.f32 %v1924, 1.0
        %v2025 = vadd.f32 %v1925, 1.0
        %v2026 = vadd.f32 %v1926, 1.0
        %v2027 = vadd.f32 %v1927, 1.0
        %v2028 = vadd.f32 %v1928, 1.0
        %v2029 = vadd.f32 %v1929, 1.0
        %v2030 = vadd.f32 %v1930, 1.0
        %v2031 = vadd.f32 %v1931, 1.0
        %v2032 = vadd.f32 %v1932, 1.0
        %v2033 = vadd.f32 %v1933, 1.0
        %v2034 = vadd.f32 %v1934, 1.0
        %v2035 = vadd.f32 %v1935, 1.0
        %v2036 = vadd.f32 %v1936, 1.0
        %v2037 = vadd.f32 %v1937, 1.0
        %v2038 = vadd.f32 %v1938, 1.0
        %v2039 = vadd.f32 %v1939, 1.0
        %v2040 = vadd.f32 %v1940, 1.0
        %v2041 = vadd.f32 %v1941, 1.0
        %v2042 = vadd.f32 %v1942, 1.0
        %v2043 = vadd.f32 %v1943, 1.0
        %v2044 = vadd.f32 %v1944, 1.0
        %v2045 = vadd.f32 %v1945, 1.0
        %v2046 = vadd.f32 %v1946, 1.0
        %v2047 = vadd.f32 %v1947, 1.0
        %v2048 = vadd.f32 %v1948, 1.0
        %v2049 = vadd.f32 %v1949, 1.0
        %v2050 = vadd.f32 %v1950, 1.0
        %v2051 = vadd.f32 %v1951, 1.0
        %v2052 = vadd.f32 %v1952, 1.0
        %v2053 = vadd.f32 %v1953, 1.0
        %v2054 = vadd.f32 %v1954, 1.0
        %v2055 = vadd.f32 %v1955, 1.0
        %v2056 = vadd.f32 %v1956, 1.0
        %v2057 = vadd.f32 %v1957, 1.0
        %v2058 = vadd.f32 %v1958, 1.0
        %v2059 = vadd.f32 %v1959, 1.0
        %v2060 = vadd.f32 %v1960, 1.0
        %v2061 = vadd.f32 %v1961, 1.0
        %v2062 = vadd.f32 %v1962, 1.0
        %v2063 = vadd.f32 %v1963, 1.0
        %v2064 = vadd.f32 %v1964, 1.0
        %v2065 = vadd.f32 %v1965, 1.0
        %v2066 = vadd.f32 %v1966, 1.0
        %v2067 = vadd.f32 %v1967, 1.0
        %v2068 = vadd.f32 %v1968, 1.0
        %v2069 = vrcp.pop %v1969
        %v2070 = vmul.f32 %v1969, %v2069
        %v2071 = vsub.f32 1.0, %v2070
        %v2072 = vmul.f32 %v2069, %v2071
        %v2073 = vadd.f32 %v2069, %v2072
        %vm2074 = vweird.f32 %v1969
        %vm2075 = vweird.f32 %v2069
        %vm2076 = vmor %vm2074, %vm2075
        %v2077 = vsel %vm2076, %v2069, %v2073
        %v2078 = vand.u32 2147483647, %v1969
        %vm2079 = vcmp.eq.f32.partialorder %v2078, 8.507059e+37
        %v2080 = vand.u32 %v1969, 2147483648
        %v2081 = vor.u32 1.1754944e-38, %v2080
        %v2082 = vsel %vm2079, %v2081, %v2077
        %v2083 = vmul.f32 1.0, %v2082
        %v2084 = vrcp.pop %v1970
        %v2085 = vmul.f32 %v1970, %v2084
        %v2086 = vsub.f32 1.0, %v2085
        %v2087 = vmul.f32 %v2084, %v2086
        %v2088 = vadd.f32 %v2084, %v2087
        %vm2089 = vweird.f32 %v1970
        %vm2090 = vweird.f32 %v2084
        %vm2091 = vmor %vm2089, %vm2090
        %v2092 = vsel %vm2091, %v2084, %v2088
        %v2093 = vand.u32 2147483647, %v1970
        %vm2094 = vcmp.eq.f32.partialorder %v2093, 8.507059e+37
        %v2095 = vand.u32 %v1970, 2147483648
        %v2096 = vor.u32 1.1754944e-38, %v2095
        %v2097 = vsel %vm2094, %v2096, %v2092
        %v2098 = vmul.f32 1.0, %v2097
        %v2099 = vrcp.pop %v1971
        %v2100 = vmul.f32 %v1971, %v2099
        %v2101 = vsub.f32 1.0, %v2100
        %v2102 = vmul.f32 %v2099, %v2101
        %v2103 = vadd.f32 %v2099, %v2102
        %vm2104 = vweird.f32 %v1971
        %vm2105 = vweird.f32 %v2099
        %vm2106 = vmor %vm2104, %vm2105
        %v2107 = vsel %vm2106, %v2099, %v2103
        %v2108 = vand.u32 2147483647, %v1971
        %vm2109 = vcmp.eq.f32.partialorder %v2108, 8.507059e+37
        %v2110 = vand.u32 %v1971, 2147483648
        %v2111 = vor.u32 1.1754944e-38, %v2110
        %v2112 = vsel %vm2109, %v2111, %v2107
        %v2113 = vmul.f32 1.0, %v2112
        %v2114 = vrcp.pop %v1972
        %v2115 = vmul.f32 %v1972, %v2114
        %v2116 = vsub.f32 1.0, %v2115
        %v2117 = vmul.f32 %v2114, %v2116
        %v2118 = vadd.f32 %v2114, %v2117
        %vm2119 = vweird.f32 %v1972
        %vm2120 = vweird.f32 %v2114
        %vm2121 = vmor %vm2119, %vm2120
        %v2122 = vsel %vm2121, %v2114, %v2118
        %v2123 = vand.u32 2147483647, %v1972
        %vm2124 = vcmp.eq.f32.partialorder %v2123, 8.507059e+37
        %v2125 = vand.u32 %v1972, 2147483648
        %v2126 = vor.u32 1.1754944e-38, %v2125
        %v2127 = vsel %vm2124, %v2126, %v2122
        %v2128 = vmul.f32 1.0, %v2127
        %v2129 = vrcp.pop %v1973
        %v2130 = vmul.f32 %v1973, %v2129
        %v2131 = vsub.f32 1.0, %v2130
        %v2132 = vmul.f32 %v2129, %v2131
        %v2133 = vadd.f32 %v2129, %v2132
        %vm2134 = vweird.f32 %v1973
        %vm2135 = vweird.f32 %v2129
        %vm2136 = vmor %vm2134, %vm2135
        %v2137 = vsel %vm2136, %v2129, %v2133
        %v2138 = vand.u32 2147483647, %v1973
        %vm2139 = vcmp.eq.f32.partialorder %v2138, 8.507059e+37
        %v2140 = vand.u32 %v1973, 2147483648
        %v2141 = vor.u32 1.1754944e-38, %v2140
        %v2142 = vsel %vm2139, %v2141, %v2137
        %v2143 = vmul.f32 1.0, %v2142
        %v2144 = vrcp.pop %v1974
        %v2145 = vmul.f32 %v1974, %v2144
        %v2146 = vsub.f32 1.0, %v2145
        %v2147 = vmul.f32 %v2144, %v2146
        %v2148 = vadd.f32 %v2144, %v2147
        %vm2149 = vweird.f32 %v1974
        %vm2150 = vweird.f32 %v2144
        %vm2151 = vmor %vm2149, %vm2150
        %v2152 = vsel %vm2151, %v2144, %v2148
        %v2153 = vand.u32 2147483647, %v1974
        %vm2154 = vcmp.eq.f32.partialorder %v2153, 8.507059e+37
        %v2155 = vand.u32 %v1974, 2147483648
        %v2156 = vor.u32 1.1754944e-38, %v2155
        %v2157 = vsel %vm2154, %v2156, %v2152
        %v2158 = vmul.f32 1.0, %v2157
        %v2159 = vrcp.pop %v1975
        %v2160 = vmul.f32 %v1975, %v2159
        %v2161 = vsub.f32 1.0, %v2160
        %v2162 = vmul.f32 %v2159, %v2161
        %v2163 = vadd.f32 %v2159, %v2162
        %vm2164 = vweird.f32 %v1975
        %vm2165 = vweird.f32 %v2159
        %vm2166 = vmor %vm2164, %vm2165
        %v2167 = vsel %vm2166, %v2159, %v2163
        %v2168 = vand.u32 2147483647, %v1975
        %vm2169 = vcmp.eq.f32.partialorder %v2168, 8.507059e+37
        %v2170 = vand.u32 %v1975, 2147483648
        %v2171 = vor.u32 1.1754944e-38, %v2170
        %v2172 = vsel %vm2169, %v2171, %v2167
        %v2173 = vmul.f32 1.0, %v2172
        %v2174 = vrcp.pop %v1976
        %v2175 = vmul.f32 %v1976, %v2174
        %v2176 = vsub.f32 1.0, %v2175
        %v2177 = vmul.f32 %v2174, %v2176
        %v2178 = vadd.f32 %v2174, %v2177
        %vm2179 = vweird.f32 %v1976
        %vm2180 = vweird.f32 %v2174
        %vm2181 = vmor %vm2179, %vm2180
        %v2182 = vsel %vm2181, %v2174, %v2178
        %v2183 = vand.u32 2147483647, %v1976
        %vm2184 = vcmp.eq.f32.partialorder %v2183, 8.507059e+37
        %v2185 = vand.u32 %v1976, 2147483648
        %v2186 = vor.u32 1.1754944e-38, %v2185
        %v2187 = vsel %vm2184, %v2186, %v2182
        %v2188 = vmul.f32 1.0, %v2187
        %v2189 = vrcp.pop %v1977
        %v2190 = vmul.f32 %v1977, %v2189
        %v2191 = vsub.f32 1.0, %v2190
        %v2192 = vmul.f32 %v2189, %v2191
        %v2193 = vadd.f32 %v2189, %v2192
        %vm2194 = vweird.f32 %v1977
        %vm2195 = vweird.f32 %v2189
        %vm2196 = vmor %vm2194, %vm2195
        %v2197 = vsel %vm2196, %v2189, %v2193
        %v2198 = vand.u32 2147483647, %v1977
        %vm2199 = vcmp.eq.f32.partialorder %v2198, 8.507059e+37
        %v2200 = vand.u32 %v1977, 2147483648
        %v2201 = vor.u32 1.1754944e-38, %v2200
        %v2202 = vsel %vm2199, %v2201, %v2197
        %v2203 = vmul.f32 1.0, %v2202
        %v2204 = vrcp.pop %v1978
        %v2205 = vmul.f32 %v1978, %v2204
        %v2206 = vsub.f32 1.0, %v2205
        %v2207 = vmul.f32 %v2204, %v2206
        %v2208 = vadd.f32 %v2204, %v2207
        %vm2209 = vweird.f32 %v1978
        %vm2210 = vweird.f32 %v2204
        %vm2211 = vmor %vm2209, %vm2210
        %v2212 = vsel %vm2211, %v2204, %v2208
        %v2213 = vand.u32 2147483647, %v1978
        %vm2214 = vcmp.eq.f32.partialorder %v2213, 8.507059e+37
        %v2215 = vand.u32 %v1978, 2147483648
        %v2216 = vor.u32 1.1754944e-38, %v2215
        %v2217 = vsel %vm2214, %v2216, %v2212
        %v2218 = vmul.f32 1.0, %v2217
        %v2219 = vrcp.pop %v1979
        %v2220 = vmul.f32 %v1979, %v2219
        %v2221 = vsub.f32 1.0, %v2220
        %v2222 = vmul.f32 %v2219, %v2221
        %v2223 = vadd.f32 %v2219, %v2222
        %vm2224 = vweird.f32 %v1979
        %vm2225 = vweird.f32 %v2219
        %vm2226 = vmor %vm2224, %vm2225
        %v2227 = vsel %vm2226, %v2219, %v2223
        %v2228 = vand.u32 2147483647, %v1979
        %vm2229 = vcmp.eq.f32.partialorder %v2228, 8.507059e+37
        %v2230 = vand.u32 %v1979, 2147483648
        %v2231 = vor.u32 1.1754944e-38, %v2230
        %v2232 = vsel %vm2229, %v2231, %v2227
        %v2233 = vmul.f32 1.0, %v2232
        %v2234 = vrcp.pop %v1980
        %v2235 = vmul.f32 %v1980, %v2234
        %v2236 = vsub.f32 1.0, %v2235
        %v2237 = vmul.f32 %v2234, %v2236
        %v2238 = vadd.f32 %v2234, %v2237
        %vm2239 = vweird.f32 %v1980
        %vm2240 = vweird.f32 %v2234
        %vm2241 = vmor %vm2239, %vm2240
        %v2242 = vsel %vm2241, %v2234, %v2238
        %v2243 = vand.u32 2147483647, %v1980
        %vm2244 = vcmp.eq.f32.partialorder %v2243, 8.507059e+37
        %v2245 = vand.u32 %v1980, 2147483648
        %v2246 = vor.u32 1.1754944e-38, %v2245
        %v2247 = vsel %vm2244, %v2246, %v2242
        %v2248 = vmul.f32 1.0, %v2247
        %v2249 = vrcp.pop %v1981
        %v2250 = vmul.f32 %v1981, %v2249
        %v2251 = vsub.f32 1.0, %v2250
        %v2252 = vmul.f32 %v2249, %v2251
        %v2253 = vadd.f32 %v2249, %v2252
        %vm2254 = vweird.f32 %v1981
        %vm2255 = vweird.f32 %v2249
        %vm2256 = vmor %vm2254, %vm2255
        %v2257 = vsel %vm2256, %v2249, %v2253
        %v2258 = vand.u32 2147483647, %v1981
        %vm2259 = vcmp.eq.f32.partialorder %v2258, 8.507059e+37
        %v2260 = vand.u32 %v1981, 2147483648
        %v2261 = vor.u32 1.1754944e-38, %v2260
        %v2262 = vsel %vm2259, %v2261, %v2257
        %v2263 = vmul.f32 1.0, %v2262
        %v2264 = vrcp.pop %v1982
        %v2265 = vmul.f32 %v1982, %v2264
        %v2266 = vsub.f32 1.0, %v2265
        %v2267 = vmul.f32 %v2264, %v2266
        %v2268 = vadd.f32 %v2264, %v2267
        %vm2269 = vweird.f32 %v1982
        %vm2270 = vweird.f32 %v2264
        %vm2271 = vmor %vm2269, %vm2270
        %v2272 = vsel %vm2271, %v2264, %v2268
        %v2273 = vand.u32 2147483647, %v1982
        %vm2274 = vcmp.eq.f32.partialorder %v2273, 8.507059e+37
        %v2275 = vand.u32 %v1982, 2147483648
        %v2276 = vor.u32 1.1754944e-38, %v2275
        %v2277 = vsel %vm2274, %v2276, %v2272
        %v2278 = vmul.f32 1.0, %v2277
        %v2279 = vrcp.pop %v1983
        %v2280 = vmul.f32 %v1983, %v2279
        %v2281 = vsub.f32 1.0, %v2280
        %v2282 = vmul.f32 %v2279, %v2281
        %v2283 = vadd.f32 %v2279, %v2282
        %vm2284 = vweird.f32 %v1983
        %vm2285 = vweird.f32 %v2279
        %vm2286 = vmor %vm2284, %vm2285
        %v2287 = vsel %vm2286, %v2279, %v2283
        %v2288 = vand.u32 2147483647, %v1983
        %vm2289 = vcmp.eq.f32.partialorder %v2288, 8.507059e+37
        %v2290 = vand.u32 %v1983, 2147483648
        %v2291 = vor.u32 1.1754944e-38, %v2290
        %v2292 = vsel %vm2289, %v2291, %v2287
        %v2293 = vmul.f32 1.0, %v2292
        %v2294 = vrcp.pop %v1984
        %v2295 = vmul.f32 %v1984, %v2294
        %v2296 = vsub.f32 1.0, %v2295
        %v2297 = vmul.f32 %v2294, %v2296
        %v2298 = vadd.f32 %v2294, %v2297
        %vm2299 = vweird.f32 %v1984
        %vm2300 = vweird.f32 %v2294
        %vm2301 = vmor %vm2299, %vm2300
        %v2302 = vsel %vm2301, %v2294, %v2298
        %v2303 = vand.u32 2147483647, %v1984
        %vm2304 = vcmp.eq.f32.partialorder %v2303, 8.507059e+37
        %v2305 = vand.u32 %v1984, 2147483648
        %v2306 = vor.u32 1.1754944e-38, %v2305
        %v2307 = vsel %vm2304, %v2306, %v2302
        %v2308 = vmul.f32 1.0, %v2307
        %v2309 = vrcp.pop %v1985
        %v2310 = vmul.f32 %v1985, %v2309
        %v2311 = vsub.f32 1.0, %v2310
        %v2312 = vmul.f32 %v2309, %v2311
        %v2313 = vadd.f32 %v2309, %v2312
        %vm2314 = vweird.f32 %v1985
        %vm2315 = vweird.f32 %v2309
        %vm2316 = vmor %vm2314, %vm2315
        %v2317 = vsel %vm2316, %v2309, %v2313
        %v2318 = vand.u32 2147483647, %v1985
        %vm2319 = vcmp.eq.f32.partialorder %v2318, 8.507059e+37
        %v2320 = vand.u32 %v1985, 2147483648
        %v2321 = vor.u32 1.1754944e-38, %v2320
        %v2322 = vsel %vm2319, %v2321, %v2317
        %v2323 = vmul.f32 1.0, %v2322
        %v2324 = vrcp.pop %v1986
        %v2325 = vmul.f32 %v1986, %v2324
        %v2326 = vsub.f32 1.0, %v2325
        %v2327 = vmul.f32 %v2324, %v2326
        %v2328 = vadd.f32 %v2324, %v2327
        %vm2329 = vweird.f32 %v1986
        %vm2330 = vweird.f32 %v2324
        %vm2331 = vmor %vm2329, %vm2330
        %v2332 = vsel %vm2331, %v2324, %v2328
        %v2333 = vand.u32 2147483647, %v1986
        %vm2334 = vcmp.eq.f32.partialorder %v2333, 8.507059e+37
        %v2335 = vand.u32 %v1986, 2147483648
        %v2336 = vor.u32 1.1754944e-38, %v2335
        %v2337 = vsel %vm2334, %v2336, %v2332
        %v2338 = vmul.f32 1.0, %v2337
        %v2339 = vrcp.pop %v1987
        %v2340 = vmul.f32 %v1987, %v2339
        %v2341 = vsub.f32 1.0, %v2340
        %v2342 = vmul.f32 %v2339, %v2341
        %v2343 = vadd.f32 %v2339, %v2342
        %vm2344 = vweird.f32 %v1987
        %vm2345 = vweird.f32 %v2339
        %vm2346 = vmor %vm2344, %vm2345
        %v2347 = vsel %vm2346, %v2339, %v2343
        %v2348 = vand.u32 2147483647, %v1987
        %vm2349 = vcmp.eq.f32.partialorder %v2348, 8.507059e+37
        %v2350 = vand.u32 %v1987, 2147483648
        %v2351 = vor.u32 1.1754944e-38, %v2350
        %v2352 = vsel %vm2349, %v2351, %v2347
        %v2353 = vmul.f32 1.0, %v2352
        %v2354 = vrcp.pop %v1988
        %v2355 = vmul.f32 %v1988, %v2354
        %v2356 = vsub.f32 1.0, %v2355
        %v2357 = vmul.f32 %v2354, %v2356
        %v2358 = vadd.f32 %v2354, %v2357
        %vm2359 = vweird.f32 %v1988
        %vm2360 = vweird.f32 %v2354
        %vm2361 = vmor %vm2359, %vm2360
        %v2362 = vsel %vm2361, %v2354, %v2358
        %v2363 = vand.u32 2147483647, %v1988
        %vm2364 = vcmp.eq.f32.partialorder %v2363, 8.507059e+37
        %v2365 = vand.u32 %v1988, 2147483648
        %v2366 = vor.u32 1.1754944e-38, %v2365
        %v2367 = vsel %vm2364, %v2366, %v2362
        %v2368 = vmul.f32 1.0, %v2367
        %v2369 = vrcp.pop %v1989
        %v2370 = vmul.f32 %v1989, %v2369
        %v2371 = vsub.f32 1.0, %v2370
        %v2372 = vmul.f32 %v2369, %v2371
        %v2373 = vadd.f32 %v2369, %v2372
        %vm2374 = vweird.f32 %v1989
        %vm2375 = vweird.f32 %v2369
        %vm2376 = vmor %vm2374, %vm2375
        %v2377 = vsel %vm2376, %v2369, %v2373
        %v2378 = vand.u32 2147483647, %v1989
        %vm2379 = vcmp.eq.f32.partialorder %v2378, 8.507059e+37
        %v2380 = vand.u32 %v1989, 2147483648
        %v2381 = vor.u32 1.1754944e-38, %v2380
        %v2382 = vsel %vm2379, %v2381, %v2377
        %v2383 = vmul.f32 1.0, %v2382
        %v2384 = vrcp.pop %v1990
        %v2385 = vmul.f32 %v1990, %v2384
        %v2386 = vsub.f32 1.0, %v2385
        %v2387 = vmul.f32 %v2384, %v2386
        %v2388 = vadd.f32 %v2384, %v2387
        %vm2389 = vweird.f32 %v1990
        %vm2390 = vweird.f32 %v2384
        %vm2391 = vmor %vm2389, %vm2390
        %v2392 = vsel %vm2391, %v2384, %v2388
        %v2393 = vand.u32 2147483647, %v1990
        %vm2394 = vcmp.eq.f32.partialorder %v2393, 8.507059e+37
        %v2395 = vand.u32 %v1990, 2147483648
        %v2396 = vor.u32 1.1754944e-38, %v2395
        %v2397 = vsel %vm2394, %v2396, %v2392
        %v2398 = vmul.f32 1.0, %v2397
        %v2399 = vrcp.pop %v1991
        %v2400 = vmul.f32 %v1991, %v2399
        %v2401 = vsub.f32 1.0, %v2400
        %v2402 = vmul.f32 %v2399, %v2401
        %v2403 = vadd.f32 %v2399, %v2402
        %vm2404 = vweird.f32 %v1991
        %vm2405 = vweird.f32 %v2399
        %vm2406 = vmor %vm2404, %vm2405
        %v2407 = vsel %vm2406, %v2399, %v2403
        %v2408 = vand.u32 2147483647, %v1991
        %vm2409 = vcmp.eq.f32.partialorder %v2408, 8.507059e+37
        %v2410 = vand.u32 %v1991, 2147483648
        %v2411 = vor.u32 1.1754944e-38, %v2410
        %v2412 = vsel %vm2409, %v2411, %v2407
        %v2413 = vmul.f32 1.0, %v2412
        %v2414 = vrcp.pop %v1992
        %v2415 = vmul.f32 %v1992, %v2414
        %v2416 = vsub.f32 1.0, %v2415
        %v2417 = vmul.f32 %v2414, %v2416
        %v2418 = vadd.f32 %v2414, %v2417
        %vm2419 = vweird.f32 %v1992
        %vm2420 = vweird.f32 %v2414
        %vm2421 = vmor %vm2419, %vm2420
        %v2422 = vsel %vm2421, %v2414, %v2418
        %v2423 = vand.u32 2147483647, %v1992
        %vm2424 = vcmp.eq.f32.partialorder %v2423, 8.507059e+37
        %v2425 = vand.u32 %v1992, 2147483648
        %v2426 = vor.u32 1.1754944e-38, %v2425
        %v2427 = vsel %vm2424, %v2426, %v2422
        %v2428 = vmul.f32 1.0, %v2427
        %v2429 = vrcp.pop %v1993
        %v2430 = vmul.f32 %v1993, %v2429
        %v2431 = vsub.f32 1.0, %v2430
        %v2432 = vmul.f32 %v2429, %v2431
        %v2433 = vadd.f32 %v2429, %v2432
        %vm2434 = vweird.f32 %v1993
        %vm2435 = vweird.f32 %v2429
        %vm2436 = vmor %vm2434, %vm2435
        %v2437 = vsel %vm2436, %v2429, %v2433
        %v2438 = vand.u32 2147483647, %v1993
        %vm2439 = vcmp.eq.f32.partialorder %v2438, 8.507059e+37
        %v2440 = vand.u32 %v1993, 2147483648
        %v2441 = vor.u32 1.1754944e-38, %v2440
        %v2442 = vsel %vm2439, %v2441, %v2437
        %v2443 = vmul.f32 1.0, %v2442
        %v2444 = vrcp.pop %v1994
        %v2445 = vmul.f32 %v1994, %v2444
        %v2446 = vsub.f32 1.0, %v2445
        %v2447 = vmul.f32 %v2444, %v2446
        %v2448 = vadd.f32 %v2444, %v2447
        %vm2449 = vweird.f32 %v1994
        %vm2450 = vweird.f32 %v2444
        %vm2451 = vmor %vm2449, %vm2450
        %v2452 = vsel %vm2451, %v2444, %v2448
        %v2453 = vand.u32 2147483647, %v1994
        %vm2454 = vcmp.eq.f32.partialorder %v2453, 8.507059e+37
        %v2455 = vand.u32 %v1994, 2147483648
        %v2456 = vor.u32 1.1754944e-38, %v2455
        %v2457 = vsel %vm2454, %v2456, %v2452
        %v2458 = vmul.f32 1.0, %v2457
        %v2459 = vrcp.pop %v1995
        %v2460 = vmul.f32 %v1995, %v2459
        %v2461 = vsub.f32 1.0, %v2460
        %v2462 = vmul.f32 %v2459, %v2461
        %v2463 = vadd.f32 %v2459, %v2462
        %vm2464 = vweird.f32 %v1995
        %vm2465 = vweird.f32 %v2459
        %vm2466 = vmor %vm2464, %vm2465
        %v2467 = vsel %vm2466, %v2459, %v2463
        %v2468 = vand.u32 2147483647, %v1995
        %vm2469 = vcmp.eq.f32.partialorder %v2468, 8.507059e+37
        %v2470 = vand.u32 %v1995, 2147483648
        %v2471 = vor.u32 1.1754944e-38, %v2470
        %v2472 = vsel %vm2469, %v2471, %v2467
        %v2473 = vmul.f32 1.0, %v2472
        %v2474 = vrcp.pop %v1996
        %v2475 = vmul.f32 %v1996, %v2474
        %v2476 = vsub.f32 1.0, %v2475
        %v2477 = vmul.f32 %v2474, %v2476
        %v2478 = vadd.f32 %v2474, %v2477
        %vm2479 = vweird.f32 %v1996
        %vm2480 = vweird.f32 %v2474
        %vm2481 = vmor %vm2479, %vm2480
        %v2482 = vsel %vm2481, %v2474, %v2478
        %v2483 = vand.u32 2147483647, %v1996
        %vm2484 = vcmp.eq.f32.partialorder %v2483, 8.507059e+37
        %v2485 = vand.u32 %v1996, 2147483648
        %v2486 = vor.u32 1.1754944e-38, %v2485
        %v2487 = vsel %vm2484, %v2486, %v2482
        %v2488 = vmul.f32 1.0, %v2487
        %v2489 = vrcp.pop %v1997
        %v2490 = vmul.f32 %v1997, %v2489
        %v2491 = vsub.f32 1.0, %v2490
        %v2492 = vmul.f32 %v2489, %v2491
        %v2493 = vadd.f32 %v2489, %v2492
        %vm2494 = vweird.f32 %v1997
        %vm2495 = vweird.f32 %v2489
        %vm2496 = vmor %vm2494, %vm2495
        %v2497 = vsel %vm2496, %v2489, %v2493
        %v2498 = vand.u32 2147483647, %v1997
        %vm2499 = vcmp.eq.f32.partialorder %v2498, 8.507059e+37
        %v2500 = vand.u32 %v1997, 2147483648
        %v2501 = vor.u32 1.1754944e-38, %v2500
        %v2502 = vsel %vm2499, %v2501, %v2497
        %v2503 = vmul.f32 1.0, %v2502
        %v2504 = vrcp.pop %v1998
        %v2505 = vmul.f32 %v1998, %v2504
        %v2506 = vsub.f32 1.0, %v2505
        %v2507 = vmul.f32 %v2504, %v2506
        %v2508 = vadd.f32 %v2504, %v2507
        %vm2509 = vweird.f32 %v1998
        %vm2510 = vweird.f32 %v2504
        %vm2511 = vmor %vm2509, %vm2510
        %v2512 = vsel %vm2511, %v2504, %v2508
        %v2513 = vand.u32 2147483647, %v1998
        %vm2514 = vcmp.eq.f32.partialorder %v2513, 8.507059e+37
        %v2515 = vand.u32 %v1998, 2147483648
        %v2516 = vor.u32 1.1754944e-38, %v2515
        %v2517 = vsel %vm2514, %v2516, %v2512
        %v2518 = vmul.f32 1.0, %v2517
        %v2519 = vrcp.pop %v1999
        %v2520 = vmul.f32 %v1999, %v2519
        %v2521 = vsub.f32 1.0, %v2520
        %v2522 = vmul.f32 %v2519, %v2521
        %v2523 = vadd.f32 %v2519, %v2522
        %vm2524 = vweird.f32 %v1999
        %vm2525 = vweird.f32 %v2519
        %vm2526 = vmor %vm2524, %vm2525
        %v2527 = vsel %vm2526, %v2519, %v2523
        %v2528 = vand.u32 2147483647, %v1999
        %vm2529 = vcmp.eq.f32.partialorder %v2528, 8.507059e+37
        %v2530 = vand.u32 %v1999, 2147483648
        %v2531 = vor.u32 1.1754944e-38, %v2530
        %v2532 = vsel %vm2529, %v2531, %v2527
        %v2533 = vmul.f32 1.0, %v2532
        %v2534 = vrcp.pop %v2000
        %v2535 = vmul.f32 %v2000, %v2534
        %v2536 = vsub.f32 1.0, %v2535
        %v2537 = vmul.f32 %v2534, %v2536
        %v2538 = vadd.f32 %v2534, %v2537
        %vm2539 = vweird.f32 %v2000
        %vm2540 = vweird.f32 %v2534
        %vm2541 = vmor %vm2539, %vm2540
        %v2542 = vsel %vm2541, %v2534, %v2538
        %v2543 = vand.u32 2147483647, %v2000
        %vm2544 = vcmp.eq.f32.partialorder %v2543, 8.507059e+37
        %v2545 = vand.u32 %v2000, 2147483648
        %v2546 = vor.u32 1.1754944e-38, %v2545
        %v2547 = vsel %vm2544, %v2546, %v2542
        %v2548 = vmul.f32 1.0, %v2547
        %v2549 = vrcp.pop %v2001
        %v2550 = vmul.f32 %v2001, %v2549
        %v2551 = vsub.f32 1.0, %v2550
        %v2552 = vmul.f32 %v2549, %v2551
        %v2553 = vadd.f32 %v2549, %v2552
        %vm2554 = vweird.f32 %v2001
        %vm2555 = vweird.f32 %v2549
        %vm2556 = vmor %vm2554, %vm2555
        %v2557 = vsel %vm2556, %v2549, %v2553
        %v2558 = vand.u32 2147483647, %v2001
        %vm2559 = vcmp.eq.f32.partialorder %v2558, 8.507059e+37
        %v2560 = vand.u32 %v2001, 2147483648
        %v2561 = vor.u32 1.1754944e-38, %v2560
        %v2562 = vsel %vm2559, %v2561, %v2557
        %v2563 = vmul.f32 1.0, %v2562
        %v2564 = vrcp.pop %v2002
        %v2565 = vmul.f32 %v2002, %v2564
        %v2566 = vsub.f32 1.0, %v2565
        %v2567 = vmul.f32 %v2564, %v2566
        %v2568 = vadd.f32 %v2564, %v2567
        %vm2569 = vweird.f32 %v2002
        %vm2570 = vweird.f32 %v2564
        %vm2571 = vmor %vm2569, %vm2570
        %v2572 = vsel %vm2571, %v2564, %v2568
        %v2573 = vand.u32 2147483647, %v2002
        %vm2574 = vcmp.eq.f32.partialorder %v2573, 8.507059e+37
        %v2575 = vand.u32 %v2002, 2147483648
        %v2576 = vor.u32 1.1754944e-38, %v2575
        %v2577 = vsel %vm2574, %v2576, %v2572
        %v2578 = vmul.f32 1.0, %v2577
        %v2579 = vrcp.pop %v2003
        %v2580 = vmul.f32 %v2003, %v2579
        %v2581 = vsub.f32 1.0, %v2580
        %v2582 = vmul.f32 %v2579, %v2581
        %v2583 = vadd.f32 %v2579, %v2582
        %vm2584 = vweird.f32 %v2003
        %vm2585 = vweird.f32 %v2579
        %vm2586 = vmor %vm2584, %vm2585
        %v2587 = vsel %vm2586, %v2579, %v2583
        %v2588 = vand.u32 2147483647, %v2003
        %vm2589 = vcmp.eq.f32.partialorder %v2588, 8.507059e+37
        %v2590 = vand.u32 %v2003, 2147483648
        %v2591 = vor.u32 1.1754944e-38, %v2590
        %v2592 = vsel %vm2589, %v2591, %v2587
        %v2593 = vmul.f32 1.0, %v2592
        %v2594 = vrcp.pop %v2004
        %v2595 = vmul.f32 %v2004, %v2594
        %v2596 = vsub.f32 1.0, %v2595
        %v2597 = vmul.f32 %v2594, %v2596
        %v2598 = vadd.f32 %v2594, %v2597
        %vm2599 = vweird.f32 %v2004
        %vm2600 = vweird.f32 %v2594
        %vm2601 = vmor %vm2599, %vm2600
        %v2602 = vsel %vm2601, %v2594, %v2598
        %v2603 = vand.u32 2147483647, %v2004
        %vm2604 = vcmp.eq.f32.partialorder %v2603, 8.507059e+37
        %v2605 = vand.u32 %v2004, 2147483648
        %v2606 = vor.u32 1.1754944e-38, %v2605
        %v2607 = vsel %vm2604, %v2606, %v2602
        %v2608 = vmul.f32 1.0, %v2607
        %v2609 = vrcp.pop %v2005
        %v2610 = vmul.f32 %v2005, %v2609
        %v2611 = vsub.f32 1.0, %v2610
        %v2612 = vmul.f32 %v2609, %v2611
        %v2613 = vadd.f32 %v2609, %v2612
        %vm2614 = vweird.f32 %v2005
        %vm2615 = vweird.f32 %v2609
        %vm2616 = vmor %vm2614, %vm2615
        %v2617 = vsel %vm2616, %v2609, %v2613
        %v2618 = vand.u32 2147483647, %v2005
        %vm2619 = vcmp.eq.f32.partialorder %v2618, 8.507059e+37
        %v2620 = vand.u32 %v2005, 2147483648
        %v2621 = vor.u32 1.1754944e-38, %v2620
        %v2622 = vsel %vm2619, %v2621, %v2617
        %v2623 = vmul.f32 1.0, %v2622
        %v2624 = vrcp.pop %v2006
        %v2625 = vmul.f32 %v2006, %v2624
        %v2626 = vsub.f32 1.0, %v2625
        %v2627 = vmul.f32 %v2624, %v2626
        %v2628 = vadd.f32 %v2624, %v2627
        %vm2629 = vweird.f32 %v2006
        %vm2630 = vweird.f32 %v2624
        %vm2631 = vmor %vm2629, %vm2630
        %v2632 = vsel %vm2631, %v2624, %v2628
        %v2633 = vand.u32 2147483647, %v2006
        %vm2634 = vcmp.eq.f32.partialorder %v2633, 8.507059e+37
        %v2635 = vand.u32 %v2006, 2147483648
        %v2636 = vor.u32 1.1754944e-38, %v2635
        %v2637 = vsel %vm2634, %v2636, %v2632
        %v2638 = vmul.f32 1.0, %v2637
        %v2639 = vrcp.pop %v2007
        %v2640 = vmul.f32 %v2007, %v2639
        %v2641 = vsub.f32 1.0, %v2640
        %v2642 = vmul.f32 %v2639, %v2641
        %v2643 = vadd.f32 %v2639, %v2642
        %vm2644 = vweird.f32 %v2007
        %vm2645 = vweird.f32 %v2639
        %vm2646 = vmor %vm2644, %vm2645
        %v2647 = vsel %vm2646, %v2639, %v2643
        %v2648 = vand.u32 2147483647, %v2007
        %vm2649 = vcmp.eq.f32.partialorder %v2648, 8.507059e+37
        %v2650 = vand.u32 %v2007, 2147483648
        %v2651 = vor.u32 1.1754944e-38, %v2650
        %v2652 = vsel %vm2649, %v2651, %v2647
        %v2653 = vmul.f32 1.0, %v2652
        %v2654 = vrcp.pop %v2008
        %v2655 = vmul.f32 %v2008, %v2654
        %v2656 = vsub.f32 1.0, %v2655
        %v2657 = vmul.f32 %v2654, %v2656
        %v2658 = vadd.f32 %v2654, %v2657
        %vm2659 = vweird.f32 %v2008
        %vm2660 = vweird.f32 %v2654
        %vm2661 = vmor %vm2659, %vm2660
        %v2662 = vsel %vm2661, %v2654, %v2658
        %v2663 = vand.u32 2147483647, %v2008
        %vm2664 = vcmp.eq.f32.partialorder %v2663, 8.507059e+37
        %v2665 = vand.u32 %v2008, 2147483648
        %v2666 = vor.u32 1.1754944e-38, %v2665
        %v2667 = vsel %vm2664, %v2666, %v2662
        %v2668 = vmul.f32 1.0, %v2667
        %v2669 = vrcp.pop %v2009
        %v2670 = vmul.f32 %v2009, %v2669
        %v2671 = vsub.f32 1.0, %v2670
        %v2672 = vmul.f32 %v2669, %v2671
        %v2673 = vadd.f32 %v2669, %v2672
        %vm2674 = vweird.f32 %v2009
        %vm2675 = vweird.f32 %v2669
        %vm2676 = vmor %vm2674, %vm2675
        %v2677 = vsel %vm2676, %v2669, %v2673
        %v2678 = vand.u32 2147483647, %v2009
        %vm2679 = vcmp.eq.f32.partialorder %v2678, 8.507059e+37
        %v2680 = vand.u32 %v2009, 2147483648
        %v2681 = vor.u32 1.1754944e-38, %v2680
        %v2682 = vsel %vm2679, %v2681, %v2677
        %v2683 = vmul.f32 1.0, %v2682
        %v2684 = vrcp.pop %v2010
        %v2685 = vmul.f32 %v2010, %v2684
        %v2686 = vsub.f32 1.0, %v2685
        %v2687 = vmul.f32 %v2684, %v2686
        %v2688 = vadd.f32 %v2684, %v2687
        %vm2689 = vweird.f32 %v2010
        %vm2690 = vweird.f32 %v2684
        %vm2691 = vmor %vm2689, %vm2690
        %v2692 = vsel %vm2691, %v2684, %v2688
        %v2693 = vand.u32 2147483647, %v2010
        %vm2694 = vcmp.eq.f32.partialorder %v2693, 8.507059e+37
        %v2695 = vand.u32 %v2010, 2147483648
        %v2696 = vor.u32 1.1754944e-38, %v2695
        %v2697 = vsel %vm2694, %v2696, %v2692
        %v2698 = vmul.f32 1.0, %v2697
        %v2699 = vrcp.pop %v2011
        %v2700 = vmul.f32 %v2011, %v2699
        %v2701 = vsub.f32 1.0, %v2700
        %v2702 = vmul.f32 %v2699, %v2701
        %v2703 = vadd.f32 %v2699, %v2702
        %vm2704 = vweird.f32 %v2011
        %vm2705 = vweird.f32 %v2699
        %vm2706 = vmor %vm2704, %vm2705
        %v2707 = vsel %vm2706, %v2699, %v2703
        %v2708 = vand.u32 2147483647, %v2011
        %vm2709 = vcmp.eq.f32.partialorder %v2708, 8.507059e+37
        %v2710 = vand.u32 %v2011, 2147483648
        %v2711 = vor.u32 1.1754944e-38, %v2710
        %v2712 = vsel %vm2709, %v2711, %v2707
        %v2713 = vmul.f32 1.0, %v2712
        %v2714 = vrcp.pop %v2012
        %v2715 = vmul.f32 %v2012, %v2714
        %v2716 = vsub.f32 1.0, %v2715
        %v2717 = vmul.f32 %v2714, %v2716
        %v2718 = vadd.f32 %v2714, %v2717
        %vm2719 = vweird.f32 %v2012
        %vm2720 = vweird.f32 %v2714
        %vm2721 = vmor %vm2719, %vm2720
        %v2722 = vsel %vm2721, %v2714, %v2718
        %v2723 = vand.u32 2147483647, %v2012
        %vm2724 = vcmp.eq.f32.partialorder %v2723, 8.507059e+37
        %v2725 = vand.u32 %v2012, 2147483648
        %v2726 = vor.u32 1.1754944e-38, %v2725
        %v2727 = vsel %vm2724, %v2726, %v2722
        %v2728 = vmul.f32 1.0, %v2727
        %v2729 = vrcp.pop %v2013
        %v2730 = vmul.f32 %v2013, %v2729
        %v2731 = vsub.f32 1.0, %v2730
        %v2732 = vmul.f32 %v2729, %v2731
        %v2733 = vadd.f32 %v2729, %v2732
        %vm2734 = vweird.f32 %v2013
        %vm2735 = vweird.f32 %v2729
        %vm2736 = vmor %vm2734, %vm2735
        %v2737 = vsel %vm2736, %v2729, %v2733
        %v2738 = vand.u32 2147483647, %v2013
        %vm2739 = vcmp.eq.f32.partialorder %v2738, 8.507059e+37
        %v2740 = vand.u32 %v2013, 2147483648
        %v2741 = vor.u32 1.1754944e-38, %v2740
        %v2742 = vsel %vm2739, %v2741, %v2737
        %v2743 = vmul.f32 1.0, %v2742
        %v2744 = vrcp.pop %v2014
        %v2745 = vmul.f32 %v2014, %v2744
        %v2746 = vsub.f32 1.0, %v2745
        %v2747 = vmul.f32 %v2744, %v2746
        %v2748 = vadd.f32 %v2744, %v2747
        %vm2749 = vweird.f32 %v2014
        %vm2750 = vweird.f32 %v2744
        %vm2751 = vmor %vm2749, %vm2750
        %v2752 = vsel %vm2751, %v2744, %v2748
        %v2753 = vand.u32 2147483647, %v2014
        %vm2754 = vcmp.eq.f32.partialorder %v2753, 8.507059e+37
        %v2755 = vand.u32 %v2014, 2147483648
        %v2756 = vor.u32 1.1754944e-38, %v2755
        %v2757 = vsel %vm2754, %v2756, %v2752
        %v2758 = vmul.f32 1.0, %v2757
        %v2759 = vrcp.pop %v2015
        %v2760 = vmul.f32 %v2015, %v2759
        %v2761 = vsub.f32 1.0, %v2760
        %v2762 = vmul.f32 %v2759, %v2761
        %v2763 = vadd.f32 %v2759, %v2762
        %vm2764 = vweird.f32 %v2015
        %vm2765 = vweird.f32 %v2759
        %vm2766 = vmor %vm2764, %vm2765
        %v2767 = vsel %vm2766, %v2759, %v2763
        %v2768 = vand.u32 2147483647, %v2015
        %vm2769 = vcmp.eq.f32.partialorder %v2768, 8.507059e+37
        %v2770 = vand.u32 %v2015, 2147483648
        %v2771 = vor.u32 1.1754944e-38, %v2770
        %v2772 = vsel %vm2769, %v2771, %v2767
        %v2773 = vmul.f32 1.0, %v2772
        %v2774 = vrcp.pop %v2016
        %v2775 = vmul.f32 %v2016, %v2774
        %v2776 = vsub.f32 1.0, %v2775
        %v2777 = vmul.f32 %v2774, %v2776
        %v2778 = vadd.f32 %v2774, %v2777
        %vm2779 = vweird.f32 %v2016
        %vm2780 = vweird.f32 %v2774
        %vm2781 = vmor %vm2779, %vm2780
        %v2782 = vsel %vm2781, %v2774, %v2778
        %v2783 = vand.u32 2147483647, %v2016
        %vm2784 = vcmp.eq.f32.partialorder %v2783, 8.507059e+37
        %v2785 = vand.u32 %v2016, 2147483648
        %v2786 = vor.u32 1.1754944e-38, %v2785
        %v2787 = vsel %vm2784, %v2786, %v2782
        %v2788 = vmul.f32 1.0, %v2787
        %v2789 = vrcp.pop %v2017
        %v2790 = vmul.f32 %v2017, %v2789
        %v2791 = vsub.f32 1.0, %v2790
        %v2792 = vmul.f32 %v2789, %v2791
        %v2793 = vadd.f32 %v2789, %v2792
        %vm2794 = vweird.f32 %v2017
        %vm2795 = vweird.f32 %v2789
        %vm2796 = vmor %vm2794, %vm2795
        %v2797 = vsel %vm2796, %v2789, %v2793
        %v2798 = vand.u32 2147483647, %v2017
        %vm2799 = vcmp.eq.f32.partialorder %v2798, 8.507059e+37
        %v2800 = vand.u32 %v2017, 2147483648
        %v2801 = vor.u32 1.1754944e-38, %v2800
        %v2802 = vsel %vm2799, %v2801, %v2797
        %v2803 = vmul.f32 1.0, %v2802
        %v2804 = vrcp.pop %v2018
        %v2805 = vmul.f32 %v2018, %v2804
        %v2806 = vsub.f32 1.0, %v2805
        %v2807 = vmul.f32 %v2804, %v2806
        %v2808 = vadd.f32 %v2804, %v2807
        %vm2809 = vweird.f32 %v2018
        %vm2810 = vweird.f32 %v2804
        %vm2811 = vmor %vm2809, %vm2810
        %v2812 = vsel %vm2811, %v2804, %v2808
        %v2813 = vand.u32 2147483647, %v2018
        %vm2814 = vcmp.eq.f32.partialorder %v2813, 8.507059e+37
        %v2815 = vand.u32 %v2018, 2147483648
        %v2816 = vor.u32 1.1754944e-38, %v2815
        %v2817 = vsel %vm2814, %v2816, %v2812
        %v2818 = vmul.f32 1.0, %v2817
        %v2819 = vrcp.pop %v2019
        %v2820 = vmul.f32 %v2019, %v2819
        %v2821 = vsub.f32 1.0, %v2820
        %v2822 = vmul.f32 %v2819, %v2821
        %v2823 = vadd.f32 %v2819, %v2822
        %vm2824 = vweird.f32 %v2019
        %vm2825 = vweird.f32 %v2819
        %vm2826 = vmor %vm2824, %vm2825
        %v2827 = vsel %vm2826, %v2819, %v2823
        %v2828 = vand.u32 2147483647, %v2019
        %vm2829 = vcmp.eq.f32.partialorder %v2828, 8.507059e+37
        %v2830 = vand.u32 %v2019, 2147483648
        %v2831 = vor.u32 1.1754944e-38, %v2830
        %v2832 = vsel %vm2829, %v2831, %v2827
        %v2833 = vmul.f32 1.0, %v2832
        %v2834 = vrcp.pop %v2020
        %v2835 = vmul.f32 %v2020, %v2834
        %v2836 = vsub.f32 1.0, %v2835
        %v2837 = vmul.f32 %v2834, %v2836
        %v2838 = vadd.f32 %v2834, %v2837
        %vm2839 = vweird.f32 %v2020
        %vm2840 = vweird.f32 %v2834
        %vm2841 = vmor %vm2839, %vm2840
        %v2842 = vsel %vm2841, %v2834, %v2838
        %v2843 = vand.u32 2147483647, %v2020
        %vm2844 = vcmp.eq.f32.partialorder %v2843, 8.507059e+37
        %v2845 = vand.u32 %v2020, 2147483648
        %v2846 = vor.u32 1.1754944e-38, %v2845
        %v2847 = vsel %vm2844, %v2846, %v2842
        %v2848 = vmul.f32 1.0, %v2847
        %v2849 = vrcp.pop %v2021
        %v2850 = vmul.f32 %v2021, %v2849
        %v2851 = vsub.f32 1.0, %v2850
        %v2852 = vmul.f32 %v2849, %v2851
        %v2853 = vadd.f32 %v2849, %v2852
        %vm2854 = vweird.f32 %v2021
        %vm2855 = vweird.f32 %v2849
        %vm2856 = vmor %vm2854, %vm2855
        %v2857 = vsel %vm2856, %v2849, %v2853
        %v2858 = vand.u32 2147483647, %v2021
        %vm2859 = vcmp.eq.f32.partialorder %v2858, 8.507059e+37
        %v2860 = vand.u32 %v2021, 2147483648
        %v2861 = vor.u32 1.1754944e-38, %v2860
        %v2862 = vsel %vm2859, %v2861, %v2857
        %v2863 = vmul.f32 1.0, %v2862
        %v2864 = vrcp.pop %v2022
        %v2865 = vmul.f32 %v2022, %v2864
        %v2866 = vsub.f32 1.0, %v2865
        %v2867 = vmul.f32 %v2864, %v2866
        %v2868 = vadd.f32 %v2864, %v2867
        %vm2869 = vweird.f32 %v2022
        %vm2870 = vweird.f32 %v2864
        %vm2871 = vmor %vm2869, %vm2870
        %v2872 = vsel %vm2871, %v2864, %v2868
        %v2873 = vand.u32 2147483647, %v2022
        %vm2874 = vcmp.eq.f32.partialorder %v2873, 8.507059e+37
        %v2875 = vand.u32 %v2022, 2147483648
        %v2876 = vor.u32 1.1754944e-38, %v2875
        %v2877 = vsel %vm2874, %v2876, %v2872
        %v2878 = vmul.f32 1.0, %v2877
        %v2879 = vrcp.pop %v2023
        %v2880 = vmul.f32 %v2023, %v2879
        %v2881 = vsub.f32 1.0, %v2880
        %v2882 = vmul.f32 %v2879, %v2881
        %v2883 = vadd.f32 %v2879, %v2882
        %vm2884 = vweird.f32 %v2023
        %vm2885 = vweird.f32 %v2879
        %vm2886 = vmor %vm2884, %vm2885
        %v2887 = vsel %vm2886, %v2879, %v2883
        %v2888 = vand.u32 2147483647, %v2023
        %vm2889 = vcmp.eq.f32.partialorder %v2888, 8.507059e+37
        %v2890 = vand.u32 %v2023, 2147483648
        %v2891 = vor.u32 1.1754944e-38, %v2890
        %v2892 = vsel %vm2889, %v2891, %v2887
        %v2893 = vmul.f32 1.0, %v2892
        %v2894 = vrcp.pop %v2024
        %v2895 = vmul.f32 %v2024, %v2894
        %v2896 = vsub.f32 1.0, %v2895
        %v2897 = vmul.f32 %v2894, %v2896
        %v2898 = vadd.f32 %v2894, %v2897
        %vm2899 = vweird.f32 %v2024
        %vm2900 = vweird.f32 %v2894
        %vm2901 = vmor %vm2899, %vm2900
        %v2902 = vsel %vm2901, %v2894, %v2898
        %v2903 = vand.u32 2147483647, %v2024
        %vm2904 = vcmp.eq.f32.partialorder %v2903, 8.507059e+37
        %v2905 = vand.u32 %v2024, 2147483648
        %v2906 = vor.u32 1.1754944e-38, %v2905
        %v2907 = vsel %vm2904, %v2906, %v2902
        %v2908 = vmul.f32 1.0, %v2907
        %v2909 = vrcp.pop %v2025
        %v2910 = vmul.f32 %v2025, %v2909
        %v2911 = vsub.f32 1.0, %v2910
        %v2912 = vmul.f32 %v2909, %v2911
        %v2913 = vadd.f32 %v2909, %v2912
        %vm2914 = vweird.f32 %v2025
        %vm2915 = vweird.f32 %v2909
        %vm2916 = vmor %vm2914, %vm2915
        %v2917 = vsel %vm2916, %v2909, %v2913
        %v2918 = vand.u32 2147483647, %v2025
        %vm2919 = vcmp.eq.f32.partialorder %v2918, 8.507059e+37
        %v2920 = vand.u32 %v2025, 2147483648
        %v2921 = vor.u32 1.1754944e-38, %v2920
        %v2922 = vsel %vm2919, %v2921, %v2917
        %v2923 = vmul.f32 1.0, %v2922
        %v2924 = vrcp.pop %v2026
        %v2925 = vmul.f32 %v2026, %v2924
        %v2926 = vsub.f32 1.0, %v2925
        %v2927 = vmul.f32 %v2924, %v2926
        %v2928 = vadd.f32 %v2924, %v2927
        %vm2929 = vweird.f32 %v2026
        %vm2930 = vweird.f32 %v2924
        %vm2931 = vmor %vm2929, %vm2930
        %v2932 = vsel %vm2931, %v2924, %v2928
        %v2933 = vand.u32 2147483647, %v2026
        %vm2934 = vcmp.eq.f32.partialorder %v2933, 8.507059e+37
        %v2935 = vand.u32 %v2026, 2147483648
        %v2936 = vor.u32 1.1754944e-38, %v2935
        %v2937 = vsel %vm2934, %v2936, %v2932
        %v2938 = vmul.f32 1.0, %v2937
        %v2939 = vrcp.pop %v2027
        %v2940 = vmul.f32 %v2027, %v2939
        %v2941 = vsub.f32 1.0, %v2940
        %v2942 = vmul.f32 %v2939, %v2941
        %v2943 = vadd.f32 %v2939, %v2942
        %vm2944 = vweird.f32 %v2027
        %vm2945 = vweird.f32 %v2939
        %vm2946 = vmor %vm2944, %vm2945
        %v2947 = vsel %vm2946, %v2939, %v2943
        %v2948 = vand.u32 2147483647, %v2027
        %vm2949 = vcmp.eq.f32.partialorder %v2948, 8.507059e+37
        %v2950 = vand.u32 %v2027, 2147483648
        %v2951 = vor.u32 1.1754944e-38, %v2950
        %v2952 = vsel %vm2949, %v2951, %v2947
        %v2953 = vmul.f32 1.0, %v2952
        %v2954 = vrcp.pop %v2028
        %v2955 = vmul.f32 %v2028, %v2954
        %v2956 = vsub.f32 1.0, %v2955
        %v2957 = vmul.f32 %v2954, %v2956
        %v2958 = vadd.f32 %v2954, %v2957
        %vm2959 = vweird.f32 %v2028
        %vm2960 = vweird.f32 %v2954
        %vm2961 = vmor %vm2959, %vm2960
        %v2962 = vsel %vm2961, %v2954, %v2958
        %v2963 = vand.u32 2147483647, %v2028
        %vm2964 = vcmp.eq.f32.partialorder %v2963, 8.507059e+37
        %v2965 = vand.u32 %v2028, 2147483648
        %v2966 = vor.u32 1.1754944e-38, %v2965
        %v2967 = vsel %vm2964, %v2966, %v2962
        %v2968 = vmul.f32 1.0, %v2967
        %v2969 = vrcp.pop %v2029
        %v2970 = vmul.f32 %v2029, %v2969
        %v2971 = vsub.f32 1.0, %v2970
        %v2972 = vmul.f32 %v2969, %v2971
        %v2973 = vadd.f32 %v2969, %v2972
        %vm2974 = vweird.f32 %v2029
        %vm2975 = vweird.f32 %v2969
        %vm2976 = vmor %vm2974, %vm2975
        %v2977 = vsel %vm2976, %v2969, %v2973
        %v2978 = vand.u32 2147483647, %v2029
        %vm2979 = vcmp.eq.f32.partialorder %v2978, 8.507059e+37
        %v2980 = vand.u32 %v2029, 2147483648
        %v2981 = vor.u32 1.1754944e-38, %v2980
        %v2982 = vsel %vm2979, %v2981, %v2977
        %v2983 = vmul.f32 1.0, %v2982
        %v2984 = vrcp.pop %v2030
        %v2985 = vmul.f32 %v2030, %v2984
        %v2986 = vsub.f32 1.0, %v2985
        %v2987 = vmul.f32 %v2984, %v2986
        %v2988 = vadd.f32 %v2984, %v2987
        %vm2989 = vweird.f32 %v2030
        %vm2990 = vweird.f32 %v2984
        %vm2991 = vmor %vm2989, %vm2990
        %v2992 = vsel %vm2991, %v2984, %v2988
        %v2993 = vand.u32 2147483647, %v2030
        %vm2994 = vcmp.eq.f32.partialorder %v2993, 8.507059e+37
        %v2995 = vand.u32 %v2030, 2147483648
        %v2996 = vor.u32 1.1754944e-38, %v2995
        %v2997 = vsel %vm2994, %v2996, %v2992
        %v2998 = vmul.f32 1.0, %v2997
        %v2999 = vrcp.pop %v2031
        %v3000 = vmul.f32 %v2031, %v2999
        %v3001 = vsub.f32 1.0, %v3000
        %v3002 = vmul.f32 %v2999, %v3001
        %v3003 = vadd.f32 %v2999, %v3002
        %vm3004 = vweird.f32 %v2031
        %vm3005 = vweird.f32 %v2999
        %vm3006 = vmor %vm3004, %vm3005
        %v3007 = vsel %vm3006, %v2999, %v3003
        %v3008 = vand.u32 2147483647, %v2031
        %vm3009 = vcmp.eq.f32.partialorder %v3008, 8.507059e+37
        %v3010 = vand.u32 %v2031, 2147483648
        %v3011 = vor.u32 1.1754944e-38, %v3010
        %v3012 = vsel %vm3009, %v3011, %v3007
        %v3013 = vmul.f32 1.0, %v3012
        %v3014 = vrcp.pop %v2032
        %v3015 = vmul.f32 %v2032, %v3014
        %v3016 = vsub.f32 1.0, %v3015
        %v3017 = vmul.f32 %v3014, %v3016
        %v3018 = vadd.f32 %v3014, %v3017
        %vm3019 = vweird.f32 %v2032
        %vm3020 = vweird.f32 %v3014
        %vm3021 = vmor %vm3019, %vm3020
        %v3022 = vsel %vm3021, %v3014, %v3018
        %v3023 = vand.u32 2147483647, %v2032
        %vm3024 = vcmp.eq.f32.partialorder %v3023, 8.507059e+37
        %v3025 = vand.u32 %v2032, 2147483648
        %v3026 = vor.u32 1.1754944e-38, %v3025
        %v3027 = vsel %vm3024, %v3026, %v3022
        %v3028 = vmul.f32 1.0, %v3027
        %v3029 = vrcp.pop %v2033
        %v3030 = vmul.f32 %v2033, %v3029
        %v3031 = vsub.f32 1.0, %v3030
        %v3032 = vmul.f32 %v3029, %v3031
        %v3033 = vadd.f32 %v3029, %v3032
        %vm3034 = vweird.f32 %v2033
        %vm3035 = vweird.f32 %v3029
        %vm3036 = vmor %vm3034, %vm3035
        %v3037 = vsel %vm3036, %v3029, %v3033
        %v3038 = vand.u32 2147483647, %v2033
        %vm3039 = vcmp.eq.f32.partialorder %v3038, 8.507059e+37
        %v3040 = vand.u32 %v2033, 2147483648
        %v3041 = vor.u32 1.1754944e-38, %v3040
        %v3042 = vsel %vm3039, %v3041, %v3037
        %v3043 = vmul.f32 1.0, %v3042
        %v3044 = vrcp.pop %v2034
        %v3045 = vmul.f32 %v2034, %v3044
        %v3046 = vsub.f32 1.0, %v3045
        %v3047 = vmul.f32 %v3044, %v3046
        %v3048 = vadd.f32 %v3044, %v3047
        %vm3049 = vweird.f32 %v2034
        %vm3050 = vweird.f32 %v3044
        %vm3051 = vmor %vm3049, %vm3050
        %v3052 = vsel %vm3051, %v3044, %v3048
        %v3053 = vand.u32 2147483647, %v2034
        %vm3054 = vcmp.eq.f32.partialorder %v3053, 8.507059e+37
        %v3055 = vand.u32 %v2034, 2147483648
        %v3056 = vor.u32 1.1754944e-38, %v3055
        %v3057 = vsel %vm3054, %v3056, %v3052
        %v3058 = vmul.f32 1.0, %v3057
        %v3059 = vrcp.pop %v2035
        %v3060 = vmul.f32 %v2035, %v3059
        %v3061 = vsub.f32 1.0, %v3060
        %v3062 = vmul.f32 %v3059, %v3061
        %v3063 = vadd.f32 %v3059, %v3062
        %vm3064 = vweird.f32 %v2035
        %vm3065 = vweird.f32 %v3059
        %vm3066 = vmor %vm3064, %vm3065
        %v3067 = vsel %vm3066, %v3059, %v3063
        %v3068 = vand.u32 2147483647, %v2035
        %vm3069 = vcmp.eq.f32.partialorder %v3068, 8.507059e+37
        %v3070 = vand.u32 %v2035, 2147483648
        %v3071 = vor.u32 1.1754944e-38, %v3070
        %v3072 = vsel %vm3069, %v3071, %v3067
        %v3073 = vmul.f32 1.0, %v3072
        %v3074 = vrcp.pop %v2036
        %v3075 = vmul.f32 %v2036, %v3074
        %v3076 = vsub.f32 1.0, %v3075
        %v3077 = vmul.f32 %v3074, %v3076
        %v3078 = vadd.f32 %v3074, %v3077
        %vm3079 = vweird.f32 %v2036
        %vm3080 = vweird.f32 %v3074
        %vm3081 = vmor %vm3079, %vm3080
        %v3082 = vsel %vm3081, %v3074, %v3078
        %v3083 = vand.u32 2147483647, %v2036
        %vm3084 = vcmp.eq.f32.partialorder %v3083, 8.507059e+37
        %v3085 = vand.u32 %v2036, 2147483648
        %v3086 = vor.u32 1.1754944e-38, %v3085
        %v3087 = vsel %vm3084, %v3086, %v3082
        %v3088 = vmul.f32 1.0, %v3087
        %v3089 = vrcp.pop %v2037
        %v3090 = vmul.f32 %v2037, %v3089
        %v3091 = vsub.f32 1.0, %v3090
        %v3092 = vmul.f32 %v3089, %v3091
        %v3093 = vadd.f32 %v3089, %v3092
        %vm3094 = vweird.f32 %v2037
        %vm3095 = vweird.f32 %v3089
        %vm3096 = vmor %vm3094, %vm3095
        %v3097 = vsel %vm3096, %v3089, %v3093
        %v3098 = vand.u32 2147483647, %v2037
        %vm3099 = vcmp.eq.f32.partialorder %v3098, 8.507059e+37
        %v3100 = vand.u32 %v2037, 2147483648
        %v3101 = vor.u32 1.1754944e-38, %v3100
        %v3102 = vsel %vm3099, %v3101, %v3097
        %v3103 = vmul.f32 1.0, %v3102
        %v3104 = vrcp.pop %v2038
        %v3105 = vmul.f32 %v2038, %v3104
        %v3106 = vsub.f32 1.0, %v3105
        %v3107 = vmul.f32 %v3104, %v3106
        %v3108 = vadd.f32 %v3104, %v3107
        %vm3109 = vweird.f32 %v2038
        %vm3110 = vweird.f32 %v3104
        %vm3111 = vmor %vm3109, %vm3110
        %v3112 = vsel %vm3111, %v3104, %v3108
        %v3113 = vand.u32 2147483647, %v2038
        %vm3114 = vcmp.eq.f32.partialorder %v3113, 8.507059e+37
        %v3115 = vand.u32 %v2038, 2147483648
        %v3116 = vor.u32 1.1754944e-38, %v3115
        %v3117 = vsel %vm3114, %v3116, %v3112
        %v3118 = vmul.f32 1.0, %v3117
        %v3119 = vrcp.pop %v2039
        %v3120 = vmul.f32 %v2039, %v3119
        %v3121 = vsub.f32 1.0, %v3120
        %v3122 = vmul.f32 %v3119, %v3121
        %v3123 = vadd.f32 %v3119, %v3122
        %vm3124 = vweird.f32 %v2039
        %vm3125 = vweird.f32 %v3119
        %vm3126 = vmor %vm3124, %vm3125
        %v3127 = vsel %vm3126, %v3119, %v3123
        %v3128 = vand.u32 2147483647, %v2039
        %vm3129 = vcmp.eq.f32.partialorder %v3128, 8.507059e+37
        %v3130 = vand.u32 %v2039, 2147483648
        %v3131 = vor.u32 1.1754944e-38, %v3130
        %v3132 = vsel %vm3129, %v3131, %v3127
        %v3133 = vmul.f32 1.0, %v3132
        %v3134 = vrcp.pop %v2040
        %v3135 = vmul.f32 %v2040, %v3134
        %v3136 = vsub.f32 1.0, %v3135
        %v3137 = vmul.f32 %v3134, %v3136
        %v3138 = vadd.f32 %v3134, %v3137
        %vm3139 = vweird.f32 %v2040
        %vm3140 = vweird.f32 %v3134
        %vm3141 = vmor %vm3139, %vm3140
        %v3142 = vsel %vm3141, %v3134, %v3138
        %v3143 = vand.u32 2147483647, %v2040
        %vm3144 = vcmp.eq.f32.partialorder %v3143, 8.507059e+37
        %v3145 = vand.u32 %v2040, 2147483648
        %v3146 = vor.u32 1.1754944e-38, %v3145
        %v3147 = vsel %vm3144, %v3146, %v3142
        %v3148 = vmul.f32 1.0, %v3147
        %v3149 = vrcp.pop %v2041
        %v3150 = vmul.f32 %v2041, %v3149
        %v3151 = vsub.f32 1.0, %v3150
        %v3152 = vmul.f32 %v3149, %v3151
        %v3153 = vadd.f32 %v3149, %v3152
        %vm3154 = vweird.f32 %v2041
        %vm3155 = vweird.f32 %v3149
        %vm3156 = vmor %vm3154, %vm3155
        %v3157 = vsel %vm3156, %v3149, %v3153
        %v3158 = vand.u32 2147483647, %v2041
        %vm3159 = vcmp.eq.f32.partialorder %v3158, 8.507059e+37
        %v3160 = vand.u32 %v2041, 2147483648
        %v3161 = vor.u32 1.1754944e-38, %v3160
        %v3162 = vsel %vm3159, %v3161, %v3157
        %v3163 = vmul.f32 1.0, %v3162
        %v3164 = vrcp.pop %v2042
        %v3165 = vmul.f32 %v2042, %v3164
        %v3166 = vsub.f32 1.0, %v3165
        %v3167 = vmul.f32 %v3164, %v3166
        %v3168 = vadd.f32 %v3164, %v3167
        %vm3169 = vweird.f32 %v2042
        %vm3170 = vweird.f32 %v3164
        %vm3171 = vmor %vm3169, %vm3170
        %v3172 = vsel %vm3171, %v3164, %v3168
        %v3173 = vand.u32 2147483647, %v2042
        %vm3174 = vcmp.eq.f32.partialorder %v3173, 8.507059e+37
        %v3175 = vand.u32 %v2042, 2147483648
        %v3176 = vor.u32 1.1754944e-38, %v3175
        %v3177 = vsel %vm3174, %v3176, %v3172
        %v3178 = vmul.f32 1.0, %v3177
        %v3179 = vrcp.pop %v2043
        %v3180 = vmul.f32 %v2043, %v3179
        %v3181 = vsub.f32 1.0, %v3180
        %v3182 = vmul.f32 %v3179, %v3181
        %v3183 = vadd.f32 %v3179, %v3182
        %vm3184 = vweird.f32 %v2043
        %vm3185 = vweird.f32 %v3179
        %vm3186 = vmor %vm3184, %vm3185
        %v3187 = vsel %vm3186, %v3179, %v3183
        %v3188 = vand.u32 2147483647, %v2043
        %vm3189 = vcmp.eq.f32.partialorder %v3188, 8.507059e+37
        %v3190 = vand.u32 %v2043, 2147483648
        %v3191 = vor.u32 1.1754944e-38, %v3190
        %v3192 = vsel %vm3189, %v3191, %v3187
        %v3193 = vmul.f32 1.0, %v3192
        %v3194 = vrcp.pop %v2044
        %v3195 = vmul.f32 %v2044, %v3194
        %v3196 = vsub.f32 1.0, %v3195
        %v3197 = vmul.f32 %v3194, %v3196
        %v3198 = vadd.f32 %v3194, %v3197
        %vm3199 = vweird.f32 %v2044
        %vm3200 = vweird.f32 %v3194
        %vm3201 = vmor %vm3199, %vm3200
        %v3202 = vsel %vm3201, %v3194, %v3198
        %v3203 = vand.u32 2147483647, %v2044
        %vm3204 = vcmp.eq.f32.partialorder %v3203, 8.507059e+37
        %v3205 = vand.u32 %v2044, 2147483648
        %v3206 = vor.u32 1.1754944e-38, %v3205
        %v3207 = vsel %vm3204, %v3206, %v3202
        %v3208 = vmul.f32 1.0, %v3207
        %v3209 = vrcp.pop %v2045
        %v3210 = vmul.f32 %v2045, %v3209
        %v3211 = vsub.f32 1.0, %v3210
        %v3212 = vmul.f32 %v3209, %v3211
        %v3213 = vadd.f32 %v3209, %v3212
        %vm3214 = vweird.f32 %v2045
        %vm3215 = vweird.f32 %v3209
        %vm3216 = vmor %vm3214, %vm3215
        %v3217 = vsel %vm3216, %v3209, %v3213
        %v3218 = vand.u32 2147483647, %v2045
        %vm3219 = vcmp.eq.f32.partialorder %v3218, 8.507059e+37
        %v3220 = vand.u32 %v2045, 2147483648
        %v3221 = vor.u32 1.1754944e-38, %v3220
        %v3222 = vsel %vm3219, %v3221, %v3217
        %v3223 = vmul.f32 1.0, %v3222
        %v3224 = vrcp.pop %v2046
        %v3225 = vmul.f32 %v2046, %v3224
        %v3226 = vsub.f32 1.0, %v3225
        %v3227 = vmul.f32 %v3224, %v3226
        %v3228 = vadd.f32 %v3224, %v3227
        %vm3229 = vweird.f32 %v2046
        %vm3230 = vweird.f32 %v3224
        %vm3231 = vmor %vm3229, %vm3230
        %v3232 = vsel %vm3231, %v3224, %v3228
        %v3233 = vand.u32 2147483647, %v2046
        %vm3234 = vcmp.eq.f32.partialorder %v3233, 8.507059e+37
        %v3235 = vand.u32 %v2046, 2147483648
        %v3236 = vor.u32 1.1754944e-38, %v3235
        %v3237 = vsel %vm3234, %v3236, %v3232
        %v3238 = vmul.f32 1.0, %v3237
        %v3239 = vrcp.pop %v2047
        %v3240 = vmul.f32 %v2047, %v3239
        %v3241 = vsub.f32 1.0, %v3240
        %v3242 = vmul.f32 %v3239, %v3241
        %v3243 = vadd.f32 %v3239, %v3242
        %vm3244 = vweird.f32 %v2047
        %vm3245 = vweird.f32 %v3239
        %vm3246 = vmor %vm3244, %vm3245
        %v3247 = vsel %vm3246, %v3239, %v3243
        %v3248 = vand.u32 2147483647, %v2047
        %vm3249 = vcmp.eq.f32.partialorder %v3248, 8.507059e+37
        %v3250 = vand.u32 %v2047, 2147483648
        %v3251 = vor.u32 1.1754944e-38, %v3250
        %v3252 = vsel %vm3249, %v3251, %v3247
        %v3253 = vmul.f32 1.0, %v3252
        %v3254 = vrcp.pop %v2048
        %v3255 = vmul.f32 %v2048, %v3254
        %v3256 = vsub.f32 1.0, %v3255
        %v3257 = vmul.f32 %v3254, %v3256
        %v3258 = vadd.f32 %v3254, %v3257
        %vm3259 = vweird.f32 %v2048
        %vm3260 = vweird.f32 %v3254
        %vm3261 = vmor %vm3259, %vm3260
        %v3262 = vsel %vm3261, %v3254, %v3258
        %v3263 = vand.u32 2147483647, %v2048
        %vm3264 = vcmp.eq.f32.partialorder %v3263, 8.507059e+37
        %v3265 = vand.u32 %v2048, 2147483648
        %v3266 = vor.u32 1.1754944e-38, %v3265
        %v3267 = vsel %vm3264, %v3266, %v3262
        %v3268 = vmul.f32 1.0, %v3267
        %v3269 = vrcp.pop %v2049
        %v3270 = vmul.f32 %v2049, %v3269
        %v3271 = vsub.f32 1.0, %v3270
        %v3272 = vmul.f32 %v3269, %v3271
        %v3273 = vadd.f32 %v3269, %v3272
        %vm3274 = vweird.f32 %v2049
        %vm3275 = vweird.f32 %v3269
        %vm3276 = vmor %vm3274, %vm3275
        %v3277 = vsel %vm3276, %v3269, %v3273
        %v3278 = vand.u32 2147483647, %v2049
        %vm3279 = vcmp.eq.f32.partialorder %v3278, 8.507059e+37
        %v3280 = vand.u32 %v2049, 2147483648
        %v3281 = vor.u32 1.1754944e-38, %v3280
        %v3282 = vsel %vm3279, %v3281, %v3277
        %v3283 = vmul.f32 1.0, %v3282
        %v3284 = vrcp.pop %v2050
        %v3285 = vmul.f32 %v2050, %v3284
        %v3286 = vsub.f32 1.0, %v3285
        %v3287 = vmul.f32 %v3284, %v3286
        %v3288 = vadd.f32 %v3284, %v3287
        %vm3289 = vweird.f32 %v2050
        %vm3290 = vweird.f32 %v3284
        %vm3291 = vmor %vm3289, %vm3290
        %v3292 = vsel %vm3291, %v3284, %v3288
        %v3293 = vand.u32 2147483647, %v2050
        %vm3294 = vcmp.eq.f32.partialorder %v3293, 8.507059e+37
        %v3295 = vand.u32 %v2050, 2147483648
        %v3296 = vor.u32 1.1754944e-38, %v3295
        %v3297 = vsel %vm3294, %v3296, %v3292
        %v3298 = vmul.f32 1.0, %v3297
        %v3299 = vrcp.pop %v2051
        %v3300 = vmul.f32 %v2051, %v3299
        %v3301 = vsub.f32 1.0, %v3300
        %v3302 = vmul.f32 %v3299, %v3301
        %v3303 = vadd.f32 %v3299, %v3302
        %vm3304 = vweird.f32 %v2051
        %vm3305 = vweird.f32 %v3299
        %vm3306 = vmor %vm3304, %vm3305
        %v3307 = vsel %vm3306, %v3299, %v3303
        %v3308 = vand.u32 2147483647, %v2051
        %vm3309 = vcmp.eq.f32.partialorder %v3308, 8.507059e+37
        %v3310 = vand.u32 %v2051, 2147483648
        %v3311 = vor.u32 1.1754944e-38, %v3310
        %v3312 = vsel %vm3309, %v3311, %v3307
        %v3313 = vmul.f32 1.0, %v3312
        %v3314 = vrcp.pop %v2052
        %v3315 = vmul.f32 %v2052, %v3314
        %v3316 = vsub.f32 1.0, %v3315
        %v3317 = vmul.f32 %v3314, %v3316
        %v3318 = vadd.f32 %v3314, %v3317
        %vm3319 = vweird.f32 %v2052
        %vm3320 = vweird.f32 %v3314
        %vm3321 = vmor %vm3319, %vm3320
        %v3322 = vsel %vm3321, %v3314, %v3318
        %v3323 = vand.u32 2147483647, %v2052
        %vm3324 = vcmp.eq.f32.partialorder %v3323, 8.507059e+37
        %v3325 = vand.u32 %v2052, 2147483648
        %v3326 = vor.u32 1.1754944e-38, %v3325
        %v3327 = vsel %vm3324, %v3326, %v3322
        %v3328 = vmul.f32 1.0, %v3327
        %v3329 = vrcp.pop %v2053
        %v3330 = vmul.f32 %v2053, %v3329
        %v3331 = vsub.f32 1.0, %v3330
        %v3332 = vmul.f32 %v3329, %v3331
        %v3333 = vadd.f32 %v3329, %v3332
        %vm3334 = vweird.f32 %v2053
        %vm3335 = vweird.f32 %v3329
        %vm3336 = vmor %vm3334, %vm3335
        %v3337 = vsel %vm3336, %v3329, %v3333
        %v3338 = vand.u32 2147483647, %v2053
        %vm3339 = vcmp.eq.f32.partialorder %v3338, 8.507059e+37
        %v3340 = vand.u32 %v2053, 2147483648
        %v3341 = vor.u32 1.1754944e-38, %v3340
        %v3342 = vsel %vm3339, %v3341, %v3337
        %v3343 = vmul.f32 1.0, %v3342
        %v3344 = vrcp.pop %v2054
        %v3345 = vmul.f32 %v2054, %v3344
        %v3346 = vsub.f32 1.0, %v3345
        %v3347 = vmul.f32 %v3344, %v3346
        %v3348 = vadd.f32 %v3344, %v3347
        %vm3349 = vweird.f32 %v2054
        %vm3350 = vweird.f32 %v3344
        %vm3351 = vmor %vm3349, %vm3350
        %v3352 = vsel %vm3351, %v3344, %v3348
        %v3353 = vand.u32 2147483647, %v2054
        %vm3354 = vcmp.eq.f32.partialorder %v3353, 8.507059e+37
        %v3355 = vand.u32 %v2054, 2147483648
        %v3356 = vor.u32 1.1754944e-38, %v3355
        %v3357 = vsel %vm3354, %v3356, %v3352
        %v3358 = vmul.f32 1.0, %v3357
        %v3359 = vrcp.pop %v2055
        %v3360 = vmul.f32 %v2055, %v3359
        %v3361 = vsub.f32 1.0, %v3360
        %v3362 = vmul.f32 %v3359, %v3361
        %v3363 = vadd.f32 %v3359, %v3362
        %vm3364 = vweird.f32 %v2055
        %vm3365 = vweird.f32 %v3359
        %vm3366 = vmor %vm3364, %vm3365
        %v3367 = vsel %vm3366, %v3359, %v3363
        %v3368 = vand.u32 2147483647, %v2055
        %vm3369 = vcmp.eq.f32.partialorder %v3368, 8.507059e+37
        %v3370 = vand.u32 %v2055, 2147483648
        %v3371 = vor.u32 1.1754944e-38, %v3370
        %v3372 = vsel %vm3369, %v3371, %v3367
        %v3373 = vmul.f32 1.0, %v3372
        %v3374 = vrcp.pop %v2056
        %v3375 = vmul.f32 %v2056, %v3374
        %v3376 = vsub.f32 1.0, %v3375
        %v3377 = vmul.f32 %v3374, %v3376
        %v3378 = vadd.f32 %v3374, %v3377
        %vm3379 = vweird.f32 %v2056
        %vm3380 = vweird.f32 %v3374
        %vm3381 = vmor %vm3379, %vm3380
        %v3382 = vsel %vm3381, %v3374, %v3378
        %v3383 = vand.u32 2147483647, %v2056
        %vm3384 = vcmp.eq.f32.partialorder %v3383, 8.507059e+37
        %v3385 = vand.u32 %v2056, 2147483648
        %v3386 = vor.u32 1.1754944e-38, %v3385
        %v3387 = vsel %vm3384, %v3386, %v3382
        %v3388 = vmul.f32 1.0, %v3387
        %v3389 = vrcp.pop %v2057
        %v3390 = vmul.f32 %v2057, %v3389
        %v3391 = vsub.f32 1.0, %v3390
        %v3392 = vmul.f32 %v3389, %v3391
        %v3393 = vadd.f32 %v3389, %v3392
        %vm3394 = vweird.f32 %v2057
        %vm3395 = vweird.f32 %v3389
        %vm3396 = vmor %vm3394, %vm3395
        %v3397 = vsel %vm3396, %v3389, %v3393
        %v3398 = vand.u32 2147483647, %v2057
        %vm3399 = vcmp.eq.f32.partialorder %v3398, 8.507059e+37
        %v3400 = vand.u32 %v2057, 2147483648
        %v3401 = vor.u32 1.1754944e-38, %v3400
        %v3402 = vsel %vm3399, %v3401, %v3397
        %v3403 = vmul.f32 1.0, %v3402
        %v3404 = vrcp.pop %v2058
        %v3405 = vmul.f32 %v2058, %v3404
        %v3406 = vsub.f32 1.0, %v3405
        %v3407 = vmul.f32 %v3404, %v3406
        %v3408 = vadd.f32 %v3404, %v3407
        %vm3409 = vweird.f32 %v2058
        %vm3410 = vweird.f32 %v3404
        %vm3411 = vmor %vm3409, %vm3410
        %v3412 = vsel %vm3411, %v3404, %v3408
        %v3413 = vand.u32 2147483647, %v2058
        %vm3414 = vcmp.eq.f32.partialorder %v3413, 8.507059e+37
        %v3415 = vand.u32 %v2058, 2147483648
        %v3416 = vor.u32 1.1754944e-38, %v3415
        %v3417 = vsel %vm3414, %v3416, %v3412
        %v3418 = vmul.f32 1.0, %v3417
        %v3419 = vrcp.pop %v2059
        %v3420 = vmul.f32 %v2059, %v3419
        %v3421 = vsub.f32 1.0, %v3420
        %v3422 = vmul.f32 %v3419, %v3421
        %v3423 = vadd.f32 %v3419, %v3422
        %vm3424 = vweird.f32 %v2059
        %vm3425 = vweird.f32 %v3419
        %vm3426 = vmor %vm3424, %vm3425
        %v3427 = vsel %vm3426, %v3419, %v3423
        %v3428 = vand.u32 2147483647, %v2059
        %vm3429 = vcmp.eq.f32.partialorder %v3428, 8.507059e+37
        %v3430 = vand.u32 %v2059, 2147483648
        %v3431 = vor.u32 1.1754944e-38, %v3430
        %v3432 = vsel %vm3429, %v3431, %v3427
        %v3433 = vmul.f32 1.0, %v3432
        %v3434 = vrcp.pop %v2060
        %v3435 = vmul.f32 %v2060, %v3434
        %v3436 = vsub.f32 1.0, %v3435
        %v3437 = vmul.f32 %v3434, %v3436
        %v3438 = vadd.f32 %v3434, %v3437
        %vm3439 = vweird.f32 %v2060
        %vm3440 = vweird.f32 %v3434
        %vm3441 = vmor %vm3439, %vm3440
        %v3442 = vsel %vm3441, %v3434, %v3438
        %v3443 = vand.u32 2147483647, %v2060
        %vm3444 = vcmp.eq.f32.partialorder %v3443, 8.507059e+37
        %v3445 = vand.u32 %v2060, 2147483648
        %v3446 = vor.u32 1.1754944e-38, %v3445
        %v3447 = vsel %vm3444, %v3446, %v3442
        %v3448 = vmul.f32 1.0, %v3447
        %v3449 = vrcp.pop %v2061
        %v3450 = vmul.f32 %v2061, %v3449
        %v3451 = vsub.f32 1.0, %v3450
        %v3452 = vmul.f32 %v3449, %v3451
        %v3453 = vadd.f32 %v3449, %v3452
        %vm3454 = vweird.f32 %v2061
        %vm3455 = vweird.f32 %v3449
        %vm3456 = vmor %vm3454, %vm3455
        %v3457 = vsel %vm3456, %v3449, %v3453
        %v3458 = vand.u32 2147483647, %v2061
        %vm3459 = vcmp.eq.f32.partialorder %v3458, 8.507059e+37
        %v3460 = vand.u32 %v2061, 2147483648
        %v3461 = vor.u32 1.1754944e-38, %v3460
        %v3462 = vsel %vm3459, %v3461, %v3457
        %v3463 = vmul.f32 1.0, %v3462
        %v3464 = vrcp.pop %v2062
        %v3465 = vmul.f32 %v2062, %v3464
        %v3466 = vsub.f32 1.0, %v3465
        %v3467 = vmul.f32 %v3464, %v3466
        %v3468 = vadd.f32 %v3464, %v3467
        %vm3469 = vweird.f32 %v2062
        %vm3470 = vweird.f32 %v3464
        %vm3471 = vmor %vm3469, %vm3470
        %v3472 = vsel %vm3471, %v3464, %v3468
        %v3473 = vand.u32 2147483647, %v2062
        %vm3474 = vcmp.eq.f32.partialorder %v3473, 8.507059e+37
        %v3475 = vand.u32 %v2062, 2147483648
        %v3476 = vor.u32 1.1754944e-38, %v3475
        %v3477 = vsel %vm3474, %v3476, %v3472
        %v3478 = vmul.f32 1.0, %v3477
        %v3479 = vrcp.pop %v2063
        %v3480 = vmul.f32 %v2063, %v3479
        %v3481 = vsub.f32 1.0, %v3480
        %v3482 = vmul.f32 %v3479, %v3481
        %v3483 = vadd.f32 %v3479, %v3482
        %vm3484 = vweird.f32 %v2063
        %vm3485 = vweird.f32 %v3479
        %vm3486 = vmor %vm3484, %vm3485
        %v3487 = vsel %vm3486, %v3479, %v3483
        %v3488 = vand.u32 2147483647, %v2063
        %vm3489 = vcmp.eq.f32.partialorder %v3488, 8.507059e+37
        %v3490 = vand.u32 %v2063, 2147483648
        %v3491 = vor.u32 1.1754944e-38, %v3490
        %v3492 = vsel %vm3489, %v3491, %v3487
        %v3493 = vmul.f32 1.0, %v3492
        %v3494 = vrcp.pop %v2064
        %v3495 = vmul.f32 %v2064, %v3494
        %v3496 = vsub.f32 1.0, %v3495
        %v3497 = vmul.f32 %v3494, %v3496
        %v3498 = vadd.f32 %v3494, %v3497
        %vm3499 = vweird.f32 %v2064
        %vm3500 = vweird.f32 %v3494
        %vm3501 = vmor %vm3499, %vm3500
        %v3502 = vsel %vm3501, %v3494, %v3498
        %v3503 = vand.u32 2147483647, %v2064
        %vm3504 = vcmp.eq.f32.partialorder %v3503, 8.507059e+37
        %v3505 = vand.u32 %v2064, 2147483648
        %v3506 = vor.u32 1.1754944e-38, %v3505
        %v3507 = vsel %vm3504, %v3506, %v3502
        %v3508 = vmul.f32 1.0, %v3507
        %v3509 = vrcp.pop %v2065
        %v3510 = vmul.f32 %v2065, %v3509
        %v3511 = vsub.f32 1.0, %v3510
        %v3512 = vmul.f32 %v3509, %v3511
        %v3513 = vadd.f32 %v3509, %v3512
        %vm3514 = vweird.f32 %v2065
        %vm3515 = vweird.f32 %v3509
        %vm3516 = vmor %vm3514, %vm3515
        %v3517 = vsel %vm3516, %v3509, %v3513
        %v3518 = vand.u32 2147483647, %v2065
        %vm3519 = vcmp.eq.f32.partialorder %v3518, 8.507059e+37
        %v3520 = vand.u32 %v2065, 2147483648
        %v3521 = vor.u32 1.1754944e-38, %v3520
        %v3522 = vsel %vm3519, %v3521, %v3517
        %v3523 = vmul.f32 1.0, %v3522
        %v3524 = vrcp.pop %v2066
        %v3525 = vmul.f32 %v2066, %v3524
        %v3526 = vsub.f32 1.0, %v3525
        %v3527 = vmul.f32 %v3524, %v3526
        %v3528 = vadd.f32 %v3524, %v3527
        %vm3529 = vweird.f32 %v2066
        %vm3530 = vweird.f32 %v3524
        %vm3531 = vmor %vm3529, %vm3530
        %v3532 = vsel %vm3531, %v3524, %v3528
        %v3533 = vand.u32 2147483647, %v2066
        %vm3534 = vcmp.eq.f32.partialorder %v3533, 8.507059e+37
        %v3535 = vand.u32 %v2066, 2147483648
        %v3536 = vor.u32 1.1754944e-38, %v3535
        %v3537 = vsel %vm3534, %v3536, %v3532
        %v3538 = vmul.f32 1.0, %v3537
        %v3539 = vrcp.pop %v2067
        %v3540 = vmul.f32 %v2067, %v3539
        %v3541 = vsub.f32 1.0, %v3540
        %v3542 = vmul.f32 %v3539, %v3541
        %v3543 = vadd.f32 %v3539, %v3542
        %vm3544 = vweird.f32 %v2067
        %vm3545 = vweird.f32 %v3539
        %vm3546 = vmor %vm3544, %vm3545
        %v3547 = vsel %vm3546, %v3539, %v3543
        %v3548 = vand.u32 2147483647, %v2067
        %vm3549 = vcmp.eq.f32.partialorder %v3548, 8.507059e+37
        %v3550 = vand.u32 %v2067, 2147483648
        %v3551 = vor.u32 1.1754944e-38, %v3550
        %v3552 = vsel %vm3549, %v3551, %v3547
        %v3553 = vmul.f32 1.0, %v3552
        %v3554 = vrcp.pop %v2068
        %v3555 = vmul.f32 %v2068, %v3554
        %v3556 = vsub.f32 1.0, %v3555
        %v3557 = vmul.f32 %v3554, %v3556
        %v3558 = vadd.f32 %v3554, %v3557
        %vm3559 = vweird.f32 %v2068
        %vm3560 = vweird.f32 %v3554
        %vm3561 = vmor %vm3559, %vm3560
        %v3562 = vsel %vm3561, %v3554, %v3558
        %v3563 = vand.u32 2147483647, %v2068
        %vm3564 = vcmp.eq.f32.partialorder %v3563, 8.507059e+37
        %v3565 = vand.u32 %v2068, 2147483648
        %v3566 = vor.u32 1.1754944e-38, %v3565
        %v3567 = vsel %vm3564, %v3566, %v3562
        %v3568 = vmul.f32 1.0, %v3567
        %v3569 = vmul.f32 %v2083, 1.0614054
        %v3570 = vmul.f32 %v2098, 1.0614054
        %v3571 = vmul.f32 %v2113, 1.0614054
        %v3572 = vmul.f32 %v2128, 1.0614054
        %v3573 = vmul.f32 %v2143, 1.0614054
        %v3574 = vmul.f32 %v2158, 1.0614054
        %v3575 = vmul.f32 %v2173, 1.0614054
        %v3576 = vmul.f32 %v2188, 1.0614054
        %v3577 = vmul.f32 %v2203, 1.0614054
        %v3578 = vmul.f32 %v2218, 1.0614054
        %v3579 = vmul.f32 %v2233, 1.0614054
        %v3580 = vmul.f32 %v2248, 1.0614054
        %v3581 = vmul.f32 %v2263, 1.0614054
        %v3582 = vmul.f32 %v2278, 1.0614054
        %v3583 = vmul.f32 %v2293, 1.0614054
        %v3584 = vmul.f32 %v2308, 1.0614054
        %v3585 = vmul.f32 %v2323, 1.0614054
        %v3586 = vmul.f32 %v2338, 1.0614054
        %v3587 = vmul.f32 %v2353, 1.0614054
        %v3588 = vmul.f32 %v2368, 1.0614054
        %v3589 = vmul.f32 %v2383, 1.0614054
        %v3590 = vmul.f32 %v2398, 1.0614054
        %v3591 = vmul.f32 %v2413, 1.0614054
        %v3592 = vmul.f32 %v2428, 1.0614054
        %v3593 = vmul.f32 %v2443, 1.0614054
        %v3594 = vmul.f32 %v2458, 1.0614054
        %v3595 = vmul.f32 %v2473, 1.0614054
        %v3596 = vmul.f32 %v2488, 1.0614054
        %v3597 = vmul.f32 %v2503, 1.0614054
        %v3598 = vmul.f32 %v2518, 1.0614054
        %v3599 = vmul.f32 %v2533, 1.0614054
        %v3600 = vmul.f32 %v2548, 1.0614054
        %v3601 = vmul.f32 %v2563, 1.0614054
        %v3602 = vmul.f32 %v2578, 1.0614054
        %v3603 = vmul.f32 %v2593, 1.0614054
        %v3604 = vmul.f32 %v2608, 1.0614054
        %v3605 = vmul.f32 %v2623, 1.0614054
        %v3606 = vmul.f32 %v2638, 1.0614054
        %v3607 = vmul.f32 %v2653, 1.0614054
        %v3608 = vmul.f32 %v2668, 1.0614054
        %v3609 = vmul.f32 %v2683, 1.0614054
        %v3610 = vmul.f32 %v2698, 1.0614054
        %v3611 = vmul.f32 %v2713, 1.0614054
        %v3612 = vmul.f32 %v2728, 1.0614054
        %v3613 = vmul.f32 %v2743, 1.0614054
        %v3614 = vmul.f32 %v2758, 1.0614054
        %v3615 = vmul.f32 %v2773, 1.0614054
        %v3616 = vmul.f32 %v2788, 1.0614054
        %v3617 = vmul.f32 %v2803, 1.0614054
        %v3618 = vmul.f32 %v2818, 1.0614054
        %v3619 = vmul.f32 %v2833, 1.0614054
        %v3620 = vmul.f32 %v2848, 1.0614054
        %v3621 = vmul.f32 %v2863, 1.0614054
        %v3622 = vmul.f32 %v2878, 1.0614054
        %v3623 = vmul.f32 %v2893, 1.0614054
        %v3624 = vmul.f32 %v2908, 1.0614054
        %v3625 = vmul.f32 %v2923, 1.0614054
        %v3626 = vmul.f32 %v2938, 1.0614054
        %v3627 = vmul.f32 %v2953, 1.0614054
        %v3628 = vmul.f32 %v2968, 1.0614054
        %v3629 = vmul.f32 %v2983, 1.0614054
        %v3630 = vmul.f32 %v2998, 1.0614054
        %v3631 = vmul.f32 %v3013, 1.0614054
        %v3632 = vmul.f32 %v3028, 1.0614054
        %v3633 = vmul.f32 %v3043, 1.0614054
        %v3634 = vmul.f32 %v3058, 1.0614054
        %v3635 = vmul.f32 %v3073, 1.0614054
        %v3636 = vmul.f32 %v3088, 1.0614054
        %v3637 = vmul.f32 %v3103, 1.0614054
        %v3638 = vmul.f32 %v3118, 1.0614054
        %v3639 = vmul.f32 %v3133, 1.0614054
        %v3640 = vmul.f32 %v3148, 1.0614054
        %v3641 = vmul.f32 %v3163, 1.0614054
        %v3642 = vmul.f32 %v3178, 1.0614054
        %v3643 = vmul.f32 %v3193, 1.0614054
        %v3644 = vmul.f32 %v3208, 1.0614054
        %v3645 = vmul.f32 %v3223, 1.0614054
        %v3646 = vmul.f32 %v3238, 1.0614054
        %v3647 = vmul.f32 %v3253, 1.0614054
        %v3648 = vmul.f32 %v3268, 1.0614054
        %v3649 = vmul.f32 %v3283, 1.0614054
        %v3650 = vmul.f32 %v3298, 1.0614054
        %v3651 = vmul.f32 %v3313, 1.0614054
        %v3652 = vmul.f32 %v3328, 1.0614054
        %v3653 = vmul.f32 %v3343, 1.0614054
        %v3654 = vmul.f32 %v3358, 1.0614054
        %v3655 = vmul.f32 %v3373, 1.0614054
        %v3656 = vmul.f32 %v3388, 1.0614054
        %v3657 = vmul.f32 %v3403, 1.0614054
        %v3658 = vmul.f32 %v3418, 1.0614054
        %v3659 = vmul.f32 %v3433, 1.0614054
        %v3660 = vmul.f32 %v3448, 1.0614054
        %v3661 = vmul.f32 %v3463, 1.0614054
        %v3662 = vmul.f32 %v3478, 1.0614054
        %v3663 = vmul.f32 %v3493, 1.0614054
        %v3664 = vmul.f32 %v3508, 1.0614054
        %v3665 = vmul.f32 %v3523, 1.0614054
        %v3666 = vmul.f32 %v3538, 1.0614054
        %v3667 = vmul.f32 %v3553, 1.0614054
        %v3668 = vmul.f32 %v3568, 1.0614054
        %v3669 = vadd.f32 %v3569, -1.4531521
        %v3670 = vadd.f32 %v3570, -1.4531521
        %v3671 = vadd.f32 %v3571, -1.4531521
        %v3672 = vadd.f32 %v3572, -1.4531521
        %v3673 = vadd.f32 %v3573, -1.4531521
        %v3674 = vadd.f32 %v3574, -1.4531521
        %v3675 = vadd.f32 %v3575, -1.4531521
        %v3676 = vadd.f32 %v3576, -1.4531521
        %v3677 = vadd.f32 %v3577, -1.4531521
        %v3678 = vadd.f32 %v3578, -1.4531521
        %v3679 = vadd.f32 %v3579, -1.4531521
        %v3680 = vadd.f32 %v3580, -1.4531521
        %v3681 = vadd.f32 %v3581, -1.4531521
        %v3682 = vadd.f32 %v3582, -1.4531521
        %v3683 = vadd.f32 %v3583, -1.4531521
        %v3684 = vadd.f32 %v3584, -1.4531521
        %v3685 = vadd.f32 %v3585, -1.4531521
        %v3686 = vadd.f32 %v3586, -1.4531521
        %v3687 = vadd.f32 %v3587, -1.4531521
        %v3688 = vadd.f32 %v3588, -1.4531521
        %v3689 = vadd.f32 %v3589, -1.4531521
        %v3690 = vadd.f32 %v3590, -1.4531521
        %v3691 = vadd.f32 %v3591, -1.4531521
        %v3692 = vadd.f32 %v3592, -1.4531521
        %v3693 = vadd.f32 %v3593, -1.4531521
        %v3694 = vadd.f32 %v3594, -1.4531521
        %v3695 = vadd.f32 %v3595, -1.4531521
        %v3696 = vadd.f32 %v3596, -1.4531521
        %v3697 = vadd.f32 %v3597, -1.4531521
        %v3698 = vadd.f32 %v3598, -1.4531521
        %v3699 = vadd.f32 %v3599, -1.4531521
        %v3700 = vadd.f32 %v3600, -1.4531521
        %v3701 = vadd.f32 %v3601, -1.4531521
        %v3702 = vadd.f32 %v3602, -1.4531521
        %v3703 = vadd.f32 %v3603, -1.4531521
        %v3704 = vadd.f32 %v3604, -1.4531521
        %v3705 = vadd.f32 %v3605, -1.4531521
        %v3706 = vadd.f32 %v3606, -1.4531521
        %v3707 = vadd.f32 %v3607, -1.4531521
        %v3708 = vadd.f32 %v3608, -1.4531521
        %v3709 = vadd.f32 %v3609, -1.4531521
        %v3710 = vadd.f32 %v3610, -1.4531521
        %v3711 = vadd.f32 %v3611, -1.4531521
        %v3712 = vadd.f32 %v3612, -1.4531521
        %v3713 = vadd.f32 %v3613, -1.4531521
        %v3714 = vadd.f32 %v3614, -1.4531521
        %v3715 = vadd.f32 %v3615, -1.4531521
        %v3716 = vadd.f32 %v3616, -1.4531521
        %v3717 = vadd.f32 %v3617, -1.4531521
        %v3718 = vadd.f32 %v3618, -1.4531521
        %v3719 = vadd.f32 %v3619, -1.4531521
        %v3720 = vadd.f32 %v3620, -1.4531521
        %v3721 = vadd.f32 %v3621, -1.4531521
        %v3722 = vadd.f32 %v3622, -1.4531521
        %v3723 = vadd.f32 %v3623, -1.4531521
        %v3724 = vadd.f32 %v3624, -1.4531521
        %v3725 = vadd.f32 %v3625, -1.4531521
        %v3726 = vadd.f32 %v3626, -1.4531521
        %v3727 = vadd.f32 %v3627, -1.4531521
        %v3728 = vadd.f32 %v3628, -1.4531521
        %v3729 = vadd.f32 %v3629, -1.4531521
        %v3730 = vadd.f32 %v3630, -1.4531521
        %v3731 = vadd.f32 %v3631, -1.4531521
        %v3732 = vadd.f32 %v3632, -1.4531521
        %v3733 = vadd.f32 %v3633, -1.4531521
        %v3734 = vadd.f32 %v3634, -1.4531521
        %v3735 = vadd.f32 %v3635, -1.4531521
        %v3736 = vadd.f32 %v3636, -1.4531521
        %v3737 = vadd.f32 %v3637, -1.4531521
        %v3738 = vadd.f32 %v3638, -1.4531521
        %v3739 = vadd.f32 %v3639, -1.4531521
        %v3740 = vadd.f32 %v3640, -1.4531521
        %v3741 = vadd.f32 %v3641, -1.4531521
        %v3742 = vadd.f32 %v3642, -1.4531521
        %v3743 = vadd.f32 %v3643, -1.4531521
        %v3744 = vadd.f32 %v3644, -1.4531521
        %v3745 = vadd.f32 %v3645, -1.4531521
        %v3746 = vadd.f32 %v3646, -1.4531521
        %v3747 = vadd.f32 %v3647, -1.4531521
        %v3748 = vadd.f32 %v3648, -1.4531521
        %v3749 = vadd.f32 %v3649, -1.4531521
        %v3750 = vadd.f32 %v3650, -1.4531521
        %v3751 = vadd.f32 %v3651, -1.4531521
        %v3752 = vadd.f32 %v3652, -1.4531521
        %v3753 = vadd.f32 %v3653, -1.4531521
        %v3754 = vadd.f32 %v3654, -1.4531521
        %v3755 = vadd.f32 %v3655, -1.4531521
        %v3756 = vadd.f32 %v3656, -1.4531521
        %v3757 = vadd.f32 %v3657, -1.4531521
        %v3758 = vadd.f32 %v3658, -1.4531521
        %v3759 = vadd.f32 %v3659, -1.4531521
        %v3760 = vadd.f32 %v3660, -1.4531521
        %v3761 = vadd.f32 %v3661, -1.4531521
        %v3762 = vadd.f32 %v3662, -1.4531521
        %v3763 = vadd.f32 %v3663, -1.4531521
        %v3764 = vadd.f32 %v3664, -1.4531521
        %v3765 = vadd.f32 %v3665, -1.4531521
        %v3766 = vadd.f32 %v3666, -1.4531521
        %v3767 = vadd.f32 %v3667, -1.4531521
        %v3768 = vadd.f32 %v3668, -1.4531521
        %v3769 = vmul.f32 %v2083, %v3669
        %v3770 = vmul.f32 %v2098, %v3670
        %v3771 = vmul.f32 %v2113, %v3671
        %v3772 = vmul.f32 %v2128, %v3672
        %v3773 = vmul.f32 %v2143, %v3673
        %v3774 = vmul.f32 %v2158, %v3674
        %v3775 = vmul.f32 %v2173, %v3675
        %v3776 = vmul.f32 %v2188, %v3676
        %v3777 = vmul.f32 %v2203, %v3677
        %v3778 = vmul.f32 %v2218, %v3678
        %v3779 = vmul.f32 %v2233, %v3679
        %v3780 = vmul.f32 %v2248, %v3680
        %v3781 = vmul.f32 %v2263, %v3681
        %v3782 = vmul.f32 %v2278, %v3682
        %v3783 = vmul.f32 %v2293, %v3683
        %v3784 = vmul.f32 %v2308, %v3684
        %v3785 = vmul.f32 %v2323, %v3685
        %v3786 = vmul.f32 %v2338, %v3686
        %v3787 = vmul.f32 %v2353, %v3687
        %v3788 = vmul.f32 %v2368, %v3688
        %v3789 = vmul.f32 %v2383, %v3689
        %v3790 = vmul.f32 %v2398, %v3690
        %v3791 = vmul.f32 %v2413, %v3691
        %v3792 = vmul.f32 %v2428, %v3692
        %v3793 = vmul.f32 %v2443, %v3693
        %v3794 = vmul.f32 %v2458, %v3694
        %v3795 = vmul.f32 %v2473, %v3695
        %v3796 = vmul.f32 %v2488, %v3696
        %v3797 = vmul.f32 %v2503, %v3697
        %v3798 = vmul.f32 %v2518, %v3698
        %v3799 = vmul.f32 %v2533, %v3699
        %v3800 = vmul.f32 %v2548, %v3700
        %v3801 = vmul.f32 %v2563, %v3701
        %v3802 = vmul.f32 %v2578, %v3702
        %v3803 = vmul.f32 %v2593, %v3703
        %v3804 = vmul.f32 %v2608, %v3704
        %v3805 = vmul.f32 %v2623, %v3705
        %v3806 = vmul.f32 %v2638, %v3706
        %v3807 = vmul.f32 %v2653, %v3707
        %v3808 = vmul.f32 %v2668, %v3708
        %v3809 = vmul.f32 %v2683, %v3709
        %v3810 = vmul.f32 %v2698, %v3710
        %v3811 = vmul.f32 %v2713, %v3711
        %v3812 = vmul.f32 %v2728, %v3712
        %v3813 = vmul.f32 %v2743, %v3713
        %v3814 = vmul.f32 %v2758, %v3714
        %v3815 = vmul.f32 %v2773, %v3715
        %v3816 = vmul.f32 %v2788, %v3716
        %v3817 = vmul.f32 %v2803, %v3717
        %v3818 = vmul.f32 %v2818, %v3718
        %v3819 = vmul.f32 %v2833, %v3719
        %v3820 = vmul.f32 %v2848, %v3720
        %v3821 = vmul.f32 %v2863, %v3721
        %v3822 = vmul.f32 %v2878, %v3722
        %v3823 = vmul.f32 %v2893, %v3723
        %v3824 = vmul.f32 %v2908, %v3724
        %v3825 = vmul.f32 %v2923, %v3725
        %v3826 = vmul.f32 %v2938, %v3726
        %v3827 = vmul.f32 %v2953, %v3727
        %v3828 = vmul.f32 %v2968, %v3728
        %v3829 = vmul.f32 %v2983, %v3729
        %v3830 = vmul.f32 %v2998, %v3730
        %v3831 = vmul.f32 %v3013, %v3731
        %v3832 = vmul.f32 %v3028, %v3732
        %v3833 = vmul.f32 %v3043, %v3733
        %v3834 = vmul.f32 %v3058, %v3734
        %v3835 = vmul.f32 %v3073, %v3735
        %v3836 = vmul.f32 %v3088, %v3736
        %v3837 = vmul.f32 %v3103, %v3737
        %v3838 = vmul.f32 %v3118, %v3738
        %v3839 = vmul.f32 %v3133, %v3739
        %v3840 = vmul.f32 %v3148, %v3740
        %v3841 = vmul.f32 %v3163, %v3741
        %v3842 = vmul.f32 %v3178, %v3742
        %v3843 = vmul.f32 %v3193, %v3743
        %v3844 = vmul.f32 %v3208, %v3744
        %v3845 = vmul.f32 %v3223, %v3745
        %v3846 = vmul.f32 %v3238, %v3746
        %v3847 = vmul.f32 %v3253, %v3747
        %v3848 = vmul.f32 %v3268, %v3748
        %v3849 = vmul.f32 %v3283, %v3749
        %v3850 = vmul.f32 %v3298, %v3750
        %v3851 = vmul.f32 %v3313, %v3751
        %v3852 = vmul.f32 %v3328, %v3752
        %v3853 = vmul.f32 %v3343, %v3753
        %v3854 = vmul.f32 %v3358, %v3754
        %v3855 = vmul.f32 %v3373, %v3755
        %v3856 = vmul.f32 %v3388, %v3756
        %v3857 = vmul.f32 %v3403, %v3757
        %v3858 = vmul.f32 %v3418, %v3758
        %v3859 = vmul.f32 %v3433, %v3759
        %v3860 = vmul.f32 %v3448, %v3760
        %v3861 = vmul.f32 %v3463, %v3761
        %v3862 = vmul.f32 %v3478, %v3762
        %v3863 = vmul.f32 %v3493, %v3763
        %v3864 = vmul.f32 %v3508, %v3764
        %v3865 = vmul.f32 %v3523, %v3765
        %v3866 = vmul.f32 %v3538, %v3766
        %v3867 = vmul.f32 %v3553, %v3767
        %v3868 = vmul.f32 %v3568, %v3768
        %v3869 = vadd.f32 %v3769, 1.4214138
        %v3870 = vadd.f32 %v3770, 1.4214138
        %v3871 = vadd.f32 %v3771, 1.4214138
        %v3872 = vadd.f32 %v3772, 1.4214138
        %v3873 = vadd.f32 %v3773, 1.4214138
        %v3874 = vadd.f32 %v3774, 1.4214138
        %v3875 = vadd.f32 %v3775, 1.4214138
        %v3876 = vadd.f32 %v3776, 1.4214138
        %v3877 = vadd.f32 %v3777, 1.4214138
        %v3878 = vadd.f32 %v3778, 1.4214138
        %v3879 = vadd.f32 %v3779, 1.4214138
        %v3880 = vadd.f32 %v3780, 1.4214138
        %v3881 = vadd.f32 %v3781, 1.4214138
        %v3882 = vadd.f32 %v3782, 1.4214138
        %v3883 = vadd.f32 %v3783, 1.4214138
        %v3884 = vadd.f32 %v3784, 1.4214138
        %v3885 = vadd.f32 %v3785, 1.4214138
        %v3886 = vadd.f32 %v3786, 1.4214138
        %v3887 = vadd.f32 %v3787, 1.4214138
        %v3888 = vadd.f32 %v3788, 1.4214138
        %v3889 = vadd.f32 %v3789, 1.4214138
        %v3890 = vadd.f32 %v3790, 1.4214138
        %v3891 = vadd.f32 %v3791, 1.4214138
        %v3892 = vadd.f32 %v3792, 1.4214138
        %v3893 = vadd.f32 %v3793, 1.4214138
        %v3894 = vadd.f32 %v3794, 1.4214138
        %v3895 = vadd.f32 %v3795, 1.4214138
        %v3896 = vadd.f32 %v3796, 1.4214138
        %v3897 = vadd.f32 %v3797, 1.4214138
        %v3898 = vadd.f32 %v3798, 1.4214138
        %v3899 = vadd.f32 %v3799, 1.4214138
        %v3900 = vadd.f32 %v3800, 1.4214138
        %v3901 = vadd.f32 %v3801, 1.4214138
        %v3902 = vadd.f32 %v3802, 1.4214138
        %v3903 = vadd.f32 %v3803, 1.4214138
        %v3904 = vadd.f32 %v3804, 1.4214138
        %v3905 = vadd.f32 %v3805, 1.4214138
        %v3906 = vadd.f32 %v3806, 1.4214138
        %v3907 = vadd.f32 %v3807, 1.4214138
        %v3908 = vadd.f32 %v3808, 1.4214138
        %v3909 = vadd.f32 %v3809, 1.4214138
        %v3910 = vadd.f32 %v3810, 1.4214138
        %v3911 = vadd.f32 %v3811, 1.4214138
        %v3912 = vadd.f32 %v3812, 1.4214138
        %v3913 = vadd.f32 %v3813, 1.4214138
        %v3914 = vadd.f32 %v3814, 1.4214138
        %v3915 = vadd.f32 %v3815, 1.4214138
        %v3916 = vadd.f32 %v3816, 1.4214138
        %v3917 = vadd.f32 %v3817, 1.4214138
        %v3918 = vadd.f32 %v3818, 1.4214138
        %v3919 = vadd.f32 %v3819, 1.4214138
        %v3920 = vadd.f32 %v3820, 1.4214138
        %v3921 = vadd.f32 %v3821, 1.4214138
        %v3922 = vadd.f32 %v3822, 1.4214138
        %v3923 = vadd.f32 %v3823, 1.4214138
        %v3924 = vadd.f32 %v3824, 1.4214138
        %v3925 = vadd.f32 %v3825, 1.4214138
        %v3926 = vadd.f32 %v3826, 1.4214138
        %v3927 = vadd.f32 %v3827, 1.4214138
        %v3928 = vadd.f32 %v3828, 1.4214138
        %v3929 = vadd.f32 %v3829, 1.4214138
        %v3930 = vadd.f32 %v3830, 1.4214138
        %v3931 = vadd.f32 %v3831, 1.4214138
        %v3932 = vadd.f32 %v3832, 1.4214138
        %v3933 = vadd.f32 %v3833, 1.4214138
        %v3934 = vadd.f32 %v3834, 1.4214138
        %v3935 = vadd.f32 %v3835, 1.4214138
        %v3936 = vadd.f32 %v3836, 1.4214138
        %v3937 = vadd.f32 %v3837, 1.4214138
        %v3938 = vadd.f32 %v3838, 1.4214138
        %v3939 = vadd.f32 %v3839, 1.4214138
        %v3940 = vadd.f32 %v3840, 1.4214138
        %v3941 = vadd.f32 %v3841, 1.4214138
        %v3942 = vadd.f32 %v3842, 1.4214138
        %v3943 = vadd.f32 %v3843, 1.4214138
        %v3944 = vadd.f32 %v3844, 1.4214138
        %v3945 = vadd.f32 %v3845, 1.4214138
        %v3946 = vadd.f32 %v3846, 1.4214138
        %v3947 = vadd.f32 %v3847, 1.4214138
        %v3948 = vadd.f32 %v3848, 1.4214138
        %v3949 = vadd.f32 %v3849, 1.4214138
        %v3950 = vadd.f32 %v3850, 1.4214138
        %v3951 = vadd.f32 %v3851, 1.4214138
        %v3952 = vadd.f32 %v3852, 1.4214138
        %v3953 = vadd.f32 %v3853, 1.4214138
        %v3954 = vadd.f32 %v3854, 1.4214138
        %v3955 = vadd.f32 %v3855, 1.4214138
        %v3956 = vadd.f32 %v3856, 1.4214138
        %v3957 = vadd.f32 %v3857, 1.4214138
        %v3958 = vadd.f32 %v3858, 1.4214138
        %v3959 = vadd.f32 %v3859, 1.4214138
        %v3960 = vadd.f32 %v3860, 1.4214138
        %v3961 = vadd.f32 %v3861, 1.4214138
        %v3962 = vadd.f32 %v3862, 1.4214138
        %v3963 = vadd.f32 %v3863, 1.4214138
        %v3964 = vadd.f32 %v3864, 1.4214138
        %v3965 = vadd.f32 %v3865, 1.4214138
        %v3966 = vadd.f32 %v3866, 1.4214138
        %v3967 = vadd.f32 %v3867, 1.4214138
        %v3968 = vadd.f32 %v3868, 1.4214138
        %v3969 = vmul.f32 %v2083, %v3869
        %v3970 = vmul.f32 %v2098, %v3870
        %v3971 = vmul.f32 %v2113, %v3871
        %v3972 = vmul.f32 %v2128, %v3872
        %v3973 = vmul.f32 %v2143, %v3873
        %v3974 = vmul.f32 %v2158, %v3874
        %v3975 = vmul.f32 %v2173, %v3875
        %v3976 = vmul.f32 %v2188, %v3876
        %v3977 = vmul.f32 %v2203, %v3877
        %v3978 = vmul.f32 %v2218, %v3878
        %v3979 = vmul.f32 %v2233, %v3879
        %v3980 = vmul.f32 %v2248, %v3880
        %v3981 = vmul.f32 %v2263, %v3881
        %v3982 = vmul.f32 %v2278, %v3882
        %v3983 = vmul.f32 %v2293, %v3883
        %v3984 = vmul.f32 %v2308, %v3884
        %v3985 = vmul.f32 %v2323, %v3885
        %v3986 = vmul.f32 %v2338, %v3886
        %v3987 = vmul.f32 %v2353, %v3887
        %v3988 = vmul.f32 %v2368, %v3888
        %v3989 = vmul.f32 %v2383, %v3889
        %v3990 = vmul.f32 %v2398, %v3890
        %v3991 = vmul.f32 %v2413, %v3891
        %v3992 = vmul.f32 %v2428, %v3892
        %v3993 = vmul.f32 %v2443, %v3893
        %v3994 = vmul.f32 %v2458, %v3894
        %v3995 = vmul.f32 %v2473, %v3895
        %v3996 = vmul.f32 %v2488, %v3896
        %v3997 = vmul.f32 %v2503, %v3897
        %v3998 = vmul.f32 %v2518, %v3898
        %v3999 = vmul.f32 %v2533, %v3899
        %v4000 = vmul.f32 %v2548, %v3900
        %v4001 = vmul.f32 %v2563, %v3901
        %v4002 = vmul.f32 %v2578, %v3902
        %v4003 = vmul.f32 %v2593, %v3903
        %v4004 = vmul.f32 %v2608, %v3904
        %v4005 = vmul.f32 %v2623, %v3905
        %v4006 = vmul.f32 %v2638, %v3906
        %v4007 = vmul.f32 %v2653, %v3907
        %v4008 = vmul.f32 %v2668, %v3908
        %v4009 = vmul.f32 %v2683, %v3909
        %v4010 = vmul.f32 %v2698, %v3910
        %v4011 = vmul.f32 %v2713, %v3911
        %v4012 = vmul.f32 %v2728, %v3912
        %v4013 = vmul.f32 %v2743, %v3913
        %v4014 = vmul.f32 %v2758, %v3914
        %v4015 = vmul.f32 %v2773, %v3915
        %v4016 = vmul.f32 %v2788, %v3916
        %v4017 = vmul.f32 %v2803, %v3917
        %v4018 = vmul.f32 %v2818, %v3918
        %v4019 = vmul.f32 %v2833, %v3919
        %v4020 = vmul.f32 %v2848, %v3920
        %v4021 = vmul.f32 %v2863, %v3921
        %v4022 = vmul.f32 %v2878, %v3922
        %v4023 = vmul.f32 %v2893, %v3923
        %v4024 = vmul.f32 %v2908, %v3924
        %v4025 = vmul.f32 %v2923, %v3925
        %v4026 = vmul.f32 %v2938, %v3926
        %v4027 = vmul.f32 %v2953, %v3927
        %v4028 = vmul.f32 %v2968, %v3928
        %v4029 = vmul.f32 %v2983, %v3929
        %v4030 = vmul.f32 %v2998, %v3930
        %v4031 = vmul.f32 %v3013, %v3931
        %v4032 = vmul.f32 %v3028, %v3932
        %v4033 = vmul.f32 %v3043, %v3933
        %v4034 = vmul.f32 %v3058, %v3934
        %v4035 = vmul.f32 %v3073, %v3935
        %v4036 = vmul.f32 %v3088, %v3936
        %v4037 = vmul.f32 %v3103, %v3937
        %v4038 = vmul.f32 %v3118, %v3938
        %v4039 = vmul.f32 %v3133, %v3939
        %v4040 = vmul.f32 %v3148, %v3940
        %v4041 = vmul.f32 %v3163, %v3941
        %v4042 = vmul.f32 %v3178, %v3942
        %v4043 = vmul.f32 %v3193, %v3943
        %v4044 = vmul.f32 %v3208, %v3944
        %v4045 = vmul.f32 %v3223, %v3945
        %v4046 = vmul.f32 %v3238, %v3946
        %v4047 = vmul.f32 %v3253, %v3947
        %v4048 = vmul.f32 %v3268, %v3948
        %v4049 = vmul.f32 %v3283, %v3949
        %v4050 = vmul.f32 %v3298, %v3950
        %v4051 = vmul.f32 %v3313, %v3951
        %v4052 = vmul.f32 %v3328, %v3952
        %v4053 = vmul.f32 %v3343, %v3953
        %v4054 = vmul.f32 %v3358, %v3954
        %v4055 = vmul.f32 %v3373, %v3955
        %v4056 = vmul.f32 %v3388, %v3956
        %v4057 = vmul.f32 %v3403, %v3957
        %v4058 = vmul.f32 %v3418, %v3958
        %v4059 = vmul.f32 %v3433, %v3959
        %v4060 = vmul.f32 %v3448, %v3960
        %v4061 = vmul.f32 %v3463, %v3961
        %v4062 = vmul.f32 %v3478, %v3962
        %v4063 = vmul.f32 %v3493, %v3963
        %v4064 = vmul.f32 %v3508, %v3964
        %v4065 = vmul.f32 %v3523, %v3965
        %v4066 = vmul.f32 %v3538, %v3966
        %v4067 = vmul.f32 %v3553, %v3967
        %v4068 = vmul.f32 %v3568, %v3968
        %v4069 = vadd.f32 %v3969, -0.28449672
        %v4070 = vadd.f32 %v3970, -0.28449672
        %v4071 = vadd.f32 %v3971, -0.28449672
        %v4072 = vadd.f32 %v3972, -0.28449672
        %v4073 = vadd.f32 %v3973, -0.28449672
        %v4074 = vadd.f32 %v3974, -0.28449672
        %v4075 = vadd.f32 %v3975, -0.28449672
        %v4076 = vadd.f32 %v3976, -0.28449672
        %v4077 = vadd.f32 %v3977, -0.28449672
        %v4078 = vadd.f32 %v3978, -0.28449672
        %v4079 = vadd.f32 %v3979, -0.28449672
        %v4080 = vadd.f32 %v3980, -0.28449672
        %v4081 = vadd.f32 %v3981, -0.28449672
        %v4082 = vadd.f32 %v3982, -0.28449672
        %v4083 = vadd.f32 %v3983, -0.28449672
        %v4084 = vadd.f32 %v3984, -0.28449672
        %v4085 = vadd.f32 %v3985, -0.28449672
        %v4086 = vadd.f32 %v3986, -0.28449672
        %v4087 = vadd.f32 %v3987, -0.28449672
        %v4088 = vadd.f32 %v3988, -0.28449672
        %v4089 = vadd.f32 %v3989, -0.28449672
        %v4090 = vadd.f32 %v3990, -0.28449672
        %v4091 = vadd.f32 %v3991, -0.28449672
        %v4092 = vadd.f32 %v3992, -0.28449672
        %v4093 = vadd.f32 %v3993, -0.28449672
        %v4094 = vadd.f32 %v3994, -0.28449672
        %v4095 = vadd.f32 %v3995, -0.28449672
        %v4096 = vadd.f32 %v3996, -0.28449672
        %v4097 = vadd.f32 %v3997, -0.28449672
        %v4098 = vadd.f32 %v3998, -0.28449672
        %v4099 = vadd.f32 %v3999, -0.28449672
        %v4100 = vadd.f32 %v4000, -0.28449672
        %v4101 = vadd.f32 %v4001, -0.28449672
        %v4102 = vadd.f32 %v4002, -0.28449672
        %v4103 = vadd.f32 %v4003, -0.28449672
        %v4104 = vadd.f32 %v4004, -0.28449672
        %v4105 = vadd.f32 %v4005, -0.28449672
        %v4106 = vadd.f32 %v4006, -0.28449672
        %v4107 = vadd.f32 %v4007, -0.28449672
        %v4108 = vadd.f32 %v4008, -0.28449672
        %v4109 = vadd.f32 %v4009, -0.28449672
        %v4110 = vadd.f32 %v4010, -0.28449672
        %v4111 = vadd.f32 %v4011, -0.28449672
        %v4112 = vadd.f32 %v4012, -0.28449672
        %v4113 = vadd.f32 %v4013, -0.28449672
        %v4114 = vadd.f32 %v4014, -0.28449672
        %v4115 = vadd.f32 %v4015, -0.28449672
        %v4116 = vadd.f32 %v4016, -0.28449672
        %v4117 = vadd.f32 %v4017, -0.28449672
        %v4118 = vadd.f32 %v4018, -0.28449672
        %v4119 = vadd.f32 %v4019, -0.28449672
        %v4120 = vadd.f32 %v4020, -0.28449672
        %v4121 = vadd.f32 %v4021, -0.28449672
        %v4122 = vadd.f32 %v4022, -0.28449672
        %v4123 = vadd.f32 %v4023, -0.28449672
        %v4124 = vadd.f32 %v4024, -0.28449672
        %v4125 = vadd.f32 %v4025, -0.28449672
        %v4126 = vadd.f32 %v4026, -0.28449672
        %v4127 = vadd.f32 %v4027, -0.28449672
        %v4128 = vadd.f32 %v4028, -0.28449672
        %v4129 = vadd.f32 %v4029, -0.28449672
        %v4130 = vadd.f32 %v4030, -0.28449672
        %v4131 = vadd.f32 %v4031, -0.28449672
        %v4132 = vadd.f32 %v4032, -0.28449672
        %v4133 = vadd.f32 %v4033, -0.28449672
        %v4134 = vadd.f32 %v4034, -0.28449672
        %v4135 = vadd.f32 %v4035, -0.28449672
        %v4136 = vadd.f32 %v4036, -0.28449672
        %v4137 = vadd.f32 %v4037, -0.28449672
        %v4138 = vadd.f32 %v4038, -0.28449672
        %v4139 = vadd.f32 %v4039, -0.28449672
        %v4140 = vadd.f32 %v4040, -0.28449672
        %v4141 = vadd.f32 %v4041, -0.28449672
        %v4142 = vadd.f32 %v4042, -0.28449672
        %v4143 = vadd.f32 %v4043, -0.28449672
        %v4144 = vadd.f32 %v4044, -0.28449672
        %v4145 = vadd.f32 %v4045, -0.28449672
        %v4146 = vadd.f32 %v4046, -0.28449672
        %v4147 = vadd.f32 %v4047, -0.28449672
        %v4148 = vadd.f32 %v4048, -0.28449672
        %v4149 = vadd.f32 %v4049, -0.28449672
        %v4150 = vadd.f32 %v4050, -0.28449672
        %v4151 = vadd.f32 %v4051, -0.28449672
        %v4152 = vadd.f32 %v4052, -0.28449672
        %v4153 = vadd.f32 %v4053, -0.28449672
        %v4154 = vadd.f32 %v4054, -0.28449672
        %v4155 = vadd.f32 %v4055, -0.28449672
        %v4156 = vadd.f32 %v4056, -0.28449672
        %v4157 = vadd.f32 %v4057, -0.28449672
        %v4158 = vadd.f32 %v4058, -0.28449672
        %v4159 = vadd.f32 %v4059, -0.28449672
        %v4160 = vadd.f32 %v4060, -0.28449672
        %v4161 = vadd.f32 %v4061, -0.28449672
        %v4162 = vadd.f32 %v4062, -0.28449672
        %v4163 = vadd.f32 %v4063, -0.28449672
        %v4164 = vadd.f32 %v4064, -0.28449672
        %v4165 = vadd.f32 %v4065, -0.28449672
        %v4166 = vadd.f32 %v4066, -0.28449672
        %v4167 = vadd.f32 %v4067, -0.28449672
        %v4168 = vadd.f32 %v4068, -0.28449672
        %v4169 = vmul.f32 %v2083, %v4069
        %v4170 = vmul.f32 %v2098, %v4070
        %v4171 = vmul.f32 %v2113, %v4071
        %v4172 = vmul.f32 %v2128, %v4072
        %v4173 = vmul.f32 %v2143, %v4073
        %v4174 = vmul.f32 %v2158, %v4074
        %v4175 = vmul.f32 %v2173, %v4075
        %v4176 = vmul.f32 %v2188, %v4076
        %v4177 = vmul.f32 %v2203, %v4077
        %v4178 = vmul.f32 %v2218, %v4078
        %v4179 = vmul.f32 %v2233, %v4079
        %v4180 = vmul.f32 %v2248, %v4080
        %v4181 = vmul.f32 %v2263, %v4081
        %v4182 = vmul.f32 %v2278, %v4082
        %v4183 = vmul.f32 %v2293, %v4083
        %v4184 = vmul.f32 %v2308, %v4084
        %v4185 = vmul.f32 %v2323, %v4085
        %v4186 = vmul.f32 %v2338, %v4086
        %v4187 = vmul.f32 %v2353, %v4087
        %v4188 = vmul.f32 %v2368, %v4088
        %v4189 = vmul.f32 %v2383, %v4089
        %v4190 = vmul.f32 %v2398, %v4090
        %v4191 = vmul.f32 %v2413, %v4091
        %v4192 = vmul.f32 %v2428, %v4092
        %v4193 = vmul.f32 %v2443, %v4093
        %v4194 = vmul.f32 %v2458, %v4094
        %v4195 = vmul.f32 %v2473, %v4095
        %v4196 = vmul.f32 %v2488, %v4096
        %v4197 = vmul.f32 %v2503, %v4097
        %v4198 = vmul.f32 %v2518, %v4098
        %v4199 = vmul.f32 %v2533, %v4099
        %v4200 = vmul.f32 %v2548, %v4100
        %v4201 = vmul.f32 %v2563, %v4101
        %v4202 = vmul.f32 %v2578, %v4102
        %v4203 = vmul.f32 %v2593, %v4103
        %v4204 = vmul.f32 %v2608, %v4104
        %v4205 = vmul.f32 %v2623, %v4105
        %v4206 = vmul.f32 %v2638, %v4106
        %v4207 = vmul.f32 %v2653, %v4107
        %v4208 = vmul.f32 %v2668, %v4108
        %v4209 = vmul.f32 %v2683, %v4109
        %v4210 = vmul.f32 %v2698, %v4110
        %v4211 = vmul.f32 %v2713, %v4111
        %v4212 = vmul.f32 %v2728, %v4112
        %v4213 = vmul.f32 %v2743, %v4113
        %v4214 = vmul.f32 %v2758, %v4114
        %v4215 = vmul.f32 %v2773, %v4115
        %v4216 = vmul.f32 %v2788, %v4116
        %v4217 = vmul.f32 %v2803, %v4117
        %v4218 = vmul.f32 %v2818, %v4118
        %v4219 = vmul.f32 %v2833, %v4119
        %v4220 = vmul.f32 %v2848, %v4120
        %v4221 = vmul.f32 %v2863, %v4121
        %v4222 = vmul.f32 %v2878, %v4122
        %v4223 = vmul.f32 %v2893, %v4123
        %v4224 = vmul.f32 %v2908, %v4124
        %v4225 = vmul.f32 %v2923, %v4125
        %v4226 = vmul.f32 %v2938, %v4126
        %v4227 = vmul.f32 %v2953, %v4127
        %v4228 = vmul.f32 %v2968, %v4128
        %v4229 = vmul.f32 %v2983, %v4129
        %v4230 = vmul.f32 %v2998, %v4130
        %v4231 = vmul.f32 %v3013, %v4131
        %v4232 = vmul.f32 %v3028, %v4132
        %v4233 = vmul.f32 %v3043, %v4133
        %v4234 = vmul.f32 %v3058, %v4134
        %v4235 = vmul.f32 %v3073, %v4135
        %v4236 = vmul.f32 %v3088, %v4136
        %v4237 = vmul.f32 %v3103, %v4137
        %v4238 = vmul.f32 %v3118, %v4138
        %v4239 = vmul.f32 %v3133, %v4139
        %v4240 = vmul.f32 %v3148, %v4140
        %v4241 = vmul.f32 %v3163, %v4141
        %v4242 = vmul.f32 %v3178, %v4142
        %v4243 = vmul.f32 %v3193, %v4143
        %v4244 = vmul.f32 %v3208, %v4144
        %v4245 = vmul.f32 %v3223, %v4145
        %v4246 = vmul.f32 %v3238, %v4146
        %v4247 = vmul.f32 %v3253, %v4147
        %v4248 = vmul.f32 %v3268, %v4148
        %v4249 = vmul.f32 %v3283, %v4149
        %v4250 = vmul.f32 %v3298, %v4150
        %v4251 = vmul.f32 %v3313, %v4151
        %v4252 = vmul.f32 %v3328, %v4152
        %v4253 = vmul.f32 %v3343, %v4153
        %v4254 = vmul.f32 %v3358, %v4154
        %v4255 = vmul.f32 %v3373, %v4155
        %v4256 = vmul.f32 %v3388, %v4156
        %v4257 = vmul.f32 %v3403, %v4157
        %v4258 = vmul.f32 %v3418, %v4158
        %v4259 = vmul.f32 %v3433, %v4159
        %v4260 = vmul.f32 %v3448, %v4160
        %v4261 = vmul.f32 %v3463, %v4161
        %v4262 = vmul.f32 %v3478, %v4162
        %v4263 = vmul.f32 %v3493, %v4163
        %v4264 = vmul.f32 %v3508, %v4164
        %v4265 = vmul.f32 %v3523, %v4165
        %v4266 = vmul.f32 %v3538, %v4166
        %v4267 = vmul.f32 %v3553, %v4167
        %v4268 = vmul.f32 %v3568, %v4168
        %v4269 = vadd.f32 %v4169, 0.2548296
        %v4270 = vadd.f32 %v4170, 0.2548296
        %v4271 = vadd.f32 %v4171, 0.2548296
        %v4272 = vadd.f32 %v4172, 0.2548296
        %v4273 = vadd.f32 %v4173, 0.2548296
        %v4274 = vadd.f32 %v4174, 0.2548296
        %v4275 = vadd.f32 %v4175, 0.2548296
        %v4276 = vadd.f32 %v4176, 0.2548296
        %v4277 = vadd.f32 %v4177, 0.2548296
        %v4278 = vadd.f32 %v4178, 0.2548296
        %v4279 = vadd.f32 %v4179, 0.2548296
        %v4280 = vadd.f32 %v4180, 0.2548296
        %v4281 = vadd.f32 %v4181, 0.2548296
        %v4282 = vadd.f32 %v4182, 0.2548296
        %v4283 = vadd.f32 %v4183, 0.2548296
        %v4284 = vadd.f32 %v4184, 0.2548296
        %v4285 = vadd.f32 %v4185, 0.2548296
        %v4286 = vadd.f32 %v4186, 0.2548296
        %v4287 = vadd.f32 %v4187, 0.2548296
        %v4288 = vadd.f32 %v4188, 0.2548296
        %v4289 = vadd.f32 %v4189, 0.2548296
        %v4290 = vadd.f32 %v4190, 0.2548296
        %v4291 = vadd.f32 %v4191, 0.2548296
        %v4292 = vadd.f32 %v4192, 0.2548296
        %v4293 = vadd.f32 %v4193, 0.2548296
        %v4294 = vadd.f32 %v4194, 0.2548296
        %v4295 = vadd.f32 %v4195, 0.2548296
        %v4296 = vadd.f32 %v4196, 0.2548296
        %v4297 = vadd.f32 %v4197, 0.2548296
        %v4298 = vadd.f32 %v4198, 0.2548296
        %v4299 = vadd.f32 %v4199, 0.2548296
        %v4300 = vadd.f32 %v4200, 0.2548296
        %v4301 = vadd.f32 %v4201, 0.2548296
        %v4302 = vadd.f32 %v4202, 0.2548296
        %v4303 = vadd.f32 %v4203, 0.2548296
        %v4304 = vadd.f32 %v4204, 0.2548296
        %v4305 = vadd.f32 %v4205, 0.2548296
        %v4306 = vadd.f32 %v4206, 0.2548296
        %v4307 = vadd.f32 %v4207, 0.2548296
        %v4308 = vadd.f32 %v4208, 0.2548296
        %v4309 = vadd.f32 %v4209, 0.2548296
        %v4310 = vadd.f32 %v4210, 0.2548296
        %v4311 = vadd.f32 %v4211, 0.2548296
        %v4312 = vadd.f32 %v4212, 0.2548296
        %v4313 = vadd.f32 %v4213, 0.2548296
        %v4314 = vadd.f32 %v4214, 0.2548296
        %v4315 = vadd.f32 %v4215, 0.2548296
        %v4316 = vadd.f32 %v4216, 0.2548296
        %v4317 = vadd.f32 %v4217, 0.2548296
        %v4318 = vadd.f32 %v4218, 0.2548296
        %v4319 = vadd.f32 %v4219, 0.2548296
        %v4320 = vadd.f32 %v4220, 0.2548296
        %v4321 = vadd.f32 %v4221, 0.2548296
        %v4322 = vadd.f32 %v4222, 0.2548296
        %v4323 = vadd.f32 %v4223, 0.2548296
        %v4324 = vadd.f32 %v4224, 0.2548296
        %v4325 = vadd.f32 %v4225, 0.2548296
        %v4326 = vadd.f32 %v4226, 0.2548296
        %v4327 = vadd.f32 %v4227, 0.2548296
        %v4328 = vadd.f32 %v4228, 0.2548296
        %v4329 = vadd.f32 %v4229, 0.2548296
        %v4330 = vadd.f32 %v4230, 0.2548296
        %v4331 = vadd.f32 %v4231, 0.2548296
        %v4332 = vadd.f32 %v4232, 0.2548296
        %v4333 = vadd.f32 %v4233, 0.2548296
        %v4334 = vadd.f32 %v4234, 0.2548296
        %v4335 = vadd.f32 %v4235, 0.2548296
        %v4336 = vadd.f32 %v4236, 0.2548296
        %v4337 = vadd.f32 %v4237, 0.2548296
        %v4338 = vadd.f32 %v4238, 0.2548296
        %v4339 = vadd.f32 %v4239, 0.2548296
        %v4340 = vadd.f32 %v4240, 0.2548296
        %v4341 = vadd.f32 %v4241, 0.2548296
        %v4342 = vadd.f32 %v4242, 0.2548296
        %v4343 = vadd.f32 %v4243, 0.2548296
        %v4344 = vadd.f32 %v4244, 0.2548296
        %v4345 = vadd.f32 %v4245, 0.2548296
        %v4346 = vadd.f32 %v4246, 0.2548296
        %v4347 = vadd.f32 %v4247, 0.2548296
        %v4348 = vadd.f32 %v4248, 0.2548296
        %v4349 = vadd.f32 %v4249, 0.2548296
        %v4350 = vadd.f32 %v4250, 0.2548296
        %v4351 = vadd.f32 %v4251, 0.2548296
        %v4352 = vadd.f32 %v4252, 0.2548296
        %v4353 = vadd.f32 %v4253, 0.2548296
        %v4354 = vadd.f32 %v4254, 0.2548296
        %v4355 = vadd.f32 %v4255, 0.2548296
        %v4356 = vadd.f32 %v4256, 0.2548296
        %v4357 = vadd.f32 %v4257, 0.2548296
        %v4358 = vadd.f32 %v4258, 0.2548296
        %v4359 = vadd.f32 %v4259, 0.2548296
        %v4360 = vadd.f32 %v4260, 0.2548296
        %v4361 = vadd.f32 %v4261, 0.2548296
        %v4362 = vadd.f32 %v4262, 0.2548296
        %v4363 = vadd.f32 %v4263, 0.2548296
        %v4364 = vadd.f32 %v4264, 0.2548296
        %v4365 = vadd.f32 %v4265, 0.2548296
        %v4366 = vadd.f32 %v4266, 0.2548296
        %v4367 = vadd.f32 %v4267, 0.2548296
        %v4368 = vadd.f32 %v4268, 0.2548296
        %v4369 = vmul.f32 %v2083, %v4269
        %v4370 = vmul.f32 %v2098, %v4270
        %v4371 = vmul.f32 %v2113, %v4271
        %v4372 = vmul.f32 %v2128, %v4272
        %v4373 = vmul.f32 %v2143, %v4273
        %v4374 = vmul.f32 %v2158, %v4274
        %v4375 = vmul.f32 %v2173, %v4275
        %v4376 = vmul.f32 %v2188, %v4276
        %v4377 = vmul.f32 %v2203, %v4277
        %v4378 = vmul.f32 %v2218, %v4278
        %v4379 = vmul.f32 %v2233, %v4279
        %v4380 = vmul.f32 %v2248, %v4280
        %v4381 = vmul.f32 %v2263, %v4281
        %v4382 = vmul.f32 %v2278, %v4282
        %v4383 = vmul.f32 %v2293, %v4283
        %v4384 = vmul.f32 %v2308, %v4284
        %v4385 = vmul.f32 %v2323, %v4285
        %v4386 = vmul.f32 %v2338, %v4286
        %v4387 = vmul.f32 %v2353, %v4287
        %v4388 = vmul.f32 %v2368, %v4288
        %v4389 = vmul.f32 %v2383, %v4289
        %v4390 = vmul.f32 %v2398, %v4290
        %v4391 = vmul.f32 %v2413, %v4291
        %v4392 = vmul.f32 %v2428, %v4292
        %v4393 = vmul.f32 %v2443, %v4293
        %v4394 = vmul.f32 %v2458, %v4294
        %v4395 = vmul.f32 %v2473, %v4295
        %v4396 = vmul.f32 %v2488, %v4296
        %v4397 = vmul.f32 %v2503, %v4297
        %v4398 = vmul.f32 %v2518, %v4298
        %v4399 = vmul.f32 %v2533, %v4299
        %v4400 = vmul.f32 %v2548, %v4300
        %v4401 = vmul.f32 %v2563, %v4301
        %v4402 = vmul.f32 %v2578, %v4302
        %v4403 = vmul.f32 %v2593, %v4303
        %v4404 = vmul.f32 %v2608, %v4304
        %v4405 = vmul.f32 %v2623, %v4305
        %v4406 = vmul.f32 %v2638, %v4306
        %v4407 = vmul.f32 %v2653, %v4307
        %v4408 = vmul.f32 %v2668, %v4308
        %v4409 = vmul.f32 %v2683, %v4309
        %v4410 = vmul.f32 %v2698, %v4310
        %v4411 = vmul.f32 %v2713, %v4311
        %v4412 = vmul.f32 %v2728, %v4312
        %v4413 = vmul.f32 %v2743, %v4313
        %v4414 = vmul.f32 %v2758, %v4314
        %v4415 = vmul.f32 %v2773, %v4315
        %v4416 = vmul.f32 %v2788, %v4316
        %v4417 = vmul.f32 %v2803, %v4317
        %v4418 = vmul.f32 %v2818, %v4318
        %v4419 = vmul.f32 %v2833, %v4319
        %v4420 = vmul.f32 %v2848, %v4320
        %v4421 = vmul.f32 %v2863, %v4321
        %v4422 = vmul.f32 %v2878, %v4322
        %v4423 = vmul.f32 %v2893, %v4323
        %v4424 = vmul.f32 %v2908, %v4324
        %v4425 = vmul.f32 %v2923, %v4325
        %v4426 = vmul.f32 %v2938, %v4326
        %v4427 = vmul.f32 %v2953, %v4327
        %v4428 = vmul.f32 %v2968, %v4328
        %v4429 = vmul.f32 %v2983, %v4329
        %v4430 = vmul.f32 %v2998, %v4330
        %v4431 = vmul.f32 %v3013, %v4331
        %v4432 = vmul.f32 %v3028, %v4332
        %v4433 = vmul.f32 %v3043, %v4333
        %v4434 = vmul.f32 %v3058, %v4334
        %v4435 = vmul.f32 %v3073, %v4335
        %v4436 = vmul.f32 %v3088, %v4336
        %v4437 = vmul.f32 %v3103, %v4337
        %v4438 = vmul.f32 %v3118, %v4338
        %v4439 = vmul.f32 %v3133, %v4339
        %v4440 = vmul.f32 %v3148, %v4340
        %v4441 = vmul.f32 %v3163, %v4341
        %v4442 = vmul.f32 %v3178, %v4342
        %v4443 = vmul.f32 %v3193, %v4343
        %v4444 = vmul.f32 %v3208, %v4344
        %v4445 = vmul.f32 %v3223, %v4345
        %v4446 = vmul.f32 %v3238, %v4346
        %v4447 = vmul.f32 %v3253, %v4347
        %v4448 = vmul.f32 %v3268, %v4348
        %v4449 = vmul.f32 %v3283, %v4349
        %v4450 = vmul.f32 %v3298, %v4350
        %v4451 = vmul.f32 %v3313, %v4351
        %v4452 = vmul.f32 %v3328, %v4352
        %v4453 = vmul.f32 %v3343, %v4353
        %v4454 = vmul.f32 %v3358, %v4354
        %v4455 = vmul.f32 %v3373, %v4355
        %v4456 = vmul.f32 %v3388, %v4356
        %v4457 = vmul.f32 %v3403, %v4357
        %v4458 = vmul.f32 %v3418, %v4358
        %v4459 = vmul.f32 %v3433, %v4359
        %v4460 = vmul.f32 %v3448, %v4360
        %v4461 = vmul.f32 %v3463, %v4361
        %v4462 = vmul.f32 %v3478, %v4362
        %v4463 = vmul.f32 %v3493, %v4363
        %v4464 = vmul.f32 %v3508, %v4364
        %v4465 = vmul.f32 %v3523, %v4365
        %v4466 = vmul.f32 %v3538, %v4366
        %v4467 = vmul.f32 %v3553, %v4367
        %v4468 = vmul.f32 %v3568, %v4368
        %v4469 = vsub.f32 0.0, %v1769
        %v4470 = vsub.f32 0.0, %v1770
        %v4471 = vsub.f32 0.0, %v1771
        %v4472 = vsub.f32 0.0, %v1772
        %v4473 = vsub.f32 0.0, %v1773
        %v4474 = vsub.f32 0.0, %v1774
        %v4475 = vsub.f32 0.0, %v1775
        %v4476 = vsub.f32 0.0, %v1776
        %v4477 = vsub.f32 0.0, %v1777
        %v4478 = vsub.f32 0.0, %v1778
        %v4479 = vsub.f32 0.0, %v1779
        %v4480 = vsub.f32 0.0, %v1780
        %v4481 = vsub.f32 0.0, %v1781
        %v4482 = vsub.f32 0.0, %v1782
        %v4483 = vsub.f32 0.0, %v1783
        %v4484 = vsub.f32 0.0, %v1784
        %v4485 = vsub.f32 0.0, %v1785
        %v4486 = vsub.f32 0.0, %v1786
        %v4487 = vsub.f32 0.0, %v1787
        %v4488 = vsub.f32 0.0, %v1788
        %v4489 = vsub.f32 0.0, %v1789
        %v4490 = vsub.f32 0.0, %v1790
        %v4491 = vsub.f32 0.0, %v1791
        %v4492 = vsub.f32 0.0, %v1792
        %v4493 = vsub.f32 0.0, %v1793
        %v4494 = vsub.f32 0.0, %v1794
        %v4495 = vsub.f32 0.0, %v1795
        %v4496 = vsub.f32 0.0, %v1796
        %v4497 = vsub.f32 0.0, %v1797
        %v4498 = vsub.f32 0.0, %v1798
        %v4499 = vsub.f32 0.0, %v1799
        %v4500 = vsub.f32 0.0, %v1800
        %v4501 = vsub.f32 0.0, %v1801
        %v4502 = vsub.f32 0.0, %v1802
        %v4503 = vsub.f32 0.0, %v1803
        %v4504 = vsub.f32 0.0, %v1804
        %v4505 = vsub.f32 0.0, %v1805
        %v4506 = vsub.f32 0.0, %v1806
        %v4507 = vsub.f32 0.0, %v1807
        %v4508 = vsub.f32 0.0, %v1808
        %v4509 = vsub.f32 0.0, %v1809
        %v4510 = vsub.f32 0.0, %v1810
        %v4511 = vsub.f32 0.0, %v1811
        %v4512 = vsub.f32 0.0, %v1812
        %v4513 = vsub.f32 0.0, %v1813
        %v4514 = vsub.f32 0.0, %v1814
        %v4515 = vsub.f32 0.0, %v1815
        %v4516 = vsub.f32 0.0, %v1816
        %v4517 = vsub.f32 0.0, %v1817
        %v4518 = vsub.f32 0.0, %v1818
        %v4519 = vsub.f32 0.0, %v1819
        %v4520 = vsub.f32 0.0, %v1820
        %v4521 = vsub.f32 0.0, %v1821
        %v4522 = vsub.f32 0.0, %v1822
        %v4523 = vsub.f32 0.0, %v1823
        %v4524 = vsub.f32 0.0, %v1824
        %v4525 = vsub.f32 0.0, %v1825
        %v4526 = vsub.f32 0.0, %v1826
        %v4527 = vsub.f32 0.0, %v1827
        %v4528 = vsub.f32 0.0, %v1828
        %v4529 = vsub.f32 0.0, %v1829
        %v4530 = vsub.f32 0.0, %v1830
        %v4531 = vsub.f32 0.0, %v1831
        %v4532 = vsub.f32 0.0, %v1832
        %v4533 = vsub.f32 0.0, %v1833
        %v4534 = vsub.f32 0.0, %v1834
        %v4535 = vsub.f32 0.0, %v1835
        %v4536 = vsub.f32 0.0, %v1836
        %v4537 = vsub.f32 0.0, %v1837
        %v4538 = vsub.f32 0.0, %v1838
        %v4539 = vsub.f32 0.0, %v1839
        %v4540 = vsub.f32 0.0, %v1840
        %v4541 = vsub.f32 0.0, %v1841
        %v4542 = vsub.f32 0.0, %v1842
        %v4543 = vsub.f32 0.0, %v1843
        %v4544 = vsub.f32 0.0, %v1844
        %v4545 = vsub.f32 0.0, %v1845
        %v4546 = vsub.f32 0.0, %v1846
        %v4547 = vsub.f32 0.0, %v1847
        %v4548 = vsub.f32 0.0, %v1848
        %v4549 = vsub.f32 0.0, %v1849
        %v4550 = vsub.f32 0.0, %v1850
        %v4551 = vsub.f32 0.0, %v1851
        %v4552 = vsub.f32 0.0, %v1852
        %v4553 = vsub.f32 0.0, %v1853
        %v4554 = vsub.f32 0.0, %v1854
        %v4555 = vsub.f32 0.0, %v1855
        %v4556 = vsub.f32 0.0, %v1856
        %v4557 = vsub.f32 0.0, %v1857
        %v4558 = vsub.f32 0.0, %v1858
        %v4559 = vsub.f32 0.0, %v1859
        %v4560 = vsub.f32 0.0, %v1860
        %v4561 = vsub.f32 0.0, %v1861
        %v4562 = vsub.f32 0.0, %v1862
        %v4563 = vsub.f32 0.0, %v1863
        %v4564 = vsub.f32 0.0, %v1864
        %v4565 = vsub.f32 0.0, %v1865
        %v4566 = vsub.f32 0.0, %v1866
        %v4567 = vsub.f32 0.0, %v1867
        %v4568 = vsub.f32 0.0, %v1868
        %v4569 = vmul.f32 %v4469, %v1769
        %v4570 = vmul.f32 %v4470, %v1770
        %v4571 = vmul.f32 %v4471, %v1771
        %v4572 = vmul.f32 %v4472, %v1772
        %v4573 = vmul.f32 %v4473, %v1773
        %v4574 = vmul.f32 %v4474, %v1774
        %v4575 = vmul.f32 %v4475, %v1775
        %v4576 = vmul.f32 %v4476, %v1776
        %v4577 = vmul.f32 %v4477, %v1777
        %v4578 = vmul.f32 %v4478, %v1778
        %v4579 = vmul.f32 %v4479, %v1779
        %v4580 = vmul.f32 %v4480, %v1780
        %v4581 = vmul.f32 %v4481, %v1781
        %v4582 = vmul.f32 %v4482, %v1782
        %v4583 = vmul.f32 %v4483, %v1783
        %v4584 = vmul.f32 %v4484, %v1784
        %v4585 = vmul.f32 %v4485, %v1785
        %v4586 = vmul.f32 %v4486, %v1786
        %v4587 = vmul.f32 %v4487, %v1787
        %v4588 = vmul.f32 %v4488, %v1788
        %v4589 = vmul.f32 %v4489, %v1789
        %v4590 = vmul.f32 %v4490, %v1790
        %v4591 = vmul.f32 %v4491, %v1791
        %v4592 = vmul.f32 %v4492, %v1792
        %v4593 = vmul.f32 %v4493, %v1793
        %v4594 = vmul.f32 %v4494, %v1794
        %v4595 = vmul.f32 %v4495, %v1795
        %v4596 = vmul.f32 %v4496, %v1796
        %v4597 = vmul.f32 %v4497, %v1797
        %v4598 = vmul.f32 %v4498, %v1798
        %v4599 = vmul.f32 %v4499, %v1799
        %v4600 = vmul.f32 %v4500, %v1800
        %v4601 = vmul.f32 %v4501, %v1801
        %v4602 = vmul.f32 %v4502, %v1802
        %v4603 = vmul.f32 %v4503, %v1803
        %v4604 = vmul.f32 %v4504, %v1804
        %v4605 = vmul.f32 %v4505, %v1805
        %v4606 = vmul.f32 %v4506, %v1806
        %v4607 = vmul.f32 %v4507, %v1807
        %v4608 = vmul.f32 %v4508, %v1808
        %v4609 = vmul.f32 %v4509, %v1809
        %v4610 = vmul.f32 %v4510, %v1810
        %v4611 = vmul.f32 %v4511, %v1811
        %v4612 = vmul.f32 %v4512, %v1812
        %v4613 = vmul.f32 %v4513, %v1813
        %v4614 = vmul.f32 %v4514, %v1814
        %v4615 = vmul.f32 %v4515, %v1815
        %v4616 = vmul.f32 %v4516, %v1816
        %v4617 = vmul.f32 %v4517, %v1817
        %v4618 = vmul.f32 %v4518, %v1818
        %v4619 = vmul.f32 %v4519, %v1819
        %v4620 = vmul.f32 %v4520, %v1820
        %v4621 = vmul.f32 %v4521, %v1821
        %v4622 = vmul.f32 %v4522, %v1822
        %v4623 = vmul.f32 %v4523, %v1823
        %v4624 = vmul.f32 %v4524, %v1824
        %v4625 = vmul.f32 %v4525, %v1825
        %v4626 = vmul.f32 %v4526, %v1826
        %v4627 = vmul.f32 %v4527, %v1827
        %v4628 = vmul.f32 %v4528, %v1828
        %v4629 = vmul.f32 %v4529, %v1829
        %v4630 = vmul.f32 %v4530, %v1830
        %v4631 = vmul.f32 %v4531, %v1831
        %v4632 = vmul.f32 %v4532, %v1832
        %v4633 = vmul.f32 %v4533, %v1833
        %v4634 = vmul.f32 %v4534, %v1834
        %v4635 = vmul.f32 %v4535, %v1835
        %v4636 = vmul.f32 %v4536, %v1836
        %v4637 = vmul.f32 %v4537, %v1837
        %v4638 = vmul.f32 %v4538, %v1838
        %v4639 = vmul.f32 %v4539, %v1839
        %v4640 = vmul.f32 %v4540, %v1840
        %v4641 = vmul.f32 %v4541, %v1841
        %v4642 = vmul.f32 %v4542, %v1842
        %v4643 = vmul.f32 %v4543, %v1843
        %v4644 = vmul.f32 %v4544, %v1844
        %v4645 = vmul.f32 %v4545, %v1845
        %v4646 = vmul.f32 %v4546, %v1846
        %v4647 = vmul.f32 %v4547, %v1847
        %v4648 = vmul.f32 %v4548, %v1848
        %v4649 = vmul.f32 %v4549, %v1849
        %v4650 = vmul.f32 %v4550, %v1850
        %v4651 = vmul.f32 %v4551, %v1851
        %v4652 = vmul.f32 %v4552, %v1852
        %v4653 = vmul.f32 %v4553, %v1853
        %v4654 = vmul.f32 %v4554, %v1854
        %v4655 = vmul.f32 %v4555, %v1855
        %v4656 = vmul.f32 %v4556, %v1856
        %v4657 = vmul.f32 %v4557, %v1857
        %v4658 = vmul.f32 %v4558, %v1858
        %v4659 = vmul.f32 %v4559, %v1859
        %v4660 = vmul.f32 %v4560, %v1860
        %v4661 = vmul.f32 %v4561, %v1861
        %v4662 = vmul.f32 %v4562, %v1862
        %v4663 = vmul.f32 %v4563, %v1863
        %v4664 = vmul.f32 %v4564, %v1864
        %v4665 = vmul.f32 %v4565, %v1865
        %v4666 = vmul.f32 %v4566, %v1866
        %v4667 = vmul.f32 %v4567, %v1867
        %v4668 = vmul.f32 %v4568, %v1868
        %v4669 = vmul.f32 %v4569, 1.442695
        %v4670 = vpow.pop %v4669
        %v4671 = vmul.f32 %v4570, 1.442695
        %v4672 = vpow.pop %v4671
        %v4673 = vmul.f32 %v4571, 1.442695
        %v4674 = vpow.pop %v4673
        %v4675 = vmul.f32 %v4572, 1.442695
        %v4676 = vpow.pop %v4675
        %v4677 = vmul.f32 %v4573, 1.442695
        %v4678 = vpow.pop %v4677
        %v4679 = vmul.f32 %v4574, 1.442695
        %v4680 = vpow.pop %v4679
        %v4681 = vmul.f32 %v4575, 1.442695
        %v4682 = vpow.pop %v4681
        %v4683 = vmul.f32 %v4576, 1.442695
        %v4684 = vpow.pop %v4683
        %v4685 = vmul.f32 %v4577, 1.442695
        %v4686 = vpow.pop %v4685
        %v4687 = vmul.f32 %v4578, 1.442695
        %v4688 = vpow.pop %v4687
        %v4689 = vmul.f32 %v4579, 1.442695
        %v4690 = vpow.pop %v4689
        %v4691 = vmul.f32 %v4580, 1.442695
        %v4692 = vpow.pop %v4691
        %v4693 = vmul.f32 %v4581, 1.442695
        %v4694 = vpow.pop %v4693
        %v4695 = vmul.f32 %v4582, 1.442695
        %v4696 = vpow.pop %v4695
        %v4697 = vmul.f32 %v4583, 1.442695
        %v4698 = vpow.pop %v4697
        %v4699 = vmul.f32 %v4584, 1.442695
        %v4700 = vpow.pop %v4699
        %v4701 = vmul.f32 %v4585, 1.442695
        %v4702 = vpow.pop %v4701
        %v4703 = vmul.f32 %v4586, 1.442695
        %v4704 = vpow.pop %v4703
        %v4705 = vmul.f32 %v4587, 1.442695
        %v4706 = vpow.pop %v4705
        %v4707 = vmul.f32 %v4588, 1.442695
        %v4708 = vpow.pop %v4707
        %v4709 = vmul.f32 %v4589, 1.442695
        %v4710 = vpow.pop %v4709
        %v4711 = vmul.f32 %v4590, 1.442695
        %v4712 = vpow.pop %v4711
        %v4713 = vmul.f32 %v4591, 1.442695
        %v4714 = vpow.pop %v4713
        %v4715 = vmul.f32 %v4592, 1.442695
        %v4716 = vpow.pop %v4715
        %v4717 = vmul.f32 %v4593, 1.442695
        %v4718 = vpow.pop %v4717
        %v4719 = vmul.f32 %v4594, 1.442695
        %v4720 = vpow.pop %v4719
        %v4721 = vmul.f32 %v4595, 1.442695
        %v4722 = vpow.pop %v4721
        %v4723 = vmul.f32 %v4596, 1.442695
        %v4724 = vpow.pop %v4723
        %v4725 = vmul.f32 %v4597, 1.442695
        %v4726 = vpow.pop %v4725
        %v4727 = vmul.f32 %v4598, 1.442695
        %v4728 = vpow.pop %v4727
        %v4729 = vmul.f32 %v4599, 1.442695
        %v4730 = vpow.pop %v4729
        %v4731 = vmul.f32 %v4600, 1.442695
        %v4732 = vpow.pop %v4731
        %v4733 = vmul.f32 %v4601, 1.442695
        %v4734 = vpow.pop %v4733
        %v4735 = vmul.f32 %v4602, 1.442695
        %v4736 = vpow.pop %v4735
        %v4737 = vmul.f32 %v4603, 1.442695
        %v4738 = vpow.pop %v4737
        %v4739 = vmul.f32 %v4604, 1.442695
        %v4740 = vpow.pop %v4739
        %v4741 = vmul.f32 %v4605, 1.442695
        %v4742 = vpow.pop %v4741
        %v4743 = vmul.f32 %v4606, 1.442695
        %v4744 = vpow.pop %v4743
        %v4745 = vmul.f32 %v4607, 1.442695
        %v4746 = vpow.pop %v4745
        %v4747 = vmul.f32 %v4608, 1.442695
        %v4748 = vpow.pop %v4747
        %v4749 = vmul.f32 %v4609, 1.442695
        %v4750 = vpow.pop %v4749
        %v4751 = vmul.f32 %v4610, 1.442695
        %v4752 = vpow.pop %v4751
        %v4753 = vmul.f32 %v4611, 1.442695
        %v4754 = vpow.pop %v4753
        %v4755 = vmul.f32 %v4612, 1.442695
        %v4756 = vpow.pop %v4755
        %v4757 = vmul.f32 %v4613, 1.442695
        %v4758 = vpow.pop %v4757
        %v4759 = vmul.f32 %v4614, 1.442695
        %v4760 = vpow.pop %v4759
        %v4761 = vmul.f32 %v4615, 1.442695
        %v4762 = vpow.pop %v4761
        %v4763 = vmul.f32 %v4616, 1.442695
        %v4764 = vpow.pop %v4763
        %v4765 = vmul.f32 %v4617, 1.442695
        %v4766 = vpow.pop %v4765
        %v4767 = vmul.f32 %v4618, 1.442695
        %v4768 = vpow.pop %v4767
        %v4769 = vmul.f32 %v4619, 1.442695
        %v4770 = vpow.pop %v4769
        %v4771 = vmul.f32 %v4620, 1.442695
        %v4772 = vpow.pop %v4771
        %v4773 = vmul.f32 %v4621, 1.442695
        %v4774 = vpow.pop %v4773
        %v4775 = vmul.f32 %v4622, 1.442695
        %v4776 = vpow.pop %v4775
        %v4777 = vmul.f32 %v4623, 1.442695
        %v4778 = vpow.pop %v4777
        %v4779 = vmul.f32 %v4624, 1.442695
        %v4780 = vpow.pop %v4779
        %v4781 = vmul.f32 %v4625, 1.442695
        %v4782 = vpow.pop %v4781
        %v4783 = vmul.f32 %v4626, 1.442695
        %v4784 = vpow.pop %v4783
        %v4785 = vmul.f32 %v4627, 1.442695
        %v4786 = vpow.pop %v4785
        %v4787 = vmul.f32 %v4628, 1.442695
        %v4788 = vpow.pop %v4787
        %v4789 = vmul.f32 %v4629, 1.442695
        %v4790 = vpow.pop %v4789
        %v4791 = vmul.f32 %v4630, 1.442695
        %v4792 = vpow.pop %v4791
        %v4793 = vmul.f32 %v4631, 1.442695
        %v4794 = vpow.pop %v4793
        %v4795 = vmul.f32 %v4632, 1.442695
        %v4796 = vpow.pop %v4795
        %v4797 = vmul.f32 %v4633, 1.442695
        %v4798 = vpow.pop %v4797
        %v4799 = vmul.f32 %v4634, 1.442695
        %v4800 = vpow.pop %v4799
        %v4801 = vmul.f32 %v4635, 1.442695
        %v4802 = vpow.pop %v4801
        %v4803 = vmul.f32 %v4636, 1.442695
        %v4804 = vpow.pop %v4803
        %v4805 = vmul.f32 %v4637, 1.442695
        %v4806 = vpow.pop %v4805
        %v4807 = vmul.f32 %v4638, 1.442695
        %v4808 = vpow.pop %v4807
        %v4809 = vmul.f32 %v4639, 1.442695
        %v4810 = vpow.pop %v4809
        %v4811 = vmul.f32 %v4640, 1.442695
        %v4812 = vpow.pop %v4811
        %v4813 = vmul.f32 %v4641, 1.442695
        %v4814 = vpow.pop %v4813
        %v4815 = vmul.f32 %v4642, 1.442695
        %v4816 = vpow.pop %v4815
        %v4817 = vmul.f32 %v4643, 1.442695
        %v4818 = vpow.pop %v4817
        %v4819 = vmul.f32 %v4644, 1.442695
        %v4820 = vpow.pop %v4819
        %v4821 = vmul.f32 %v4645, 1.442695
        %v4822 = vpow.pop %v4821
        %v4823 = vmul.f32 %v4646, 1.442695
        %v4824 = vpow.pop %v4823
        %v4825 = vmul.f32 %v4647, 1.442695
        %v4826 = vpow.pop %v4825
        %v4827 = vmul.f32 %v4648, 1.442695
        %v4828 = vpow.pop %v4827
        %v4829 = vmul.f32 %v4649, 1.442695
        %v4830 = vpow.pop %v4829
        %v4831 = vmul.f32 %v4650, 1.442695
        %v4832 = vpow.pop %v4831
        %v4833 = vmul.f32 %v4651, 1.442695
        %v4834 = vpow.pop %v4833
        %v4835 = vmul.f32 %v4652, 1.442695
        %v4836 = vpow.pop %v4835
        %v4837 = vmul.f32 %v4653, 1.442695
        %v4838 = vpow.pop %v4837
        %v4839 = vmul.f32 %v4654, 1.442695
        %v4840 = vpow.pop %v4839
        %v4841 = vmul.f32 %v4655, 1.442695
        %v4842 = vpow.pop %v4841
        %v4843 = vmul.f32 %v4656, 1.442695
        %v4844 = vpow.pop %v4843
        %v4845 = vmul.f32 %v4657, 1.442695
        %v4846 = vpow.pop %v4845
        %v4847 = vmul.f32 %v4658, 1.442695
        %v4848 = vpow.pop %v4847
        %v4849 = vmul.f32 %v4659, 1.442695
        %v4850 = vpow.pop %v4849
        %v4851 = vmul.f32 %v4660, 1.442695
        %v4852 = vpow.pop %v4851
        %v4853 = vmul.f32 %v4661, 1.442695
        %v4854 = vpow.pop %v4853
        %v4855 = vmul.f32 %v4662, 1.442695
        %v4856 = vpow.pop %v4855
        %v4857 = vmul.f32 %v4663, 1.442695
        %v4858 = vpow.pop %v4857
        %v4859 = vmul.f32 %v4664, 1.442695
        %v4860 = vpow.pop %v4859
        %v4861 = vmul.f32 %v4665, 1.442695
        %v4862 = vpow.pop %v4861
        %v4863 = vmul.f32 %v4666, 1.442695
        %v4864 = vpow.pop %v4863
        %v4865 = vmul.f32 %v4667, 1.442695
        %v4866 = vpow.pop %v4865
        %v4867 = vmul.f32 %v4668, 1.442695
        %v4868 = vpow.pop %v4867
        %v4869 = vmul.f32 %v4369, %v4670
        %v4870 = vmul.f32 %v4370, %v4672
        %v4871 = vmul.f32 %v4371, %v4674
        %v4872 = vmul.f32 %v4372, %v4676
        %v4873 = vmul.f32 %v4373, %v4678
        %v4874 = vmul.f32 %v4374, %v4680
        %v4875 = vmul.f32 %v4375, %v4682
        %v4876 = vmul.f32 %v4376, %v4684
        %v4877 = vmul.f32 %v4377, %v4686
        %v4878 = vmul.f32 %v4378, %v4688
        %v4879 = vmul.f32 %v4379, %v4690
        %v4880 = vmul.f32 %v4380, %v4692
        %v4881 = vmul.f32 %v4381, %v4694
        %v4882 = vmul.f32 %v4382, %v4696
        %v4883 = vmul.f32 %v4383, %v4698
        %v4884 = vmul.f32 %v4384, %v4700
        %v4885 = vmul.f32 %v4385, %v4702
        %v4886 = vmul.f32 %v4386, %v4704
        %v4887 = vmul.f32 %v4387, %v4706
        %v4888 = vmul.f32 %v4388, %v4708
        %v4889 = vmul.f32 %v4389, %v4710
        %v4890 = vmul.f32 %v4390, %v4712
        %v4891 = vmul.f32 %v4391, %v4714
        %v4892 = vmul.f32 %v4392, %v4716
        %v4893 = vmul.f32 %v4393, %v4718
        %v4894 = vmul.f32 %v4394, %v4720
        %v4895 = vmul.f32 %v4395, %v4722
        %v4896 = vmul.f32 %v4396, %v4724
        %v4897 = vmul.f32 %v4397, %v4726
        %v4898 = vmul.f32 %v4398, %v4728
        %v4899 = vmul.f32 %v4399, %v4730
        %v4900 = vmul.f32 %v4400, %v4732
        %v4901 = vmul.f32 %v4401, %v4734
        %v4902 = vmul.f32 %v4402, %v4736
        %v4903 = vmul.f32 %v4403, %v4738
        %v4904 = vmul.f32 %v4404, %v4740
        %v4905 = vmul.f32 %v4405, %v4742
        %v4906 = vmul.f32 %v4406, %v4744
        %v4907 = vmul.f32 %v4407, %v4746
        %v4908 = vmul.f32 %v4408, %v4748
        %v4909 = vmul.f32 %v4409, %v4750
        %v4910 = vmul.f32 %v4410, %v4752
        %v4911 = vmul.f32 %v4411, %v4754
        %v4912 = vmul.f32 %v4412, %v4756
        %v4913 = vmul.f32 %v4413, %v4758
        %v4914 = vmul.f32 %v4414, %v4760
        %v4915 = vmul.f32 %v4415, %v4762
        %v4916 = vmul.f32 %v4416, %v4764
        %v4917 = vmul.f32 %v4417, %v4766
        %v4918 = vmul.f32 %v4418, %v4768
        %v4919 = vmul.f32 %v4419, %v4770
        %v4920 = vmul.f32 %v4420, %v4772
        %v4921 = vmul.f32 %v4421, %v4774
        %v4922 = vmul.f32 %v4422, %v4776
        %v4923 = vmul.f32 %v4423, %v4778
        %v4924 = vmul.f32 %v4424, %v4780
        %v4925 = vmul.f32 %v4425, %v4782
        %v4926 = vmul.f32 %v4426, %v4784
        %v4927 = vmul.f32 %v4427, %v4786
        %v4928 = vmul.f32 %v4428, %v4788
        %v4929 = vmul.f32 %v4429, %v4790
        %v4930 = vmul.f32 %v4430, %v4792
        %v4931 = vmul.f32 %v4431, %v4794
        %v4932 = vmul.f32 %v4432, %v4796
        %v4933 = vmul.f32 %v4433, %v4798
        %v4934 = vmul.f32 %v4434, %v4800
        %v4935 = vmul.f32 %v4435, %v4802
        %v4936 = vmul.f32 %v4436, %v4804
        %v4937 = vmul.f32 %v4437, %v4806
        %v4938 = vmul.f32 %v4438, %v4808
        %v4939 = vmul.f32 %v4439, %v4810
        %v4940 = vmul.f32 %v4440, %v4812
        %v4941 = vmul.f32 %v4441, %v4814
        %v4942 = vmul.f32 %v4442, %v4816
        %v4943 = vmul.f32 %v4443, %v4818
        %v4944 = vmul.f32 %v4444, %v4820
        %v4945 = vmul.f32 %v4445, %v4822
        %v4946 = vmul.f32 %v4446, %v4824
        %v4947 = vmul.f32 %v4447, %v4826
        %v4948 = vmul.f32 %v4448, %v4828
        %v4949 = vmul.f32 %v4449, %v4830
        %v4950 = vmul.f32 %v4450, %v4832
        %v4951 = vmul.f32 %v4451, %v4834
        %v4952 = vmul.f32 %v4452, %v4836
        %v4953 = vmul.f32 %v4453, %v4838
        %v4954 = vmul.f32 %v4454, %v4840
        %v4955 = vmul.f32 %v4455, %v4842
        %v4956 = vmul.f32 %v4456, %v4844
        %v4957 = vmul.f32 %v4457, %v4846
        %v4958 = vmul.f32 %v4458, %v4848
        %v4959 = vmul.f32 %v4459, %v4850
        %v4960 = vmul.f32 %v4460, %v4852
        %v4961 = vmul.f32 %v4461, %v4854
        %v4962 = vmul.f32 %v4462, %v4856
        %v4963 = vmul.f32 %v4463, %v4858
        %v4964 = vmul.f32 %v4464, %v4860
        %v4965 = vmul.f32 %v4465, %v4862
        %v4966 = vmul.f32 %v4466, %v4864
        %v4967 = vmul.f32 %v4467, %v4866
        %v4968 = vmul.f32 %v4468, %v4868
        %v4969 = vsub.f32 1.0, %v4869
        %v4970 = vsub.f32 1.0, %v4870
        %v4971 = vsub.f32 1.0, %v4871
        %v4972 = vsub.f32 1.0, %v4872
        %v4973 = vsub.f32 1.0, %v4873
        %v4974 = vsub.f32 1.0, %v4874
        %v4975 = vsub.f32 1.0, %v4875
        %v4976 = vsub.f32 1.0, %v4876
        %v4977 = vsub.f32 1.0, %v4877
        %v4978 = vsub.f32 1.0, %v4878
        %v4979 = vsub.f32 1.0, %v4879
        %v4980 = vsub.f32 1.0, %v4880
        %v4981 = vsub.f32 1.0, %v4881
        %v4982 = vsub.f32 1.0, %v4882
        %v4983 = vsub.f32 1.0, %v4883
        %v4984 = vsub.f32 1.0, %v4884
        %v4985 = vsub.f32 1.0, %v4885
        %v4986 = vsub.f32 1.0, %v4886
        %v4987 = vsub.f32 1.0, %v4887
        %v4988 = vsub.f32 1.0, %v4888
        %v4989 = vsub.f32 1.0, %v4889
        %v4990 = vsub.f32 1.0, %v4890
        %v4991 = vsub.f32 1.0, %v4891
        %v4992 = vsub.f32 1.0, %v4892
        %v4993 = vsub.f32 1.0, %v4893
        %v4994 = vsub.f32 1.0, %v4894
        %v4995 = vsub.f32 1.0, %v4895
        %v4996 = vsub.f32 1.0, %v4896
        %v4997 = vsub.f32 1.0, %v4897
        %v4998 = vsub.f32 1.0, %v4898
        %v4999 = vsub.f32 1.0, %v4899
        %v5000 = vsub.f32 1.0, %v4900
        %v5001 = vsub.f32 1.0, %v4901
        %v5002 = vsub.f32 1.0, %v4902
        %v5003 = vsub.f32 1.0, %v4903
        %v5004 = vsub.f32 1.0, %v4904
        %v5005 = vsub.f32 1.0, %v4905
        %v5006 = vsub.f32 1.0, %v4906
        %v5007 = vsub.f32 1.0, %v4907
        %v5008 = vsub.f32 1.0, %v4908
        %v5009 = vsub.f32 1.0, %v4909
        %v5010 = vsub.f32 1.0, %v4910
        %v5011 = vsub.f32 1.0, %v4911
        %v5012 = vsub.f32 1.0, %v4912
        %v5013 = vsub.f32 1.0, %v4913
        %v5014 = vsub.f32 1.0, %v4914
        %v5015 = vsub.f32 1.0, %v4915
        %v5016 = vsub.f32 1.0, %v4916
        %v5017 = vsub.f32 1.0, %v4917
        %v5018 = vsub.f32 1.0, %v4918
        %v5019 = vsub.f32 1.0, %v4919
        %v5020 = vsub.f32 1.0, %v4920
        %v5021 = vsub.f32 1.0, %v4921
        %v5022 = vsub.f32 1.0, %v4922
        %v5023 = vsub.f32 1.0, %v4923
        %v5024 = vsub.f32 1.0, %v4924
        %v5025 = vsub.f32 1.0, %v4925
        %v5026 = vsub.f32 1.0, %v4926
        %v5027 = vsub.f32 1.0, %v4927
        %v5028 = vsub.f32 1.0, %v4928
        %v5029 = vsub.f32 1.0, %v4929
        %v5030 = vsub.f32 1.0, %v4930
        %v5031 = vsub.f32 1.0, %v4931
        %v5032 = vsub.f32 1.0, %v4932
        %v5033 = vsub.f32 1.0, %v4933
        %v5034 = vsub.f32 1.0, %v4934
        %v5035 = vsub.f32 1.0, %v4935
        %v5036 = vsub.f32 1.0, %v4936
        %v5037 = vsub.f32 1.0, %v4937
        %v5038 = vsub.f32 1.0, %v4938
        %v5039 = vsub.f32 1.0, %v4939
        %v5040 = vsub.f32 1.0, %v4940
        %v5041 = vsub.f32 1.0, %v4941
        %v5042 = vsub.f32 1.0, %v4942
        %v5043 = vsub.f32 1.0, %v4943
        %v5044 = vsub.f32 1.0, %v4944
        %v5045 = vsub.f32 1.0, %v4945
        %v5046 = vsub.f32 1.0, %v4946
        %v5047 = vsub.f32 1.0, %v4947
        %v5048 = vsub.f32 1.0, %v4948
        %v5049 = vsub.f32 1.0, %v4949
        %v5050 = vsub.f32 1.0, %v4950
        %v5051 = vsub.f32 1.0, %v4951
        %v5052 = vsub.f32 1.0, %v4952
        %v5053 = vsub.f32 1.0, %v4953
        %v5054 = vsub.f32 1.0, %v4954
        %v5055 = vsub.f32 1.0, %v4955
        %v5056 = vsub.f32 1.0, %v4956
        %v5057 = vsub.f32 1.0, %v4957
        %v5058 = vsub.f32 1.0, %v4958
        %v5059 = vsub.f32 1.0, %v4959
        %v5060 = vsub.f32 1.0, %v4960
        %v5061 = vsub.f32 1.0, %v4961
        %v5062 = vsub.f32 1.0, %v4962
        %v5063 = vsub.f32 1.0, %v4963
        %v5064 = vsub.f32 1.0, %v4964
        %v5065 = vsub.f32 1.0, %v4965
        %v5066 = vsub.f32 1.0, %v4966
        %v5067 = vsub.f32 1.0, %v4967
        %v5068 = vsub.f32 1.0, %v4968
        %v5069 = vmul.f32 %v1669, %v4969
        %v5070 = vmul.f32 %v1670, %v4970
        %v5071 = vmul.f32 %v1671, %v4971
        %v5072 = vmul.f32 %v1672, %v4972
        %v5073 = vmul.f32 %v1673, %v4973
        %v5074 = vmul.f32 %v1674, %v4974
        %v5075 = vmul.f32 %v1675, %v4975
        %v5076 = vmul.f32 %v1676, %v4976
        %v5077 = vmul.f32 %v1677, %v4977
        %v5078 = vmul.f32 %v1678, %v4978
        %v5079 = vmul.f32 %v1679, %v4979
        %v5080 = vmul.f32 %v1680, %v4980
        %v5081 = vmul.f32 %v1681, %v4981
        %v5082 = vmul.f32 %v1682, %v4982
        %v5083 = vmul.f32 %v1683, %v4983
        %v5084 = vmul.f32 %v1684, %v4984
        %v5085 = vmul.f32 %v1685, %v4985
        %v5086 = vmul.f32 %v1686, %v4986
        %v5087 = vmul.f32 %v1687, %v4987
        %v5088 = vmul.f32 %v1688, %v4988
        %v5089 = vmul.f32 %v1689, %v4989
        %v5090 = vmul.f32 %v1690, %v4990
        %v5091 = vmul.f32 %v1691, %v4991
        %v5092 = vmul.f32 %v1692, %v4992
        %v5093 = vmul.f32 %v1693, %v4993
        %v5094 = vmul.f32 %v1694, %v4994
        %v5095 = vmul.f32 %v1695, %v4995
        %v5096 = vmul.f32 %v1696, %v4996
        %v5097 = vmul.f32 %v1697, %v4997
        %v5098 = vmul.f32 %v1698, %v4998
        %v5099 = vmul.f32 %v1699, %v4999
        %v5100 = vmul.f32 %v1700, %v5000
        %v5101 = vmul.f32 %v1701, %v5001
        %v5102 = vmul.f32 %v1702, %v5002
        %v5103 = vmul.f32 %v1703, %v5003
        %v5104 = vmul.f32 %v1704, %v5004
        %v5105 = vmul.f32 %v1705, %v5005
        %v5106 = vmul.f32 %v1706, %v5006
        %v5107 = vmul.f32 %v1707, %v5007
        %v5108 = vmul.f32 %v1708, %v5008
        %v5109 = vmul.f32 %v1709, %v5009
        %v5110 = vmul.f32 %v1710, %v5010
        %v5111 = vmul.f32 %v1711, %v5011
        %v5112 = vmul.f32 %v1712, %v5012
        %v5113 = vmul.f32 %v1713, %v5013
        %v5114 = vmul.f32 %v1714, %v5014
        %v5115 = vmul.f32 %v1715, %v5015
        %v5116 = vmul.f32 %v1716, %v5016
        %v5117 = vmul.f32 %v1717, %v5017
        %v5118 = vmul.f32 %v1718, %v5018
        %v5119 = vmul.f32 %v1719, %v5019
        %v5120 = vmul.f32 %v1720, %v5020
        %v5121 = vmul.f32 %v1721, %v5021
        %v5122 = vmul.f32 %v1722, %v5022
        %v5123 = vmul.f32 %v1723, %v5023
        %v5124 = vmul.f32 %v1724, %v5024
        %v5125 = vmul.f32 %v1725, %v5025
        %v5126 = vmul.f32 %v1726, %v5026
        %v5127 = vmul.f32 %v1727, %v5027
        %v5128 = vmul.f32 %v1728, %v5028
        %v5129 = vmul.f32 %v1729, %v5029
        %v5130 = vmul.f32 %v1730, %v5030
        %v5131 = vmul.f32 %v1731, %v5031
        %v5132 = vmul.f32 %v1732, %v5032
        %v5133 = vmul.f32 %v1733, %v5033
        %v5134 = vmul.f32 %v1734, %v5034
        %v5135 = vmul.f32 %v1735, %v5035
        %v5136 = vmul.f32 %v1736, %v5036
        %v5137 = vmul.f32 %v1737, %v5037
        %v5138 = vmul.f32 %v1738, %v5038
        %v5139 = vmul.f32 %v1739, %v5039
        %v5140 = vmul.f32 %v1740, %v5040
        %v5141 = vmul.f32 %v1741, %v5041
        %v5142 = vmul.f32 %v1742, %v5042
        %v5143 = vmul.f32 %v1743, %v5043
        %v5144 = vmul.f32 %v1744, %v5044
        %v5145 = vmul.f32 %v1745, %v5045
        %v5146 = vmul.f32 %v1746, %v5046
        %v5147 = vmul.f32 %v1747, %v5047
        %v5148 = vmul.f32 %v1748, %v5048
        %v5149 = vmul.f32 %v1749, %v5049
        %v5150 = vmul.f32 %v1750, %v5050
        %v5151 = vmul.f32 %v1751, %v5051
        %v5152 = vmul.f32 %v1752, %v5052
        %v5153 = vmul.f32 %v1753, %v5053
        %v5154 = vmul.f32 %v1754, %v5054
        %v5155 = vmul.f32 %v1755, %v5055
        %v5156 = vmul.f32 %v1756, %v5056
        %v5157 = vmul.f32 %v1757, %v5057
        %v5158 = vmul.f32 %v1758, %v5058
        %v5159 = vmul.f32 %v1759, %v5059
        %v5160 = vmul.f32 %v1760, %v5060
        %v5161 = vmul.f32 %v1761, %v5061
        %v5162 = vmul.f32 %v1762, %v5062
        %v5163 = vmul.f32 %v1763, %v5063
        %v5164 = vmul.f32 %v1764, %v5064
        %v5165 = vmul.f32 %v1765, %v5065
        %v5166 = vmul.f32 %v1766, %v5066
        %v5167 = vmul.f32 %v1767, %v5067
        %v5168 = vmul.f32 %v1768, %v5068
        %v5169 = vmul.f32 %v1369, 0.5
        %v5170 = vmul.f32 %v1370, 0.5
        %v5171 = vmul.f32 %v1371, 0.5
        %v5172 = vmul.f32 %v1372, 0.5
        %v5173 = vmul.f32 %v1373, 0.5
        %v5174 = vmul.f32 %v1374, 0.5
        %v5175 = vmul.f32 %v1375, 0.5
        %v5176 = vmul.f32 %v1376, 0.5
        %v5177 = vmul.f32 %v1377, 0.5
        %v5178 = vmul.f32 %v1378, 0.5
        %v5179 = vmul.f32 %v1379, 0.5
        %v5180 = vmul.f32 %v1380, 0.5
        %v5181 = vmul.f32 %v1381, 0.5
        %v5182 = vmul.f32 %v1382, 0.5
        %v5183 = vmul.f32 %v1383, 0.5
        %v5184 = vmul.f32 %v1384, 0.5
        %v5185 = vmul.f32 %v1385, 0.5
        %v5186 = vmul.f32 %v1386, 0.5
        %v5187 = vmul.f32 %v1387, 0.5
        %v5188 = vmul.f32 %v1388, 0.5
        %v5189 = vmul.f32 %v1389, 0.5
        %v5190 = vmul.f32 %v1390, 0.5
        %v5191 = vmul.f32 %v1391, 0.5
        %v5192 = vmul.f32 %v1392, 0.5
        %v5193 = vmul.f32 %v1393, 0.5
        %v5194 = vmul.f32 %v1394, 0.5
        %v5195 = vmul.f32 %v1395, 0.5
        %v5196 = vmul.f32 %v1396, 0.5
        %v5197 = vmul.f32 %v1397, 0.5
        %v5198 = vmul.f32 %v1398, 0.5
        %v5199 = vmul.f32 %v1399, 0.5
        %v5200 = vmul.f32 %v1400, 0.5
        %v5201 = vmul.f32 %v1401, 0.5
        %v5202 = vmul.f32 %v1402, 0.5
        %v5203 = vmul.f32 %v1403, 0.5
        %v5204 = vmul.f32 %v1404, 0.5
        %v5205 = vmul.f32 %v1405, 0.5
        %v5206 = vmul.f32 %v1406, 0.5
        %v5207 = vmul.f32 %v1407, 0.5
        %v5208 = vmul.f32 %v1408, 0.5
        %v5209 = vmul.f32 %v1409, 0.5
        %v5210 = vmul.f32 %v1410, 0.5
        %v5211 = vmul.f32 %v1411, 0.5
        %v5212 = vmul.f32 %v1412, 0.5
        %v5213 = vmul.f32 %v1413, 0.5
        %v5214 = vmul.f32 %v1414, 0.5
        %v5215 = vmul.f32 %v1415, 0.5
        %v5216 = vmul.f32 %v1416, 0.5
        %v5217 = vmul.f32 %v1417, 0.5
        %v5218 = vmul.f32 %v1418, 0.5
        %v5219 = vmul.f32 %v1419, 0.5
        %v5220 = vmul.f32 %v1420, 0.5
        %v5221 = vmul.f32 %v1421, 0.5
        %v5222 = vmul.f32 %v1422, 0.5
        %v5223 = vmul.f32 %v1423, 0.5
        %v5224 = vmul.f32 %v1424, 0.5
        %v5225 = vmul.f32 %v1425, 0.5
        %v5226 = vmul.f32 %v1426, 0.5
        %v5227 = vmul.f32 %v1427, 0.5
        %v5228 = vmul.f32 %v1428, 0.5
        %v5229 = vmul.f32 %v1429, 0.5
        %v5230 = vmul.f32 %v1430, 0.5
        %v5231 = vmul.f32 %v1431, 0.5
        %v5232 = vmul.f32 %v1432, 0.5
        %v5233 = vmul.f32 %v1433, 0.5
        %v5234 = vmul.f32 %v1434, 0.5
        %v5235 = vmul.f32 %v1435, 0.5
        %v5236 = vmul.f32 %v1436, 0.5
        %v5237 = vmul.f32 %v1437, 0.5
        %v5238 = vmul.f32 %v1438, 0.5
        %v5239 = vmul.f32 %v1439, 0.5
        %v5240 = vmul.f32 %v1440, 0.5
        %v5241 = vmul.f32 %v1441, 0.5
        %v5242 = vmul.f32 %v1442, 0.5
        %v5243 = vmul.f32 %v1443, 0.5
        %v5244 = vmul.f32 %v1444, 0.5
        %v5245 = vmul.f32 %v1445, 0.5
        %v5246 = vmul.f32 %v1446, 0.5
        %v5247 = vmul.f32 %v1447, 0.5
        %v5248 = vmul.f32 %v1448, 0.5
        %v5249 = vmul.f32 %v1449, 0.5
        %v5250 = vmul.f32 %v1450, 0.5
        %v5251 = vmul.f32 %v1451, 0.5
        %v5252 = vmul.f32 %v1452, 0.5
        %v5253 = vmul.f32 %v1453, 0.5
        %v5254 = vmul.f32 %v1454, 0.5
        %v5255 = vmul.f32 %v1455, 0.5
        %v5256 = vmul.f32 %v1456, 0.5
        %v5257 = vmul.f32 %v1457, 0.5
        %v5258 = vmul.f32 %v1458, 0.5
        %v5259 = vmul.f32 %v1459, 0.5
        %v5260 = vmul.f32 %v1460, 0.5
        %v5261 = vmul.f32 %v1461, 0.5
        %v5262 = vmul.f32 %v1462, 0.5
        %v5263 = vmul.f32 %v1463, 0.5
        %v5264 = vmul.f32 %v1464, 0.5
        %v5265 = vmul.f32 %v1465, 0.5
        %v5266 = vmul.f32 %v1466, 0.5
        %v5267 = vmul.f32 %v1467, 0.5
        %v5268 = vmul.f32 %v1468, 0.5
        %v5269 = vadd.f32 %v5069, 1.0
        %v5270 = vadd.f32 %v5070, 1.0
        %v5271 = vadd.f32 %v5071, 1.0
        %v5272 = vadd.f32 %v5072, 1.0
        %v5273 = vadd.f32 %v5073, 1.0
        %v5274 = vadd.f32 %v5074, 1.0
        %v5275 = vadd.f32 %v5075, 1.0
        %v5276 = vadd.f32 %v5076, 1.0
        %v5277 = vadd.f32 %v5077, 1.0
        %v5278 = vadd.f32 %v5078, 1.0
        %v5279 = vadd.f32 %v5079, 1.0
        %v5280 = vadd.f32 %v5080, 1.0
        %v5281 = vadd.f32 %v5081, 1.0
        %v5282 = vadd.f32 %v5082, 1.0
        %v5283 = vadd.f32 %v5083, 1.0
        %v5284 = vadd.f32 %v5084, 1.0
        %v5285 = vadd.f32 %v5085, 1.0
        %v5286 = vadd.f32 %v5086, 1.0
        %v5287 = vadd.f32 %v5087, 1.0
        %v5288 = vadd.f32 %v5088, 1.0
        %v5289 = vadd.f32 %v5089, 1.0
        %v5290 = vadd.f32 %v5090, 1.0
        %v5291 = vadd.f32 %v5091, 1.0
        %v5292 = vadd.f32 %v5092, 1.0
        %v5293 = vadd.f32 %v5093, 1.0
        %v5294 = vadd.f32 %v5094, 1.0
        %v5295 = vadd.f32 %v5095, 1.0
        %v5296 = vadd.f32 %v5096, 1.0
        %v5297 = vadd.f32 %v5097, 1.0
        %v5298 = vadd.f32 %v5098, 1.0
        %v5299 = vadd.f32 %v5099, 1.0
        %v5300 = vadd.f32 %v5100, 1.0
        %v5301 = vadd.f32 %v5101, 1.0
        %v5302 = vadd.f32 %v5102, 1.0
        %v5303 = vadd.f32 %v5103, 1.0
        %v5304 = vadd.f32 %v5104, 1.0
        %v5305 = vadd.f32 %v5105, 1.0
        %v5306 = vadd.f32 %v5106, 1.0
        %v5307 = vadd.f32 %v5107, 1.0
        %v5308 = vadd.f32 %v5108, 1.0
        %v5309 = vadd.f32 %v5109, 1.0
        %v5310 = vadd.f32 %v5110, 1.0
        %v5311 = vadd.f32 %v5111, 1.0
        %v5312 = vadd.f32 %v5112, 1.0
        %v5313 = vadd.f32 %v5113, 1.0
        %v5314 = vadd.f32 %v5114, 1.0
        %v5315 = vadd.f32 %v5115, 1.0
        %v5316 = vadd.f32 %v5116, 1.0
        %v5317 = vadd.f32 %v5117, 1.0
        %v5318 = vadd.f32 %v5118, 1.0
        %v5319 = vadd.f32 %v5119, 1.0
        %v5320 = vadd.f32 %v5120, 1.0
        %v5321 = vadd.f32 %v5121, 1.0
        %v5322 = vadd.f32 %v5122, 1.0
        %v5323 = vadd.f32 %v5123, 1.0
        %v5324 = vadd.f32 %v5124, 1.0
        %v5325 = vadd.f32 %v5125, 1.0
        %v5326 = vadd.f32 %v5126, 1.0
        %v5327 = vadd.f32 %v5127, 1.0
        %v5328 = vadd.f32 %v5128, 1.0
        %v5329 = vadd.f32 %v5129, 1.0
        %v5330 = vadd.f32 %v5130, 1.0
        %v5331 = vadd.f32 %v5131, 1.0
        %v5332 = vadd.f32 %v5132, 1.0
        %v5333 = vadd.f32 %v5133, 1.0
        %v5334 = vadd.f32 %v5134, 1.0
        %v5335 = vadd.f32 %v5135, 1.0
        %v5336 = vadd.f32 %v5136, 1.0
        %v5337 = vadd.f32 %v5137, 1.0
        %v5338 = vadd.f32 %v5138, 1.0
        %v5339 = vadd.f32 %v5139, 1.0
        %v5340 = vadd.f32 %v5140, 1.0
        %v5341 = vadd.f32 %v5141, 1.0
        %v5342 = vadd.f32 %v5142, 1.0
        %v5343 = vadd.f32 %v5143, 1.0
        %v5344 = vadd.f32 %v5144, 1.0
        %v5345 = vadd.f32 %v5145, 1.0
        %v5346 = vadd.f32 %v5146, 1.0
        %v5347 = vadd.f32 %v5147, 1.0
        %v5348 = vadd.f32 %v5148, 1.0
        %v5349 = vadd.f32 %v5149, 1.0
        %v5350 = vadd.f32 %v5150, 1.0
        %v5351 = vadd.f32 %v5151, 1.0
        %v5352 = vadd.f32 %v5152, 1.0
        %v5353 = vadd.f32 %v5153, 1.0
        %v5354 = vadd.f32 %v5154, 1.0
        %v5355 = vadd.f32 %v5155, 1.0
        %v5356 = vadd.f32 %v5156, 1.0
        %v5357 = vadd.f32 %v5157, 1.0
        %v5358 = vadd.f32 %v5158, 1.0
        %v5359 = vadd.f32 %v5159, 1.0
        %v5360 = vadd.f32 %v5160, 1.0
        %v5361 = vadd.f32 %v5161, 1.0
        %v5362 = vadd.f32 %v5162, 1.0
        %v5363 = vadd.f32 %v5163, 1.0
        %v5364 = vadd.f32 %v5164, 1.0
        %v5365 = vadd.f32 %v5165, 1.0
        %v5366 = vadd.f32 %v5166, 1.0
        %v5367 = vadd.f32 %v5167, 1.0
        %v5368 = vadd.f32 %v5168, 1.0
        %v5369 = vmul.f32 %v5169, %v5269
        %v5370 = vmul.f32 %v5170, %v5270
        %v5371 = vmul.f32 %v5171, %v5271
        %v5372 = vmul.f32 %v5172, %v5272
        %v5373 = vmul.f32 %v5173, %v5273
        %v5374 = vmul.f32 %v5174, %v5274
        %v5375 = vmul.f32 %v5175, %v5275
        %v5376 = vmul.f32 %v5176, %v5276
        %v5377 = vmul.f32 %v5177, %v5277
        %v5378 = vmul.f32 %v5178, %v5278
        %v5379 = vmul.f32 %v5179, %v5279
        %v5380 = vmul.f32 %v5180, %v5280
        %v5381 = vmul.f32 %v5181, %v5281
        %v5382 = vmul.f32 %v5182, %v5282
        %v5383 = vmul.f32 %v5183, %v5283
        %v5384 = vmul.f32 %v5184, %v5284
        %v5385 = vmul.f32 %v5185, %v5285
        %v5386 = vmul.f32 %v5186, %v5286
        %v5387 = vmul.f32 %v5187, %v5287
        %v5388 = vmul.f32 %v5188, %v5288
        %v5389 = vmul.f32 %v5189, %v5289
        %v5390 = vmul.f32 %v5190, %v5290
        %v5391 = vmul.f32 %v5191, %v5291
        %v5392 = vmul.f32 %v5192, %v5292
        %v5393 = vmul.f32 %v5193, %v5293
        %v5394 = vmul.f32 %v5194, %v5294
        %v5395 = vmul.f32 %v5195, %v5295
        %v5396 = vmul.f32 %v5196, %v5296
        %v5397 = vmul.f32 %v5197, %v5297
        %v5398 = vmul.f32 %v5198, %v5298
        %v5399 = vmul.f32 %v5199, %v5299
        %v5400 = vmul.f32 %v5200, %v5300
        %v5401 = vmul.f32 %v5201, %v5301
        %v5402 = vmul.f32 %v5202, %v5302
        %v5403 = vmul.f32 %v5203, %v5303
        %v5404 = vmul.f32 %v5204, %v5304
        %v5405 = vmul.f32 %v5205, %v5305
        %v5406 = vmul.f32 %v5206, %v5306
        %v5407 = vmul.f32 %v5207, %v5307
        %v5408 = vmul.f32 %v5208, %v5308
        %v5409 = vmul.f32 %v5209, %v5309
        %v5410 = vmul.f32 %v5210, %v5310
        %v5411 = vmul.f32 %v5211, %v5311
        %v5412 = vmul.f32 %v5212, %v5312
        %v5413 = vmul.f32 %v5213, %v5313
        %v5414 = vmul.f32 %v5214, %v5314
        %v5415 = vmul.f32 %v5215, %v5315
        %v5416 = vmul.f32 %v5216, %v5316
        %v5417 = vmul.f32 %v5217, %v5317
        %v5418 = vmul.f32 %v5218, %v5318
        %v5419 = vmul.f32 %v5219, %v5319
        %v5420 = vmul.f32 %v5220, %v5320
        %v5421 = vmul.f32 %v5221, %v5321
        %v5422 = vmul.f32 %v5222, %v5322
        %v5423 = vmul.f32 %v5223, %v5323
        %v5424 = vmul.f32 %v5224, %v5324
        %v5425 = vmul.f32 %v5225, %v5325
        %v5426 = vmul.f32 %v5226, %v5326
        %v5427 = vmul.f32 %v5227, %v5327
        %v5428 = vmul.f32 %v5228, %v5328
        %v5429 = vmul.f32 %v5229, %v5329
        %v5430 = vmul.f32 %v5230, %v5330
        %v5431 = vmul.f32 %v5231, %v5331
        %v5432 = vmul.f32 %v5232, %v5332
        %v5433 = vmul.f32 %v5233, %v5333
        %v5434 = vmul.f32 %v5234, %v5334
        %v5435 = vmul.f32 %v5235, %v5335
        %v5436 = vmul.f32 %v5236, %v5336
        %v5437 = vmul.f32 %v5237, %v5337
        %v5438 = vmul.f32 %v5238, %v5338
        %v5439 = vmul.f32 %v5239, %v5339
        %v5440 = vmul.f32 %v5240, %v5340
        %v5441 = vmul.f32 %v5241, %v5341
        %v5442 = vmul.f32 %v5242, %v5342
        %v5443 = vmul.f32 %v5243, %v5343
        %v5444 = vmul.f32 %v5244, %v5344
        %v5445 = vmul.f32 %v5245, %v5345
        %v5446 = vmul.f32 %v5246, %v5346
        %v5447 = vmul.f32 %v5247, %v5347
        %v5448 = vmul.f32 %v5248, %v5348
        %v5449 = vmul.f32 %v5249, %v5349
        %v5450 = vmul.f32 %v5250, %v5350
        %v5451 = vmul.f32 %v5251, %v5351
        %v5452 = vmul.f32 %v5252, %v5352
        %v5453 = vmul.f32 %v5253, %v5353
        %v5454 = vmul.f32 %v5254, %v5354
        %v5455 = vmul.f32 %v5255, %v5355
        %v5456 = vmul.f32 %v5256, %v5356
        %v5457 = vmul.f32 %v5257, %v5357
        %v5458 = vmul.f32 %v5258, %v5358
        %v5459 = vmul.f32 %v5259, %v5359
        %v5460 = vmul.f32 %v5260, %v5360
        %v5461 = vmul.f32 %v5261, %v5361
        %v5462 = vmul.f32 %v5262, %v5362
        %v5463 = vmul.f32 %v5263, %v5363
        %v5464 = vmul.f32 %v5264, %v5364
        %v5465 = vmul.f32 %v5265, %v5365
        %v5466 = vmul.f32 %v5266, %v5366
        %v5467 = vmul.f32 %v5267, %v5367
        %v5468 = vmul.f32 %v5268, %v5368
        %v5533 = vperm.slane %v5369, 0
        %v5534 = vperm.slane %v5370, 0
        %v5535 = vperm.slane %v5371, 0
        %v5536 = vperm.slane %v5372, 0
        %v5537 = vperm.slane %v5373, 0
        %v5538 = vperm.slane %v5374, 0
        %v5539 = vperm.slane %v5375, 0
        %v5540 = vperm.slane %v5376, 0
        %v5541 = vperm.slane %v5379, 0
        %v5542 = vperm.slane %v5380, 0
        %v5543 = vperm.slane %v5381, 0
        %v5544 = vperm.slane %v5382, 0
        %v5545 = vperm.slane %v5383, 0
        %v5546 = vperm.slane %v5384, 0
        %v5547 = vperm.slane %v5385, 0
        %v5548 = vperm.slane %v5386, 0
        %v5549 = vperm.slane %v5389, 0
        %v5550 = vperm.slane %v5390, 0
        %v5551 = vperm.slane %v5391, 0
        %v5552 = vperm.slane %v5392, 0
        %v5553 = vperm.slane %v5393, 0
        %v5554 = vperm.slane %v5394, 0
        %v5555 = vperm.slane %v5395, 0
        %v5556 = vperm.slane %v5396, 0
        %v5557 = vperm.slane %v5399, 0
        %v5558 = vperm.slane %v5400, 0
        %v5559 = vperm.slane %v5401, 0
        %v5560 = vperm.slane %v5402, 0
        %v5561 = vperm.slane %v5403, 0
        %v5562 = vperm.slane %v5404, 0
        %v5563 = vperm.slane %v5405, 0
        %v5564 = vperm.slane %v5406, 0
        %v5565 = vperm.slane %v5409, 0
        %v5566 = vperm.slane %v5410, 0
        %v5567 = vperm.slane %v5411, 0
        %v5568 = vperm.slane %v5412, 0
        %v5569 = vperm.slane %v5413, 0
        %v5570 = vperm.slane %v5414, 0
        %v5571 = vperm.slane %v5415, 0
        %v5572 = vperm.slane %v5416, 0
        %v5573 = vperm.slane %v5419, 0
        %v5574 = vperm.slane %v5420, 0
        %v5575 = vperm.slane %v5421, 0
        %v5576 = vperm.slane %v5422, 0
        %v5577 = vperm.slane %v5423, 0
        %v5578 = vperm.slane %v5424, 0
        %v5579 = vperm.slane %v5425, 0
        %v5580 = vperm.slane %v5426, 0
        %v5581 = vperm.slane %v5429, 0
        %v5582 = vperm.slane %v5430, 0
        %v5583 = vperm.slane %v5431, 0
        %v5584 = vperm.slane %v5432, 0
        %v5585 = vperm.slane %v5433, 0
        %v5586 = vperm.slane %v5434, 0
        %v5587 = vperm.slane %v5435, 0
        %v5588 = vperm.slane %v5436, 0
        %v5589 = vperm.slane %v5439, 0
        %v5590 = vperm.slane %v5440, 0
        %v5591 = vperm.slane %v5441, 0
        %v5592 = vperm.slane %v5442, 0
        %v5593 = vperm.slane %v5443, 0
        %v5594 = vperm.slane %v5444, 0
        %v5595 = vperm.slane %v5445, 0
        %v5596 = vperm.slane %v5446, 0
        %vm5597 = vcmask 1041409
        %v5598 = vsel %vm5597, %v5534, %v5533
        %vm5599 = vcmask 1042434
        %v5600 = vsel %vm5599, %v5535, %v5598
        %vm5601 = vcmask 1043459
        %v5602 = vsel %vm5601, %v5536, %v5600
        %vm5603 = vcmask 1044484
        %v5604 = vsel %vm5603, %v5537, %v5602
        %vm5605 = vcmask 1045509
        %v5606 = vsel %vm5605, %v5538, %v5604
        %vm5607 = vcmask 1046534
        %v5608 = vsel %vm5607, %v5539, %v5606
        %vm5609 = vcmask 1047559
        %v5610 = vsel %vm5609, %v5540, %v5608
        %v5611 = vsel %vm5597, %v5542, %v5541
        %v5612 = vsel %vm5599, %v5543, %v5611
        %v5613 = vsel %vm5601, %v5544, %v5612
        %v5614 = vsel %vm5603, %v5545, %v5613
        %v5615 = vsel %vm5605, %v5546, %v5614
        %v5616 = vsel %vm5607, %v5547, %v5615
        %v5617 = vsel %vm5609, %v5548, %v5616
        %v5618 = vsel %vm5597, %v5550, %v5549
        %v5619 = vsel %vm5599, %v5551, %v5618
        %v5620 = vsel %vm5601, %v5552, %v5619
        %v5621 = vsel %vm5603, %v5553, %v5620
        %v5622 = vsel %vm5605, %v5554, %v5621
        %v5623 = vsel %vm5607, %v5555, %v5622
        %v5624 = vsel %vm5609, %v5556, %v5623
        %v5625 = vsel %vm5597, %v5558, %v5557
        %v5626 = vsel %vm5599, %v5559, %v5625
        %v5627 = vsel %vm5601, %v5560, %v5626
        %v5628 = vsel %vm5603, %v5561, %v5627
        %v5629 = vsel %vm5605, %v5562, %v5628
        %v5630 = vsel %vm5607, %v5563, %v5629
        %v5631 = vsel %vm5609, %v5564, %v5630
        %v5632 = vsel %vm5597, %v5566, %v5565
        %v5633 = vsel %vm5599, %v5567, %v5632
        %v5634 = vsel %vm5601, %v5568, %v5633
        %v5635 = vsel %vm5603, %v5569, %v5634
        %v5636 = vsel %vm5605, %v5570, %v5635
        %v5637 = vsel %vm5607, %v5571, %v5636
        %v5638 = vsel %vm5609, %v5572, %v5637
        %v5639 = vsel %vm5597, %v5574, %v5573
        %v5640 = vsel %vm5599, %v5575, %v5639
        %v5641 = vsel %vm5601, %v5576, %v5640
        %v5642 = vsel %vm5603, %v5577, %v5641
        %v5643 = vsel %vm5605, %v5578, %v5642
        %v5644 = vsel %vm5607, %v5579, %v5643
        %v5645 = vsel %vm5609, %v5580, %v5644
        %v5646 = vsel %vm5597, %v5582, %v5581
        %v5647 = vsel %vm5599, %v5583, %v5646
        %v5648 = vsel %vm5601, %v5584, %v5647
        %v5649 = vsel %vm5603, %v5585, %v5648
        %v5650 = vsel %vm5605, %v5586, %v5649
        %v5651 = vsel %vm5607, %v5587, %v5650
        %v5652 = vsel %vm5609, %v5588, %v5651
        %v5653 = vsel %vm5597, %v5590, %v5589
        %v5654 = vsel %vm5599, %v5591, %v5653
        %v5655 = vsel %vm5601, %v5592, %v5654
        %v5656 = vsel %vm5603, %v5593, %v5655
        %v5657 = vsel %vm5605, %v5594, %v5656
        %v5658 = vsel %vm5607, %v5595, %v5657
        %v5659 = vsel %vm5609, %v5596, %v5658
        %v5676 = vperm.slane %v5377, 0
        %v5677 = vperm.slane %v5387, 0
        %v5678 = vperm.slane %v5397, 0
        %v5679 = vperm.slane %v5407, 0
        %v5680 = vperm.slane %v5417, 0
        %v5681 = vperm.slane %v5427, 0
        %v5682 = vperm.slane %v5437, 0
        %v5683 = vperm.slane %v5447, 0
        %v5684 = vsel %vm5597, %v5535, %v5534
        %v5685 = vsel %vm5599, %v5536, %v5684
        %v5686 = vsel %vm5601, %v5537, %v5685
        %v5687 = vsel %vm5603, %v5538, %v5686
        %v5688 = vsel %vm5605, %v5539, %v5687
        %v5689 = vsel %vm5607, %v5540, %v5688
        %v5690 = vsel %vm5609, %v5676, %v5689
        %v5691 = vsel %vm5597, %v5543, %v5542
        %v5692 = vsel %vm5599, %v5544, %v5691
        %v5693 = vsel %vm5601, %v5545, %v5692
        %v5694 = vsel %vm5603, %v5546, %v5693
        %v5695 = vsel %vm5605, %v5547, %v5694
        %v5696 = vsel %vm5607, %v5548, %v5695
        %v5697 = vsel %vm5609, %v5677, %v5696
        %v5698 = vsel %vm5597, %v5551, %v5550
        %v5699 = vsel %vm5599, %v5552, %v5698
        %v5700 = vsel %vm5601, %v5553, %v5699
        %v5701 = vsel %vm5603, %v5554, %v5700
        %v5702 = vsel %vm5605, %v5555, %v5701
        %v5703 = vsel %vm5607, %v5556, %v5702
        %v5704 = vsel %vm5609, %v5678, %v5703
        %v5705 = vsel %vm5597, %v5559, %v5558
        %v5706 = vsel %vm5599, %v5560, %v5705
        %v5707 = vsel %vm5601, %v5561, %v5706
        %v5708 = vsel %vm5603, %v5562, %v5707
        %v5709 = vsel %vm5605, %v5563, %v5708
        %v5710 = vsel %vm5607, %v5564, %v5709
        %v5711 = vsel %vm5609, %v5679, %v5710
        %v5712 = vsel %vm5597, %v5567, %v5566
        %v5713 = vsel %vm5599, %v5568, %v5712
        %v5714 = vsel %vm5601, %v5569, %v5713
        %v5715 = vsel %vm5603, %v5570, %v5714
        %v5716 = vsel %vm5605, %v5571, %v5715
        %v5717 = vsel %vm5607, %v5572, %v5716
        %v5718 = vsel %vm5609, %v5680, %v5717
        %v5719 = vsel %vm5597, %v5575, %v5574
        %v5720 = vsel %vm5599, %v5576, %v5719
        %v5721 = vsel %vm5601, %v5577, %v5720
        %v5722 = vsel %vm5603, %v5578, %v5721
        %v5723 = vsel %vm5605, %v5579, %v5722
        %v5724 = vsel %vm5607, %v5580, %v5723
        %v5725 = vsel %vm5609, %v5681, %v5724
        %v5726 = vsel %vm5597, %v5583, %v5582
        %v5727 = vsel %vm5599, %v5584, %v5726
        %v5728 = vsel %vm5601, %v5585, %v5727
        %v5729 = vsel %vm5603, %v5586, %v5728
        %v5730 = vsel %vm5605, %v5587, %v5729
        %v5731 = vsel %vm5607, %v5588, %v5730
        %v5732 = vsel %vm5609, %v5682, %v5731
        %v5733 = vsel %vm5597, %v5591, %v5590
        %v5734 = vsel %vm5599, %v5592, %v5733
        %v5735 = vsel %vm5601, %v5593, %v5734
        %v5736 = vsel %vm5603, %v5594, %v5735
        %v5737 = vsel %vm5605, %v5595, %v5736
        %v5738 = vsel %vm5607, %v5596, %v5737
        %v5739 = vsel %vm5609, %v5683, %v5738
        %5740 = vrot.lane.b32.xlu0 %v5690, 32
        %v5741 = vpop.permute.xlu0 %5740
        %5742 = vrot.lane.b32.xlu0 %v5697, 32
        %v5743 = vpop.permute.xlu0 %5742
        %5744 = vrot.lane.b32.xlu0 %v5704, 32
        %v5745 = vpop.permute.xlu0 %5744
        %5746 = vrot.lane.b32.xlu0 %v5711, 32
        %v5747 = vpop.permute.xlu0 %5746
        %5748 = vrot.lane.b32.xlu0 %v5718, 32
        %v5749 = vpop.permute.xlu0 %5748
        %5750 = vrot.lane.b32.xlu0 %v5725, 32
        %v5751 = vpop.permute.xlu0 %5750
        %5752 = vrot.lane.b32.xlu0 %v5732, 32
        %v5753 = vpop.permute.xlu0 %5752
        %5754 = vrot.lane.b32.xlu0 %v5739, 32
        %v5755 = vpop.permute.xlu0 %5754
        %v5772 = vperm.slane %v5378, 0
        %v5773 = vperm.slane %v5388, 0
        %v5774 = vperm.slane %v5398, 0
        %v5775 = vperm.slane %v5408, 0
        %v5776 = vperm.slane %v5418, 0
        %v5777 = vperm.slane %v5428, 0
        %v5778 = vperm.slane %v5438, 0
        %v5779 = vperm.slane %v5448, 0
        %v5780 = vsel %vm5597, %v5536, %v5535
        %v5781 = vsel %vm5599, %v5537, %v5780
        %v5782 = vsel %vm5601, %v5538, %v5781
        %v5783 = vsel %vm5603, %v5539, %v5782
        %v5784 = vsel %vm5605, %v5540, %v5783
        %v5785 = vsel %vm5607, %v5676, %v5784
        %v5786 = vsel %vm5609, %v5772, %v5785
        %v5787 = vsel %vm5597, %v5544, %v5543
        %v5788 = vsel %vm5599, %v5545, %v5787
        %v5789 = vsel %vm5601, %v5546, %v5788
        %v5790 = vsel %vm5603, %v5547, %v5789
        %v5791 = vsel %vm5605, %v5548, %v5790
        %v5792 = vsel %vm5607, %v5677, %v5791
        %v5793 = vsel %vm5609, %v5773, %v5792
        %v5794 = vsel %vm5597, %v5552, %v5551
        %v5795 = vsel %vm5599, %v5553, %v5794
        %v5796 = vsel %vm5601, %v5554, %v5795
        %v5797 = vsel %vm5603, %v5555, %v5796
        %v5798 = vsel %vm5605, %v5556, %v5797
        %v5799 = vsel %vm5607, %v5678, %v5798
        %v5800 = vsel %vm5609, %v5774, %v5799
        %v5801 = vsel %vm5597, %v5560, %v5559
        %v5802 = vsel %vm5599, %v5561, %v5801
        %v5803 = vsel %vm5601, %v5562, %v5802
        %v5804 = vsel %vm5603, %v5563, %v5803
        %v5805 = vsel %vm5605, %v5564, %v5804
        %v5806 = vsel %vm5607, %v5679, %v5805
        %v5807 = vsel %vm5609, %v5775, %v5806
        %v5808 = vsel %vm5597, %v5568, %v5567
        %v5809 = vsel %vm5599, %v5569, %v5808
        %v5810 = vsel %vm5601, %v5570, %v5809
        %v5811 = vsel %vm5603, %v5571, %v5810
        %v5812 = vsel %vm5605, %v5572, %v5811
        %v5813 = vsel %vm5607, %v5680, %v5812
        %v5814 = vsel %vm5609, %v5776, %v5813
        %v5815 = vsel %vm5597, %v5576, %v5575
        %v5816 = vsel %vm5599, %v5577, %v5815
        %v5817 = vsel %vm5601, %v5578, %v5816
        %v5818 = vsel %vm5603, %v5579, %v5817
        %v5819 = vsel %vm5605, %v5580, %v5818
        %v5820 = vsel %vm5607, %v5681, %v5819
        %v5821 = vsel %vm5609, %v5777, %v5820
        %v5822 = vsel %vm5597, %v5584, %v5583
        %v5823 = vsel %vm5599, %v5585, %v5822
        %v5824 = vsel %vm5601, %v5586, %v5823
        %v5825 = vsel %vm5603, %v5587, %v5824
        %v5826 = vsel %vm5605, %v5588, %v5825
        %v5827 = vsel %vm5607, %v5682, %v5826
        %v5828 = vsel %vm5609, %v5778, %v5827
        %v5829 = vsel %vm5597, %v5592, %v5591
        %v5830 = vsel %vm5599, %v5593, %v5829
        %v5831 = vsel %vm5601, %v5594, %v5830
        %v5832 = vsel %vm5603, %v5595, %v5831
        %v5833 = vsel %vm5605, %v5596, %v5832
        %v5834 = vsel %vm5607, %v5683, %v5833
        %v5835 = vsel %vm5609, %v5779, %v5834
        %5836 = vrot.lane.b32.xlu0 %v5786, 64
        %v5837 = vpop.permute.xlu0 %5836
        %5838 = vrot.lane.b32.xlu0 %v5793, 64
        %v5839 = vpop.permute.xlu0 %5838
        %5840 = vrot.lane.b32.xlu0 %v5800, 64
        %v5841 = vpop.permute.xlu0 %5840
        %5842 = vrot.lane.b32.xlu0 %v5807, 64
        %v5843 = vpop.permute.xlu0 %5842
        %5844 = vrot.lane.b32.xlu0 %v5814, 64
        %v5845 = vpop.permute.xlu0 %5844
        %5846 = vrot.lane.b32.xlu0 %v5821, 64
        %v5847 = vpop.permute.xlu0 %5846
        %5848 = vrot.lane.b32.xlu0 %v5828, 64
        %v5849 = vpop.permute.xlu0 %5848
        %5850 = vrot.lane.b32.xlu0 %v5835, 64
        %v5851 = vpop.permute.xlu0 %5850
        %vm5860 = vcmask 261120
        %v5861 = vsel %vm5860, %v5610, %v5741
        %v5862 = vsel %vm5860, %v5617, %v5743
        %v5863 = vsel %vm5860, %v5624, %v5745
        %v5864 = vsel %vm5860, %v5631, %v5747
        %v5865 = vsel %vm5860, %v5638, %v5749
        %v5866 = vsel %vm5860, %v5645, %v5751
        %v5867 = vsel %vm5860, %v5652, %v5753
        %v5868 = vsel %vm5860, %v5659, %v5755
        %vm5869 = vcmask 523264
        %v5870 = vsel %vm5869, %v5861, %v5837
        %v5871 = vsel %vm5869, %v5862, %v5839
        %v5872 = vsel %vm5869, %v5863, %v5841
        %v5873 = vsel %vm5869, %v5864, %v5843
        %v5874 = vsel %vm5869, %v5865, %v5845
        %v5875 = vsel %vm5869, %v5866, %v5847
        %v5876 = vsel %vm5869, %v5867, %v5849
        %v5877 = vsel %vm5869, %v5868, %v5851
        %v5886 = vperm.slane %v5449, 0
        %v5887 = vperm.slane %v5450, 0
        %v5888 = vperm.slane %v5451, 0
        %v5889 = vperm.slane %v5452, 0
        %v5890 = vperm.slane %v5453, 0
        %v5891 = vperm.slane %v5454, 0
        %v5892 = vperm.slane %v5455, 0
        %v5893 = vperm.slane %v5456, 0
        %v5894 = vsel %vm5597, %v5887, %v5886
        %v5895 = vsel %vm5599, %v5888, %v5894
        %v5896 = vsel %vm5601, %v5889, %v5895
        %v5897 = vsel %vm5603, %v5890, %v5896
        %v5898 = vsel %vm5605, %v5891, %v5897
        %v5899 = vsel %vm5607, %v5892, %v5898
        %v5900 = vsel %vm5609, %v5893, %v5899
        %v5903 = vperm.slane %v5457, 0
        %v5904 = vsel %vm5597, %v5888, %v5887
        %v5905 = vsel %vm5599, %v5889, %v5904
        %v5906 = vsel %vm5601, %v5890, %v5905
        %v5907 = vsel %vm5603, %v5891, %v5906
        %v5908 = vsel %vm5605, %v5892, %v5907
        %v5909 = vsel %vm5607, %v5893, %v5908
        %v5910 = vsel %vm5609, %v5903, %v5909
        %5911 = vrot.lane.b32.xlu0 %v5910, 32
        %v5912 = vpop.permute.xlu0 %5911
        %v5915 = vperm.slane %v5458, 0
        %v5916 = vsel %vm5597, %v5889, %v5888
        %v5917 = vsel %vm5599, %v5890, %v5916
        %v5918 = vsel %vm5601, %v5891, %v5917
        %v5919 = vsel %vm5603, %v5892, %v5918
        %v5920 = vsel %vm5605, %v5893, %v5919
        %v5921 = vsel %vm5607, %v5903, %v5920
        %v5922 = vsel %vm5609, %v5915, %v5921
        %5923 = vrot.lane.b32.xlu0 %v5922, 64
        %v5924 = vpop.permute.xlu0 %5923
        %v5926 = vsel %vm5860, %v5900, %v5912
        %v5927 = vsel %vm5869, %v5926, %v5924
        %v5936 = vperm.slane %v5459, 0
        %v5937 = vperm.slane %v5460, 0
        %v5938 = vperm.slane %v5461, 0
        %v5939 = vperm.slane %v5462, 0
        %v5940 = vperm.slane %v5463, 0
        %v5941 = vperm.slane %v5464, 0
        %v5942 = vperm.slane %v5465, 0
        %v5943 = vperm.slane %v5466, 0
        %v5944 = vsel %vm5597, %v5937, %v5936
        %v5945 = vsel %vm5599, %v5938, %v5944
        %v5946 = vsel %vm5601, %v5939, %v5945
        %v5947 = vsel %vm5603, %v5940, %v5946
        %v5948 = vsel %vm5605, %v5941, %v5947
        %v5949 = vsel %vm5607, %v5942, %v5948
        %v5950 = vsel %vm5609, %v5943, %v5949
        %v5953 = vperm.slane %v5467, 0
        %v5954 = vsel %vm5597, %v5938, %v5937
        %v5955 = vsel %vm5599, %v5939, %v5954
        %v5956 = vsel %vm5601, %v5940, %v5955
        %v5957 = vsel %vm5603, %v5941, %v5956
        %v5958 = vsel %vm5605, %v5942, %v5957
        %v5959 = vsel %vm5607, %v5943, %v5958
        %v5960 = vsel %vm5609, %v5953, %v5959
        %5961 = vrot.lane.b32.xlu0 %v5960, 32
        %v5962 = vpop.permute.xlu0 %5961
        %v5965 = vperm.slane %v5468, 0
        %v5966 = vsel %vm5597, %v5939, %v5938
        %v5967 = vsel %vm5599, %v5940, %v5966
        %v5968 = vsel %vm5601, %v5941, %v5967
        %v5969 = vsel %vm5603, %v5942, %v5968
        %v5970 = vsel %vm5605, %v5943, %v5969
        %v5971 = vsel %vm5607, %v5953, %v5970
        %v5972 = vsel %vm5609, %v5965, %v5971
        %5973 = vrot.lane.b32.xlu0 %v5972, 64
        %v5974 = vpop.permute.xlu0 %5973
        %v5976 = vsel %vm5860, %v5950, %v5962
        %v5977 = vsel %vm5869, %v5976, %v5974
        %5986 = vrot.lane.b32.xlu0 %v5871, 96
        %v5987 = vpop.permute.xlu0 %5986
        %5988 = vrot.lane.b32.xlu0 %v5872, 96
        %v5989 = vpop.permute.xlu0 %5988
        %5990 = vrot.lane.b32.xlu0 %v5873, 96
        %v5991 = vpop.permute.xlu0 %5990
        %5992 = vrot.lane.b32.xlu0 %v5874, 96
        %v5993 = vpop.permute.xlu0 %5992
        %5994 = vrot.lane.b32.xlu0 %v5875, 96
        %v5995 = vpop.permute.xlu0 %5994
        %5996 = vrot.lane.b32.xlu0 %v5876, 96
        %v5997 = vpop.permute.xlu0 %5996
        %5998 = vrot.lane.b32.xlu0 %v5877, 96
        %v5999 = vpop.permute.xlu0 %5998
        %6000 = vrot.lane.b32.xlu0 %v5927, 96
        %v6001 = vpop.permute.xlu0 %6000
        %6011 = vrot.lane.b32.xlu0 %v5872, 64
        %v6012 = vpop.permute.xlu0 %6011
        %6013 = vrot.lane.b32.xlu0 %v5873, 64
        %v6014 = vpop.permute.xlu0 %6013
        %6015 = vrot.lane.b32.xlu0 %v5874, 64
        %v6016 = vpop.permute.xlu0 %6015
        %6017 = vrot.lane.b32.xlu0 %v5875, 64
        %v6018 = vpop.permute.xlu0 %6017
        %6019 = vrot.lane.b32.xlu0 %v5876, 64
        %v6020 = vpop.permute.xlu0 %6019
        %6021 = vrot.lane.b32.xlu0 %v5877, 64
        %v6022 = vpop.permute.xlu0 %6021
        %6023 = vrot.lane.b32.xlu0 %v5927, 64
        %v6024 = vpop.permute.xlu0 %6023
        %6025 = vrot.lane.b32.xlu0 %v5977, 64
        %v6026 = vpop.permute.xlu0 %6025
        %vm6035 = vcmask 785408
        %v6036 = vsel %vm6035, %v5870, %v5987
        %v6037 = vsel %vm6035, %v5871, %v5989
        %v6038 = vsel %vm6035, %v5872, %v5991
        %v6039 = vsel %vm6035, %v5873, %v5993
        %v6040 = vsel %vm6035, %v5874, %v5995
        %v6041 = vsel %vm6035, %v5875, %v5997
        %v6042 = vsel %vm6035, %v5876, %v5999
        %v6043 = vsel %vm6035, %v5877, %v6001
        %v6044 = vsel %vm5869, %v5987, %v6012
        %v6045 = vsel %vm5869, %v5989, %v6014
        %v6046 = vsel %vm5869, %v5991, %v6016
        %v6047 = vsel %vm5869, %v5993, %v6018
        %v6048 = vsel %vm5869, %v5995, %v6020
        %v6049 = vsel %vm5869, %v5997, %v6022
        %v6050 = vsel %vm5869, %v5999, %v6024
        %v6051 = vsel %vm5869, %v6001, %v6026
        %v6052 = vld [vmem:[%s1] sm:$0xff]
        %v6053 = vld [vmem:[%s1 + $0x8] sm:$0xff]
        %v6054 = vld [vmem:[%s1 + $0x10] sm:$0xff]
        %v6055 = vld [vmem:[%s1 + $0x18] sm:$0xff]
        %v6056 = vld [vmem:[%s1 + $0x20] sm:$0xff]
        %v6057 = vld [vmem:[%s1 + $0x28] sm:$0xff]
        %v6058 = vld [vmem:[%s1 + $0x30] sm:$0xff]
        %v6059 = vld [vmem:[%s1 + $0x38] sm:$0xff]
        %v6060 = vld [vmem:[%s1 + $0x40] sm:$0xff]
        %v6061 = vld [vmem:[%s1 + $0x48] sm:$0xff]
        %v6062 = vld [vmem:[%s1 + $0x50] sm:$0xff]
        %v6063 = vld [vmem:[%s1 + $0x58] sm:$0xff]
        %v6064 = vld [vmem:[%s1 + $0x60] sm:$0xff]
        %v6065 = vld [vmem:[%s1 + $0x68] sm:$0xff]
        %v6066 = vld [vmem:[%s1 + $0x70] sm:$0xff]
        %v6067 = vld [vmem:[%s1 + $0x78] sm:$0xff]
        %v6068 = vld [vmem:[%s1 + $0x80] sm:$0xff]
        %v6069 = vld [vmem:[%s1 + $0x88] sm:$0xff]
        %v6070 = vld [vmem:[%s1 + $0x90] sm:$0xff]
        %v6071 = vld [vmem:[%s1 + $0x98] sm:$0xff]
        %v6072 = vld [vmem:[%s1 + $0xa0] sm:$0xff]
        %v6073 = vld [vmem:[%s1 + $0xa8] sm:$0xff]
        %v6074 = vld [vmem:[%s1 + $0xb0] sm:$0xff]
        %v6075 = vld [vmem:[%s1 + $0xb8] sm:$0xff]
        %v6076 = vld [vmem:[%s1 + $0xc0] sm:$0xff]
        %v6077 = vld [vmem:[%s1 + $0xc8] sm:$0xff]
        %v6078 = vld [vmem:[%s1 + $0xd0] sm:$0xff]
        %v6079 = vld [vmem:[%s1 + $0xd8] sm:$0xff]
        %v6080 = vld [vmem:[%s1 + $0xe0] sm:$0xff]
        %v6081 = vld [vmem:[%s1 + $0xe8] sm:$0xff]
        %v6082 = vld [vmem:[%s1 + $0xf0] sm:$0xff]
        %v6083 = vld [vmem:[%s1 + $0xf8] sm:$0xff]
        %v6084 = vld [vmem:[%s1 + $0x100] sm:$0xff]
        %v6085 = vld [vmem:[%s1 + $0x108] sm:$0xff]
        %v6086 = vld [vmem:[%s1 + $0x110] sm:$0xff]
        %v6087 = vld [vmem:[%s1 + $0x118] sm:$0xff]
        %v6088 = vld [vmem:[%s2] sm:$0x1]
        %v6090 = vperm.slane %v6088, 0
        %v6092 = vsel %vm5860, %v6012, 0
        %v6094 = vsel %vm5860, %v6014, 0
        %v6096 = vsel %vm5860, %v6016, 0
        %v6098 = vsel %vm5860, %v6018, 0
        %v6100 = vsel %vm5860, %v6020, 0
        %v6102 = vsel %vm5860, %v6022, 0
        %v6104 = vsel %vm5860, %v6024, 0
        %v6106 = vsel %vm5860, %v6026, 0
        %6108 = vmatpush.msra.mxu0 %v6067
        %6109 = vmatpush.msra.mxu0 %v6066
        %6110 = vmatpush.msra.mxu0 %v6065
        %6111 = vmatpush.msra.mxu0 %v6064
        %6112 = vmatpush.msra.mxu0 %v6063
        %6113 = vmatpush.msra.mxu0 %v6062
        %6114 = vmatpush.msra.mxu0 %v6061
        %6115 = vmatpush.msra.mxu0 %v6060
        %6116 = vmatpush.msra.mxu0 %v6059
        %6117 = vmatpush.msra.mxu0 %v6058
        %6118 = vmatpush.msra.mxu0 %v6057
        %6119 = vmatpush.msra.mxu0 %v6056
        %6120 = vmatpush.msra.mxu0 %v6055
        %6121 = vmatpush.msra.mxu0 %v6054
        %6122 = vmatpush.msra.mxu0 %v6053
        %6123 = vmatpush.msra.mxu0 %v6052
        %6124 = vmatmul.f32.gmra.mxu0 %v6036
        %v6125 = vpop.f32.mrf.mxu0
        %v6126 = vadd.f32 %v6090, %v6125
        %6127 = vmatmul.f32.gmra.mxu0 %v6037
        %v6128 = vpop.f32.mrf.mxu0
        %v6129 = vadd.f32 %v6090, %v6128
        %6130 = vmatmul.f32.gmra.mxu0 %v6038
        %v6131 = vpop.f32.mrf.mxu0
        %v6132 = vadd.f32 %v6090, %v6131
        %6133 = vmatmul.f32.gmra.mxu0 %v6039
        %v6134 = vpop.f32.mrf.mxu0
        %v6135 = vadd.f32 %v6090, %v6134
        %6136 = vmatmul.f32.gmra.mxu0 %v6040
        %v6137 = vpop.f32.mrf.mxu0
        %v6138 = vadd.f32 %v6090, %v6137
        %6139 = vmatmul.f32.gmra.mxu0 %v6041
        %v6140 = vpop.f32.mrf.mxu0
        %v6141 = vadd.f32 %v6090, %v6140
        %6142 = vmatmul.f32.gmra.mxu0 %v6042
        %v6143 = vpop.f32.mrf.mxu0
        %v6144 = vadd.f32 %v6090, %v6143
        %6145 = vmatmul.f32.gmra.mxu0 %v6043
        %v6146 = vpop.f32.mrf.mxu0
        %v6147 = vadd.f32 %v6090, %v6146
        %6148 = vdwg.mxu0
        %6149 = vmatpush.msra.mxu0 %v6083
        %6150 = vmatpush.msra.mxu0 %v6082
        %6151 = vmatpush.msra.mxu0 %v6081
        %6152 = vmatpush.msra.mxu0 %v6080
        %6153 = vmatpush.msra.mxu0 %v6079
        %6154 = vmatpush.msra.mxu0 %v6078
        %6155 = vmatpush.msra.mxu0 %v6077
        %6156 = vmatpush.msra.mxu0 %v6076
        %6157 = vmatpush.msra.mxu0 %v6075
        %6158 = vmatpush.msra.mxu0 %v6074
        %6159 = vmatpush.msra.mxu0 %v6073
        %6160 = vmatpush.msra.mxu0 %v6072
        %6161 = vmatpush.msra.mxu0 %v6071
        %6162 = vmatpush.msra.mxu0 %v6070
        %6163 = vmatpush.msra.mxu0 %v6069
        %6164 = vmatpush.msra.mxu0 %v6068
        %6165 = vmatmul.f32.gmra.mxu0 %v6044
        %v6166 = vpop.f32.mrf.mxu0
        %v6167 = vadd.f32 %v6126, %v6166
        %6168 = vmatmul.f32.gmra.mxu0 %v6045
        %v6169 = vpop.f32.mrf.mxu0
        %v6170 = vadd.f32 %v6129, %v6169
        %6171 = vmatmul.f32.gmra.mxu0 %v6046
        %v6172 = vpop.f32.mrf.mxu0
        %v6173 = vadd.f32 %v6132, %v6172
        %6174 = vmatmul.f32.gmra.mxu0 %v6047
        %v6175 = vpop.f32.mrf.mxu0
        %v6176 = vadd.f32 %v6135, %v6175
        %6177 = vmatmul.f32.gmra.mxu0 %v6048
        %v6178 = vpop.f32.mrf.mxu0
        %v6179 = vadd.f32 %v6138, %v6178
        %6180 = vmatmul.f32.gmra.mxu0 %v6049
        %v6181 = vpop.f32.mrf.mxu0
        %v6182 = vadd.f32 %v6141, %v6181
        %6183 = vmatmul.f32.gmra.mxu0 %v6050
        %v6184 = vpop.f32.mrf.mxu0
        %v6185 = vadd.f32 %v6144, %v6184
        %6186 = vmatmul.f32.gmra.mxu0 %v6051
        %v6187 = vpop.f32.mrf.mxu0
        %v6188 = vadd.f32 %v6147, %v6187
        %6189 = vdwg.mxu0
        %6190 = vmatpush.msra.mxu0 0.0
        %6191 = vmatpush.msra.mxu0 0.0
        %6192 = vmatpush.msra.mxu0 0.0
        %6193 = vmatpush.msra.mxu0 0.0
        %6194 = vmatpush.msra.mxu0 0.0
        %6195 = vmatpush.msra.mxu0 0.0
        %6196 = vmatpush.msra.mxu0 0.0
        %6197 = vmatpush.msra.mxu0 0.0
        %6198 = vmatpush.msra.mxu0 0.0
        %6199 = vmatpush.msra.mxu0 0.0
        %6200 = vmatpush.msra.mxu0 0.0
        %6201 = vmatpush.msra.mxu0 0.0
        %6202 = vmatpush.msra.mxu0 %v6087
        %6203 = vmatpush.msra.mxu0 %v6086
        %6204 = vmatpush.msra.mxu0 %v6085
        %6205 = vmatpush.msra.mxu0 %v6084
        %6206 = vmatmul.f32.gmra.mxu0 %v6092
        %v6207 = vpop.f32.mrf.mxu0
        %v6208 = vadd.f32 %v6167, %v6207
        %6209 = vmatmul.f32.gmra.mxu0 %v6094
        %v6210 = vpop.f32.mrf.mxu0
        %v6211 = vadd.f32 %v6170, %v6210
        %6212 = vmatmul.f32.gmra.mxu0 %v6096
        %v6213 = vpop.f32.mrf.mxu0
        %v6214 = vadd.f32 %v6173, %v6213
        %6215 = vmatmul.f32.gmra.mxu0 %v6098
        %v6216 = vpop.f32.mrf.mxu0
        %v6217 = vadd.f32 %v6176, %v6216
        %6218 = vmatmul.f32.gmra.mxu0 %v6100
        %v6219 = vpop.f32.mrf.mxu0
        %v6220 = vadd.f32 %v6179, %v6219
        %6221 = vmatmul.f32.gmra.mxu0 %v6102
        %v6222 = vpop.f32.mrf.mxu0
        %v6223 = vadd.f32 %v6182, %v6222
        %6224 = vmatmul.f32.gmra.mxu0 %v6104
        %v6225 = vpop.f32.mrf.mxu0
        %v6226 = vadd.f32 %v6185, %v6225
        %6227 = vmatmul.f32.gmra.mxu0 %v6106
        %v6228 = vpop.f32.mrf.mxu0
        %v6229 = vadd.f32 %v6188, %v6228
        %6230 = vdwg.mxu0
        %6231 = vst.msk [vmem:[%s163] sm:$0xff] %vm5860, %v6208
        %6232 = vst.msk [vmem:[%s163 + $0x8] sm:$0xff] %vm5860, %v6211
        %6233 = vst.msk [vmem:[%s163 + $0x10] sm:$0xff] %vm5860, %v6214
        %6234 = vst.msk [vmem:[%s163 + $0x18] sm:$0xff] %vm5860, %v6217
        %6235 = vst.msk [vmem:[%s163 + $0x20] sm:$0xff] %vm5860, %v6220
        %6236 = vst.msk [vmem:[%s163 + $0x28] sm:$0xff] %vm5860, %v6223
        %6237 = vst.msk [vmem:[%s163 + $0x30] sm:$0xff] %vm5860, %v6226
        %6238 = vst.msk [vmem:[%s163 + $0x38] sm:$0xff] %vm5860, %v6229
        %s6239 = sand.u32 %s93, 1
        %s6240 = scalar_lea.sflag [#allocation3], %s6239
        %s6241 = sand.u32 %s93, 1
        %s6242 = smul.addr %s6241, 64
        %s6243 = scalar_lea.vmem [#allocation2], %s6242
        // Predicated region
        $region33: #{tpu_custom_call.1} parent=31 // pred_check
          %p6244 = pneg %p103
        $region34: #{tpu_custom_call.1} parent=31 // pred_check_branch
          %6246 = sbr.rel (%p6244) target = $region36
        $region35: #{tpu_custom_call.1} parent=31 // pred_region
          %6248 = vsyncadd %s6240, 0
          %s6249 = smul.addr %s17, 8
          %s6250 = smul.addr %s6249, 8
          %s6251 = scalar_lea.hbm %s3, %s6250
          %s6252 = sshll.u32 %s6243, 4
          %s6253 = int_to_ptr.vmem [resolvable:$true] %s6252
          %s6254 = sshll.u32 %s6251, 4
          %s6255 = int_to_ptr.hbm [resolvable:$true] %s6254
          %6260 = dma.vmem_to_hbm [thread:$0]  %s6253, 1024, %s6255, %s6240, 128, 128, 8
        $region36: #{tpu_custom_call.1} parent=31 // pred_fallthru
          _
      $region32: #{tpu_custom_call.1} parent=5 // pred_fallthru
        _
      %p6261 = scmp.le.s32.totalorder 2, %s12
      // Predicated region
      $region37: #{tpu_custom_call.1} parent=5 // pred_check
        %p6262 = pneg %p6261
      $region38: #{tpu_custom_call.1} parent=5 // pred_check_branch
        %6264 = sbr.rel (%p6262) target = $region40
      $region39: #{tpu_custom_call.1} parent=5 // pred_region
        %s6265 = ssub.s32 %s12, 2
        // Predicated region
        $region41: #{tpu_custom_call.1} parent=39 // pred_check
          %p6266 = pneg %p109
        $region42: #{tpu_custom_call.1} parent=39 // pred_check_branch
          %6268 = sbr.rel (%p6266) target = $region44
        $region43: #{tpu_custom_call.1} parent=39 // pred_region
          %s6269 = sand.u32 %s94, 1
          %s6270 = scalar_lea.sflag [#allocation3], %s6269
          %s6271 = sand.u32 %s94, 1
          %s6272 = smul.addr %s6271, 64
          %s6273 = scalar_lea.vmem [#allocation2], %s6272
          %6275 = dma.done %s6270, 1024
        $region44: #{tpu_custom_call.1} parent=39 // pred_fallthru
          _
      $region40: #{tpu_custom_call.1} parent=5 // pred_fallthru
        _
    $region6: #{tpu_custom_call.1} parent=1 // loop_footer
      %s16 = sadd.s32 1, %s12
    $region7: #{tpu_custom_call.1} parent=1 // loop_footer_branch
      %11 = sbr.rel target = $region3
    $region8: #{tpu_custom_call.1} parent=1 // loop_exit
      _
    %6276 = vsyncpa [#allocation3], 1
    %s6277 = scalar_lea.sflag [#allocation3], 1
    %6278 = vsyncpa %s6277, 1

</llo_original>
